<compile_context>
chip_gen: v7x
topology: tpu7x:2x2x1
jax: 0.10.0
libtpu: 0.0.40
codegen_flags: <defaults>
</compile_context>

<pallas_src>
import math

import jax
import jax.numpy as jnp
from jax.experimental import pallas as pl
from jax.experimental.pallas import tpu as pltpu

HIDDEN = 32  # hidden width of the underlying 'model1' MLP


def _round_up(a, b):
    return (a + b - 1) // b * b


def _default_sample_block():
    # 8*HIDDEN = 256 matches the 256x256 MXU of v6e/v7x; 4*HIDDEN = 128 matches
    # the 128x128 MXUs of earlier generations (v5e and before).
    try:
        kind = jax.devices()[0].device_kind.lower()
    except Exception:
        return 8
    if any(t in kind for t in ("v2", "v3", "v4", "v5")):
        return 4
    return 8


def _pick_tile_n(n, cap=2048):
    """Large, lane-aligned batch tile with small padding waste."""
    n128 = _round_up(n, 128)
    if n128 <= cap:
        return n128                     # single tile, padding < 128 lanes
    for t in range(cap, 511, -128):     # prefer a tile that divides round_up(n,128)
        if n128 % t == 0:
            return t
    return cap                          # fall back: accept some tail padding


# ---------------------------------------------------------------------------
# Fused kernel. Grid = (sample_groups, batch_tiles).
#   j == 0 : sample the group's weights (mu + sigma*eps) into VMEM scratch,
#            building the stacked / block-diagonal layouts in-register.
#   all j  : three MXU matmuls (transposed MLP: batch on the lane axis) + tanh,
#            add folded (b3 + noise) column, store (S_BLOCK, tile_n) block.
# ---------------------------------------------------------------------------
def _bnn_fused_kernel(xt_ref, eps_ref, ew3_ref, b3_ref,
                      w1m, w1s, b1m, b1s,
                      w2m, w2s, b2m, b2s,
                      w3m, w3s,
                      o_ref,
                      w1_sc, b1_sc, w2_sc, b2_sc, w3_sc):
    sb, sbh = w3m.shape          # (S_BLOCK, S_BLOCK*H)
    h = sbh // sb
    p = w1m.shape[1]

    # (1) reparameterized weight samples for this group, cached in VMEM scratch
    #     (recomputed only when the sample-group index changes).
    @pl.when(pl.program_id(1) == 0)
    def _sample_weights():
        eps = eps_ref[0]                                     # (SB*H, H+P+2) packed
        w1_sc[...] = w1m[...] + w1s[...] * eps[:, h:h + p]
        b1_sc[...] = b1m[...] + b1s[...] * eps[:, h + p:h + p + 1]
        b2_sc[...] = b2m[...] + b2s[...] * eps[:, h + p + 1:h + p + 2]
        # Block-diagonal W2 / block-row W3: the off-diagonal sigma entries are
        # exactly 0, so lane-tiling the per-sample eps is safe (tiled copies land
        # on zeroed positions).
        e_w2 = jnp.concatenate([eps[:, 0:h]] * sb, axis=1)   # (SB*H, SB*H)
        w2_sc[...] = w2m[...] + w2s[...] * e_w2
        e_w3 = jnp.concatenate([ew3_ref[0]] * sb, axis=1)    # (SB, SB*H)
        w3_sc[...] = w3m[...] + w3s[...] * e_w3

    # (2) grouped MLP on this batch tile (batch on the lane axis).
    xt = xt_ref[...]                                                          # (P, TN)
    h1 = jnp.tanh(jnp.dot(w1_sc[...], xt,
                          preferred_element_type=jnp.float32) + b1_sc[...])   # (SB*H, TN)
    h2 = jnp.tanh(jnp.dot(w2_sc[...], h1,
                          preferred_element_type=jnp.float32) + b2_sc[...])   # (SB*H, TN)
    y = jnp.dot(w3_sc[...], h2,
                preferred_element_type=jnp.float32) + b3_ref[0]               # (SB, TN)

    # (3) b3 + per-sample observation noise were folded into b3_ref on the host.
    o_ref[0] = y


def bnn_mc_forward(x, mus, log_sigmas, eps, noise, *, tile_n=None, sample_block=None):
    """Fused S-sample BNN forward.

    x          : (N, P) inputs.
    mus        : [w1 (H,P), b1 (H,), w2 (H,H), b2 (H,), w3 (1,H), b3 (1,)]
                 variational means, PyTorch (out_features, in_features) layout.
    log_sigmas : same shapes as mus.
    eps        : same shapes as mus with a leading S axis (standard-normal draws).
    noise      : (S,) per-sample additive observation noise.
    returns    : (S, N) float32 -- one prediction vector per weight sample.
    """
    x = jnp.asarray(x, jnp.float32)
    n, p = x.shape
    h = mus[0].shape[0]
    s = int(noise.shape[0])

    f32 = lambda a: jnp.asarray(a, jnp.float32)
    w1m, b1m, w2m, b2m, w3m, b3m = map(f32, mus)
    w1s, b1s, w2s, b2s, w3s, b3s = [jnp.exp(f32(ls)) for ls in log_sigmas]
    w1e, b1e, w2e, b2e, w3e, b3e = map(f32, eps)
    noise = f32(noise).reshape(s)

    # ---- sample grouping ----------------------------------------------------
    sb = sample_block if sample_block is not None else _default_sample_block()
    sb = max(1, min(sb, s))
    s_pad = _round_up(s, sb)
    ng = s_pad // sb

    def pad_s(a):
        if s_pad == s:
            return a
        return jnp.zeros((s_pad,) + a.shape[1:], a.dtype).at[:s].set(a)

    w1e = pad_s(w1e.reshape(s, h, p))
    b1e = pad_s(b1e.reshape(s, h, 1))
    w2e = pad_s(w2e.reshape(s, h, h))
    b2e = pad_s(b2e.reshape(s, h, 1))
    w3e = pad_s(w3e.reshape(s, 1, h))
    b3e = pad_s(b3e.reshape(s, 1))
    noise_p = pad_s(noise.reshape(s, 1))

    # ---- packed per-sample eps (one aligned DMA per group) -------------------
    eps_pack = jnp.concatenate(
        [w2e.reshape(s_pad * h, h),    # lanes [0, H)      -> W2 eps
         w1e.reshape(s_pad * h, p),    # lanes [H, H+P)    -> W1 eps
         b1e.reshape(s_pad * h, 1),    # lane  H+P         -> b1 eps
         b2e.reshape(s_pad * h, 1)],   # lane  H+P+1       -> b2 eps
        axis=1).reshape(ng, sb * h, h + p + 2)
    w3e_g = w3e.reshape(ng, sb, h)

    # ---- fold output bias + per-sample observation noise into one column -----
    b3_eff = (b3m.reshape(1, 1) + b3s.reshape(1, 1) * b3e + noise_p).reshape(ng, sb, 1)

    # ---- resident stacked / block-diagonal parameters (sample-independent) ---
    eye = jnp.eye(sb, dtype=jnp.float32)
    w1m_st = jnp.tile(w1m, (sb, 1))
    w1s_st = jnp.tile(w1s, (sb, 1))
    b1m_st = jnp.tile(b1m.reshape(h, 1), (sb, 1))
    b1s_st = jnp.tile(b1s.reshape(h, 1), (sb, 1))
    w2m_bd = jnp.kron(eye, w2m)                        # (SB*H, SB*H), zero off-diag
    w2s_bd = jnp.kron(eye, w2s)
    b2m_st = jnp.tile(b2m.reshape(h, 1), (sb, 1))
    b2s_st = jnp.tile(b2s.reshape(h, 1), (sb, 1))
    w3m_br = jnp.kron(eye, w3m.reshape(1, h))          # (SB, SB*H), zero off-block
    w3s_br = jnp.kron(eye, w3s.reshape(1, h))

    # ---- batch on the lane axis ----------------------------------------------
    if tile_n is None:
        tile_n = _pick_tile_n(n)
    n_pad = _round_up(n, tile_n)
    xt = jnp.zeros((p, n_pad), jnp.float32).at[:, :n].set(x.T)
    n_tiles = n_pad // tile_n

    res = lambda g, j: (0, 0)        # resident in VMEM across all grid steps
    per_g = lambda g, j: (g, 0, 0)   # streamed once per sample group

    in_specs = [
        pl.BlockSpec((p, tile_n), lambda g, j: (0, j)),             # X^T batch tile
        pl.BlockSpec((1, sb * h, h + p + 2), per_g),                # packed eps (w2|w1|b1|b2)
        pl.BlockSpec((1, sb, h), per_g),                            # eps for w3
        pl.BlockSpec((1, sb, 1), per_g),                            # folded b3 + noise
        pl.BlockSpec((sb * h, p), res), pl.BlockSpec((sb * h, p), res),          # w1 mu/sigma
        pl.BlockSpec((sb * h, 1), res), pl.BlockSpec((sb * h, 1), res),          # b1
        pl.BlockSpec((sb * h, sb * h), res), pl.BlockSpec((sb * h, sb * h), res),  # w2 blkdiag
        pl.BlockSpec((sb * h, 1), res), pl.BlockSpec((sb * h, 1), res),          # b2
        pl.BlockSpec((sb, sb * h), res), pl.BlockSpec((sb, sb * h), res),        # w3 blkrow
    ]

    out = pl.pallas_call(
        _bnn_fused_kernel,
        out_shape=jax.ShapeDtypeStruct((ng, sb, n_pad), jnp.float32),
        grid=(ng, n_tiles),
        in_specs=in_specs,
        out_specs=pl.BlockSpec((1, sb, tile_n), lambda g, j: (g, 0, j)),
        scratch_shapes=[
            pltpu.VMEM((sb * h, p), jnp.float32),       # sampled W1 (stacked)
            pltpu.VMEM((sb * h, 1), jnp.float32),       # sampled b1
            pltpu.VMEM((sb * h, sb * h), jnp.float32),  # sampled W2 (block-diag)
            pltpu.VMEM((sb * h, 1), jnp.float32),       # sampled b2
            pltpu.VMEM((sb, sb * h), jnp.float32),      # sampled W3 (block-row)
        ],
        compiler_params=pltpu.CompilerParams(
            # batch axis must be 'arbitrary': the sampled-weight cache is filled
            # at j == 0, so each core must walk a group's batch tiles from j == 0.
            dimension_semantics=("parallel", "arbitrary")),
    )(xt, eps_pack, w3e_g, b3_eff,
      w1m_st, w1s_st, b1m_st, b1s_st,
      w2m_bd, w2s_bd, b2m_st, b2s_st,
      w3m_br, w3s_br)

    return out.reshape(s_pad, n_pad)[:s, :n]


# ---------------------------------------------------------------------------
# Glue: deterministic parameter setup mirroring BayesianNeuralNetwork.__init__
# ---------------------------------------------------------------------------
def _linear_init(kw, kb, fan_in, fan_out):
    # PyTorch nn.Linear default init: U(-1/sqrt(fan_in), 1/sqrt(fan_in))
    bound = 1.0 / math.sqrt(fan_in)
    w = jax.random.uniform(kw, (fan_out, fan_in), minval=-bound, maxval=bound,
                           dtype=jnp.float32)
    b = jax.random.uniform(kb, (fan_out,), minval=-bound, maxval=bound,
                           dtype=jnp.float32)
    return w, b


def _reference(x, mus, log_sigmas, eps, noise):
    """Pure-jnp reference of the same S-sample forward (sanity check)."""
    w1m, b1m, w2m, b2m, w3m, b3m = mus
    w1l, b1l, w2l, b2l, w3l, b3l = log_sigmas
    w1e, b1e, w2e, b2e, w3e, b3e = eps
    outs = []
    for i in range(noise.shape[0]):
        w1 = w1m + jnp.exp(w1l) * w1e[i]
        b1 = b1m + jnp.exp(b1l) * b1e[i]
        w2 = w2m + jnp.exp(w2l) * w2e[i]
        b2 = b2m + jnp.exp(b2l) * b2e[i]
        w3 = w3m + jnp.exp(w3l) * w3e[i]
        b3 = b3m + jnp.exp(b3l) * b3e[i]
        h1 = jnp.tanh(x @ w1.T + b1)
        h2 = jnp.tanh(h1 @ w2.T + b2)
        y = (h2 @ w3.T + b3)[:, 0] + noise[i]
        outs.append(y)
    return jnp.stack(outs)


if __name__ == "__main__":
    key = jax.random.PRNGKey(0)
    N, P, S = 100, 4, 16          # data points, input features, MC weight samples
    keys = jax.random.split(key, 12)

    X = jax.random.normal(keys[0], (N, P), dtype=jnp.float32)

    # NeuralNetwork('model1') parameters -> variational means (PyTorch layout).
    w1_mu, b1_mu = _linear_init(keys[1], keys[2], P, HIDDEN)
    w2_mu, b2_mu = _linear_init(keys[3], keys[4], HIDDEN, HIDDEN)
    w3_mu, b3_mu = _linear_init(keys[5], keys[6], HIDDEN, 1)
    mus = [w1_mu, b1_mu, w2_mu, b2_mu, w3_mu, b3_mu]

    # log_w_sigma = log(0.1) * ones(param.shape)   (self.w_var)
    w_var = math.log(0.1)
    log_sigmas = [jnp.full(m.shape, w_var, dtype=jnp.float32) for m in mus]

    # Standard-normal eps for all S Monte-Carlo samples (host RNG; the kernel does
    # the reparameterization mu + sigma * eps in-register).
    eps_keys = jax.random.split(keys[7], len(mus))
    eps = [jax.random.normal(k, (S,) + m.shape, dtype=jnp.float32)
           for k, m in zip(eps_keys, mus)]

    # additive_noise = 0.05; one scalar noise draw per MC sample, as in predict().
    additive_noise = jnp.float32(0.05)
    noise = additive_noise * jax.random.normal(keys[8], (S,), dtype=jnp.float32)

    # TODO(synk): z priors use z_var = 0 (degenerate Normal(0,0)) and z never feeds
    # the network compute in the reference forward/predict, so it is omitted.
    # TODO(synk): AlphaDivergenceLoss / Adam training loop and matplotlib plotting in
    # forward()/predict() are host-side training code, not kernel compute.  The
    # "mean prediction" path of predict() is this same kernel with eps=0, noise=0.

    ys = bnn_mc_forward(X, mus, log_sigmas, eps, noise)     # (S, N)
    jax.block_until_ready(ys)

    assert ys.shape == (S, N) and ys.dtype == jnp.float32
    ref = _reference(X, mus, log_sigmas, eps, noise)
    max_err = float(jnp.max(jnp.abs(ys - ref)))
    # Tolerance covers possible bf16-pass MXU rounding differences between the
    # Mosaic dots and XLA's default-precision f32 matmuls in the jnp reference.
    assert max_err < 2e-2, f"mismatch vs reference: {max_err}"
    print("KERNEL_OK")
</pallas_src>

<mosaic_0001>
module attributes {stable_mosaic.version = 11 : i64} {
  func.func @_bnn_fused_kernel(%arg0: i32, %arg1: i32, %arg2: memref<4x128xf32, #tpu.memory_space<vmem>>, %arg3: memref<1x256x38xf32, #tpu.memory_space<vmem>>, %arg4: memref<1x8x32xf32, #tpu.memory_space<vmem>>, %arg5: memref<1x8x1xf32, #tpu.memory_space<vmem>>, %arg6: memref<256x4xf32, #tpu.memory_space<vmem>>, %arg7: memref<256x4xf32, #tpu.memory_space<vmem>>, %arg8: memref<256x1xf32, #tpu.memory_space<vmem>>, %arg9: memref<256x1xf32, #tpu.memory_space<vmem>>, %arg10: memref<256x256xf32, #tpu.memory_space<vmem>>, %arg11: memref<256x256xf32, #tpu.memory_space<vmem>>, %arg12: memref<256x1xf32, #tpu.memory_space<vmem>>, %arg13: memref<256x1xf32, #tpu.memory_space<vmem>>, %arg14: memref<8x256xf32, #tpu.memory_space<vmem>>, %arg15: memref<8x256xf32, #tpu.memory_space<vmem>>, %arg16: memref<1x8x128xf32, #tpu.memory_space<vmem>>, %arg17: memref<256x4xf32, #tpu.memory_space<vmem>>, %arg18: memref<256x1xf32, #tpu.memory_space<vmem>>, %arg19: memref<256x256xf32, #tpu.memory_space<vmem>>, %arg20: memref<256x1xf32, #tpu.memory_space<vmem>>, %arg21: memref<8x256xf32, #tpu.memory_space<vmem>>) attributes {dimension_semantics = [#tpu.dimension_semantics<parallel>, #tpu.dimension_semantics<arbitrary>], iteration_bounds = array<i64: 2, 1>, scalar_prefetch = 0 : i64, scratch_operands = 5 : i64, tpu.core_type = #tpu.core_type<tc>, window_params = [{transform_indices = @transform_0, window_bounds = array<i64: 4, 128>}, {transform_indices = @transform_1, window_bounds = array<i64: 1, 256, 38>}, {transform_indices = @transform_2, window_bounds = array<i64: 1, 8, 32>}, {transform_indices = @transform_3, window_bounds = array<i64: 1, 8, 1>}, {pipeline_mode = #tpu.pipeline_mode<synchronous>, transform_indices = @transform_4, window_bounds = array<i64: 256, 4>}, {pipeline_mode = #tpu.pipeline_mode<synchronous>, transform_indices = @transform_5, window_bounds = array<i64: 256, 4>}, {pipeline_mode = #tpu.pipeline_mode<synchronous>, transform_indices = @transform_6, window_bounds = array<i64: 256, 1>}, {pipeline_mode = #tpu.pipeline_mode<synchronous>, transform_indices = @transform_7, window_bounds = array<i64: 256, 1>}, {pipeline_mode = #tpu.pipeline_mode<synchronous>, transform_indices = @transform_8, window_bounds = array<i64: 256, 256>}, {pipeline_mode = #tpu.pipeline_mode<synchronous>, transform_indices = @transform_9, window_bounds = array<i64: 256, 256>}, {pipeline_mode = #tpu.pipeline_mode<synchronous>, transform_indices = @transform_10, window_bounds = array<i64: 256, 1>}, {pipeline_mode = #tpu.pipeline_mode<synchronous>, transform_indices = @transform_11, window_bounds = array<i64: 256, 1>}, {pipeline_mode = #tpu.pipeline_mode<synchronous>, transform_indices = @transform_12, window_bounds = array<i64: 8, 256>}, {pipeline_mode = #tpu.pipeline_mode<synchronous>, transform_indices = @transform_13, window_bounds = array<i64: 8, 256>}, {transform_indices = @transform_14, window_bounds = array<i64: 1, 8, 128>}]} {
    %c0_i32 = arith.constant 0 : i32
    %0 = arith.cmpi eq, %arg1, %c0_i32 : i32
    %1 = arith.extui %0 : i1 to i32
    %c0_i32_0 = arith.constant 0 : i32
    %2 = arith.cmpi ne, %1, %c0_i32_0 : i32
    scf.if %2 {
      %c0_20 = arith.constant 0 : index
      %c0_21 = arith.constant 0 : index
      %c0_22 = arith.constant 0 : index
      %25 = vector.load %arg3[%c0_20, %c0_21, %c0_22] : memref<1x256x38xf32, #tpu.memory_space<vmem>>, vector<1x256x38xf32>
      %26 = vector.shape_cast %25 : vector<1x256x38xf32> to vector<256x38xf32>
      %c0_23 = arith.constant 0 : index
      %c0_24 = arith.constant 0 : index
      %27 = vector.load %arg6[%c0_23, %c0_24] : memref<256x4xf32, #tpu.memory_space<vmem>>, vector<256x4xf32>
      %c0_25 = arith.constant 0 : index
      %c0_26 = arith.constant 0 : index
      %28 = vector.load %arg7[%c0_25, %c0_26] : memref<256x4xf32, #tpu.memory_space<vmem>>, vector<256x4xf32>
      %29 = vector.extract_strided_slice %26 {offsets = [0, 32], sizes = [256, 4], strides = [1, 1]} : vector<256x38xf32> to vector<256x4xf32>
      %30 = arith.mulf %28, %29 : vector<256x4xf32>
      %31 = arith.addf %27, %30 : vector<256x4xf32>
      %c0_27 = arith.constant 0 : index
      %c0_28 = arith.constant 0 : index
      %32 = vector.load %arg17[%c0_27, %c0_28] : memref<256x4xf32, #tpu.memory_space<vmem>>, vector<256x4xf32>
      tpu.vector_store %arg17[%c0_27, %c0_28], %31 {strides = array<i32>} : memref<256x4xf32, #tpu.memory_space<vmem>>, vector<256x4xf32>,
      %c0_29 = arith.constant 0 : index
      %c0_30 = arith.constant 0 : index
      %33 = vector.load %arg8[%c0_29, %c0_30] : memref<256x1xf32, #tpu.memory_space<vmem>>, vector<256x1xf32>
      %c0_31 = arith.constant 0 : index
      %c0_32 = arith.constant 0 : index
      %34 = vector.load %arg9[%c0_31, %c0_32] : memref<256x1xf32, #tpu.memory_space<vmem>>, vector<256x1xf32>
      %35 = vector.extract_strided_slice %26 {offsets = [0, 36], sizes = [256, 1], strides = [1, 1]} : vector<256x38xf32> to vector<256x1xf32>
      %36 = arith.mulf %34, %35 : vector<256x1xf32>
      %37 = arith.addf %33, %36 : vector<256x1xf32>
      %c0_33 = arith.constant 0 : index
      %c0_34 = arith.constant 0 : index
      %38 = vector.load %arg18[%c0_33, %c0_34] : memref<256x1xf32, #tpu.memory_space<vmem>>, vector<256x1xf32>
      tpu.vector_store %arg18[%c0_33, %c0_34], %37 {strides = array<i32>} : memref<256x1xf32, #tpu.memory_space<vmem>>, vector<256x1xf32>,
      %c0_35 = arith.constant 0 : index
      %c0_36 = arith.constant 0 : index
      %39 = vector.load %arg12[%c0_35, %c0_36] : memref<256x1xf32, #tpu.memory_space<vmem>>, vector<256x1xf32>
      %c0_37 = arith.constant 0 : index
      %c0_38 = arith.constant 0 : index
      %40 = vector.load %arg13[%c0_37, %c0_38] : memref<256x1xf32, #tpu.memory_space<vmem>>, vector<256x1xf32>
      %41 = vector.extract_strided_slice %26 {offsets = [0, 37], sizes = [256, 1], strides = [1, 1]} : vector<256x38xf32> to vector<256x1xf32>
      %42 = arith.mulf %40, %41 : vector<256x1xf32>
      %43 = arith.addf %39, %42 : vector<256x1xf32>
      %c0_39 = arith.constant 0 : index
      %c0_40 = arith.constant 0 : index
      %44 = vector.load %arg20[%c0_39, %c0_40] : memref<256x1xf32, #tpu.memory_space<vmem>>, vector<256x1xf32>
      tpu.vector_store %arg20[%c0_39, %c0_40], %43 {strides = array<i32>} : memref<256x1xf32, #tpu.memory_space<vmem>>, vector<256x1xf32>,
      %45 = vector.extract_strided_slice %26 {offsets = [0, 0], sizes = [256, 32], strides = [1, 1]} : vector<256x38xf32> to vector<256x32xf32>
      %46 = tpu.concatenate %45, %45, %45, %45, %45, %45, %45, %45 in 1 : vector<256x32xf32>, vector<256x32xf32>, vector<256x32xf32>, vector<256x32xf32>, vector<256x32xf32>, vector<256x32xf32>, vector<256x32xf32>, vector<256x32xf32> -> vector<256x256xf32>
      %c0_41 = arith.constant 0 : index
      %c0_42 = arith.constant 0 : index
      %47 = vector.load %arg10[%c0_41, %c0_42] : memref<256x256xf32, #tpu.memory_space<vmem>>, vector<256x256xf32>
      %c0_43 = arith.constant 0 : index
      %c0_44 = arith.constant 0 : index
      %48 = vector.load %arg11[%c0_43, %c0_44] : memref<256x256xf32, #tpu.memory_space<vmem>>, vector<256x256xf32>
      %49 = arith.mulf %48, %46 : vector<256x256xf32>
      %50 = arith.addf %47, %49 : vector<256x256xf32>
      %c0_45 = arith.constant 0 : index
      %c0_46 = arith.constant 0 : index
      %51 = vector.load %arg19[%c0_45, %c0_46] : memref<256x256xf32, #tpu.memory_space<vmem>>, vector<256x256xf32>
      tpu.vector_store %arg19[%c0_45, %c0_46], %50 {strides = array<i32>} : memref<256x256xf32, #tpu.memory_space<vmem>>, vector<256x256xf32>,
      %c0_47 = arith.constant 0 : index
      %c0_48 = arith.constant 0 : index
      %c0_49 = arith.constant 0 : index
      %52 = vector.load %arg4[%c0_47, %c0_48, %c0_49] : memref<1x8x32xf32, #tpu.memory_space<vmem>>, vector<1x8x32xf32>
      %53 = vector.shape_cast %52 : vector<1x8x32xf32> to vector<8x32xf32>
      %54 = tpu.concatenate %53, %53, %53, %53, %53, %53, %53, %53 in 1 : vector<8x32xf32>, vector<8x32xf32>, vector<8x32xf32>, vector<8x32xf32>, vector<8x32xf32>, vector<8x32xf32>, vector<8x32xf32>, vector<8x32xf32> -> vector<8x256xf32>
      %c0_50 = arith.constant 0 : index
      %c0_51 = arith.constant 0 : index
      %55 = vector.load %arg14[%c0_50, %c0_51] : memref<8x256xf32, #tpu.memory_space<vmem>>, vector<8x256xf32>
      %c0_52 = arith.constant 0 : index
      %c0_53 = arith.constant 0 : index
      %56 = vector.load %arg15[%c0_52, %c0_53] : memref<8x256xf32, #tpu.memory_space<vmem>>, vector<8x256xf32>
      %57 = arith.mulf %56, %54 : vector<8x256xf32>
      %58 = arith.addf %55, %57 : vector<8x256xf32>
      %c0_54 = arith.constant 0 : index
      %c0_55 = arith.constant 0 : index
      %59 = vector.load %arg21[%c0_54, %c0_55] : memref<8x256xf32, #tpu.memory_space<vmem>>, vector<8x256xf32>
      tpu.vector_store %arg21[%c0_54, %c0_55], %58 {strides = array<i32>} : memref<8x256xf32, #tpu.memory_space<vmem>>, vector<8x256xf32>,
    } else {
    }
    %c0 = arith.constant 0 : index
    %c0_1 = arith.constant 0 : index
    %3 = vector.load %arg2[%c0, %c0_1] : memref<4x128xf32, #tpu.memory_space<vmem>>, vector<4x128xf32>
    %c0_2 = arith.constant 0 : index
    %c0_3 = arith.constant 0 : index
    %4 = vector.load %arg17[%c0_2, %c0_3] : memref<256x4xf32, #tpu.memory_space<vmem>>, vector<256x4xf32>
    %cst = arith.constant dense<0.000000e+00> : vector<256x128xf32>
    %5 = tpu.matmul %4, %3, %cst {dimension_numbers = #tpu.dot_dimension_numbers<[1], [0], [0], [1], [0, 0, 1, 1], [], []>} : vector<256x4xf32>, vector<4x128xf32>, vector<256x128xf32> -> vector<256x128xf32>
    %c0_4 = arith.constant 0 : index
    %c0_5 = arith.constant 0 : index
    %6 = vector.load %arg18[%c0_4, %c0_5] : memref<256x1xf32, #tpu.memory_space<vmem>>, vector<256x1xf32>
    %7 = vector.broadcast %6 : vector<256x1xf32> to vector<256x128xf32>
    %8 = arith.addf %5, %7 : vector<256x128xf32>
    %9 = math.tanh %8 : vector<256x128xf32>
    %c0_6 = arith.constant 0 : index
    %c0_7 = arith.constant 0 : index
    %10 = vector.load %arg19[%c0_6, %c0_7] : memref<256x256xf32, #tpu.memory_space<vmem>>, vector<256x256xf32>
    %cst_8 = arith.constant dense<0.000000e+00> : vector<256x128xf32>
    %11 = tpu.matmul %10, %9, %cst_8 {dimension_numbers = #tpu.dot_dimension_numbers<[1], [0], [0], [1], [0, 0, 1, 1], [], []>} : vector<256x256xf32>, vector<256x128xf32>, vector<256x128xf32> -> vector<256x128xf32>
    %c0_9 = arith.constant 0 : index
    %c0_10 = arith.constant 0 : index
    %12 = vector.load %arg20[%c0_9, %c0_10] : memref<256x1xf32, #tpu.memory_space<vmem>>, vector<256x1xf32>
    %13 = vector.broadcast %12 : vector<256x1xf32> to vector<256x128xf32>
    %14 = arith.addf %11, %13 : vector<256x128xf32>
    %15 = math.tanh %14 : vector<256x128xf32>
    %c0_11 = arith.constant 0 : index
    %c0_12 = arith.constant 0 : index
    %16 = vector.load %arg21[%c0_11, %c0_12] : memref<8x256xf32, #tpu.memory_space<vmem>>, vector<8x256xf32>
    %cst_13 = arith.constant dense<0.000000e+00> : vector<8x128xf32>
    %17 = tpu.matmul %16, %15, %cst_13 {dimension_numbers = #tpu.dot_dimension_numbers<[1], [0], [0], [1], [0, 0, 1, 1], [], []>} : vector<8x256xf32>, vector<256x128xf32>, vector<8x128xf32> -> vector<8x128xf32>
    %c0_14 = arith.constant 0 : index
    %c0_15 = arith.constant 0 : index
    %c0_16 = arith.constant 0 : index
    %18 = vector.load %arg5[%c0_14, %c0_15, %c0_16] : memref<1x8x1xf32, #tpu.memory_space<vmem>>, vector<1x8x1xf32>
    %19 = vector.shape_cast %18 : vector<1x8x1xf32> to vector<8x1xf32>
    %20 = vector.broadcast %19 : vector<8x1xf32> to vector<8x128xf32>
    %21 = arith.addf %17, %20 : vector<8x128xf32>
    %c0_17 = arith.constant 0 : index
    %c0_18 = arith.constant 0 : index
    %c0_19 = arith.constant 0 : index
    %22 = vector.load %arg16[%c0_17, %c0_18, %c0_19] : memref<1x8x128xf32, #tpu.memory_space<vmem>>, vector<1x8x128xf32>
    %23 = vector.shape_cast %22 : vector<1x8x128xf32> to vector<8x128xf32>
    %24 = vector.shape_cast %21 : vector<8x128xf32> to vector<1x8x128xf32>
    tpu.vector_store %arg16[%c0_17, %c0_18, %c0_19], %24 {strides = array<i32>} : memref<1x8x128xf32, #tpu.memory_space<vmem>>, vector<1x8x128xf32>,
    return
  }
  func.func @transform_0(%arg0: i32, %arg1: i32) -> (i32, i32) {
    %c0_i32 = arith.constant 0 : i32
    %c0_i32_0 = arith.constant 0 : i32
    return %c0_i32, %arg1 : i32, i32
  }
  func.func @transform_1(%arg0: i32, %arg1: i32) -> (i32, i32, i32) {
    %c0_i32 = arith.constant 0 : i32
    %c0_i32_0 = arith.constant 0 : i32
    %c0_i32_1 = arith.constant 0 : i32
    return %arg0, %c0_i32, %c0_i32_0 : i32, i32, i32
  }
  func.func @transform_2(%arg0: i32, %arg1: i32) -> (i32, i32, i32) {
    %c0_i32 = arith.constant 0 : i32
    %c0_i32_0 = arith.constant 0 : i32
    %c0_i32_1 = arith.constant 0 : i32
    return %arg0, %c0_i32, %c0_i32_0 : i32, i32, i32
  }
  func.func @transform_3(%arg0: i32, %arg1: i32) -> (i32, i32, i32) {
    %c0_i32 = arith.constant 0 : i32
    %c0_i32_0 = arith.constant 0 : i32
    %c0_i32_1 = arith.constant 0 : i32
    return %arg0, %c0_i32, %c0_i32_0 : i32, i32, i32
  }
  func.func @transform_4(%arg0: i32, %arg1: i32) -> (i32, i32) {
    %c0_i32 = arith.constant 0 : i32
    %c0_i32_0 = arith.constant 0 : i32
    %c0_i32_1 = arith.constant 0 : i32
    return %c0_i32, %c0_i32_0 : i32, i32
  }
  func.func @transform_5(%arg0: i32, %arg1: i32) -> (i32, i32) {
    %c0_i32 = arith.constant 0 : i32
    %c0_i32_0 = arith.constant 0 : i32
    %c0_i32_1 = arith.constant 0 : i32
    return %c0_i32, %c0_i32_0 : i32, i32
  }
  func.func @transform_6(%arg0: i32, %arg1: i32) -> (i32, i32) {
    %c0_i32 = arith.constant 0 : i32
    %c0_i32_0 = arith.constant 0 : i32
    %c0_i32_1 = arith.constant 0 : i32
    return %c0_i32, %c0_i32_0 : i32, i32
  }
  func.func @transform_7(%arg0: i32, %arg1: i32) -> (i32, i32) {
    %c0_i32 = arith.constant 0 : i32
    %c0_i32_0 = arith.constant 0 : i32
    %c0_i32_1 = arith.constant 0 : i32
    return %c0_i32, %c0_i32_0 : i32, i32
  }
  func.func @transform_8(%arg0: i32, %arg1: i32) -> (i32, i32) {
    %c0_i32 = arith.constant 0 : i32
    %c0_i32_0 = arith.constant 0 : i32
    %c0_i32_1 = arith.constant 0 : i32
    return %c0_i32, %c0_i32_0 : i32, i32
  }
  func.func @transform_9(%arg0: i32, %arg1: i32) -> (i32, i32) {
    %c0_i32 = arith.constant 0 : i32
    %c0_i32_0 = arith.constant 0 : i32
    %c0_i32_1 = arith.constant 0 : i32
    return %c0_i32, %c0_i32_0 : i32, i32
  }
  func.func @transform_10(%arg0: i32, %arg1: i32) -> (i32, i32) {
    %c0_i32 = arith.constant 0 : i32
    %c0_i32_0 = arith.constant 0 : i32
    %c0_i32_1 = arith.constant 0 : i32
    return %c0_i32, %c0_i32_0 : i32, i32
  }
  func.func @transform_11(%arg0: i32, %arg1: i32) -> (i32, i32) {
    %c0_i32 = arith.constant 0 : i32
    %c0_i32_0 = arith.constant 0 : i32
    %c0_i32_1 = arith.constant 0 : i32
    return %c0_i32, %c0_i32_0 : i32, i32
  }
  func.func @transform_12(%arg0: i32, %arg1: i32) -> (i32, i32) {
    %c0_i32 = arith.constant 0 : i32
    %c0_i32_0 = arith.constant 0 : i32
    %c0_i32_1 = arith.constant 0 : i32
    return %c0_i32, %c0_i32_0 : i32, i32
  }
  func.func @transform_13(%arg0: i32, %arg1: i32) -> (i32, i32) {
    %c0_i32 = arith.constant 0 : i32
    %c0_i32_0 = arith.constant 0 : i32
    %c0_i32_1 = arith.constant 0 : i32
    return %c0_i32, %c0_i32_0 : i32, i32
  }
  func.func @transform_14(%arg0: i32, %arg1: i32) -> (i32, i32, i32) {
    %c0_i32 = arith.constant 0 : i32
    %c0_i32_0 = arith.constant 0 : i32
    return %arg0, %c0_i32, %arg1 : i32, i32, i32
  }
}

</mosaic_0001>

<llo_original>
// kernel: tpu_custom_call.1
$region0: #{tpu_custom_call.1}
  #allocation0 [shape = 'u32[]', space=smem, size = 0x4, offset = 0x4, fixed_abs, tag = 'smem constant byte address 0x4 - core index']
  #allocation1 [shape = 'u32[144,128]{1,0:T(1,128)}', space=vmem, size = 0x12000, scoped, tag = 'internal scratch']
  #allocation2 [shape = 'f32[256,4]{1,0:T(8,128)}', space=vmem, size = 0x20000, scoped, tag = 'scratch operand']
  #allocation3 [shape = 'f32[256,1]{1,0:T(8,128)}', space=vmem, size = 0x20000, scoped, tag = 'scratch operand']
  #allocation4 [shape = 'f32[256,256]{1,0:T(8,128)}', space=vmem, size = 0x40000, scoped, tag = 'scratch operand']
  #allocation5 [shape = 'f32[256,1]{1,0:T(8,128)}', space=vmem, size = 0x20000, scoped, tag = 'scratch operand']
  #allocation6 [shape = 'f32[8,256]{1,0:T(8,128)}', space=vmem, size = 0x2000, scoped, tag = 'scratch operand']
  %s0 = inlined_call_operand.vmem [shape: f32[4,128], index: 0, kind: input, shape index: {}]
  %s1 = inlined_call_operand.vmem [shape: f32[2,256,38], index: 1, kind: input, shape index: {}]
  %s2 = inlined_call_operand.vmem [shape: f32[2,8,32], index: 2, kind: input, shape index: {}]
  %s3 = inlined_call_operand.vmem [shape: f32[2,8,1], index: 3, kind: input, shape index: {}]
  %s4 = inlined_call_operand.vmem [shape: f32[256,4], index: 4, kind: input, shape index: {}]
  %s5 = inlined_call_operand.vmem [shape: f32[256,4], index: 5, kind: input, shape index: {}]
  %s6 = inlined_call_operand.vmem [shape: f32[256,1], index: 6, kind: input, shape index: {}]
  %s7 = inlined_call_operand.vmem [shape: f32[256,1], index: 7, kind: input, shape index: {}]
  %s8 = inlined_call_operand.vmem [shape: f32[256,256], index: 8, kind: input, shape index: {}]
  %s9 = inlined_call_operand.vmem [shape: f32[256,256], index: 9, kind: input, shape index: {}]
  %s10 = inlined_call_operand.vmem [shape: f32[256,1], index: 10, kind: input, shape index: {}]
  %s11 = inlined_call_operand.vmem [shape: f32[256,1], index: 11, kind: input, shape index: {}]
  %s12 = inlined_call_operand.vmem [shape: f32[8,256], index: 12, kind: input, shape index: {}]
  %s13 = inlined_call_operand.vmem [shape: f32[8,256], index: 13, kind: input, shape index: {}]
  %s14 = inlined_call_operand.hbm [shape: f32[2,8,128], index: 14, kind: output, shape index: {}]
  %s15 = sld [smem:[#allocation0]]
  $region93: #{tpu_custom_call.1} parent=0
    _
  %s17 = ssub.s32 1, %s15
  %s18 = scalar_select 0, %s17, %s15
  $region1: #{tpu_custom_call.1} parent=0
    #allocation7 [shape = 'u8[8192]{0}', space=vmem, size = 0x2000, scoped, tag = 'output window, operand 0']
    #allocation8 [shape = 's32[2]{0}', space=sflag, size = 0x8, scoped, tag = 'scoped memory for tpu_custom_call.1']
    %19 = vsyncpa [#allocation8], 0
    %s20 = scalar_lea.sflag [#allocation8], 1
    %21 = vsyncpa %s20, 0
    loop: start=0, step=1, limit=4
    $region2: #{tpu_custom_call.1} parent=1 // loop_pre_header
      _
    $region3: #{tpu_custom_call.1} parent=1 // loop_header
      %s23 = sphi 0, %s27
      %p24 = scmp.ge.s32.totalorder %s23, 4
      %s30 = sphi 0, %s42
      %s31 = sphi 0, %s38
      %s32 = sphi 0, %s30
      %s33 = sphi 0, %s31
      %s34 = sphi 0, %s32
      %s35 = sphi 0, %s33
      %s45 = sphi 0, %s47
      %s48 = sphi 0, %s45
      %s49 = sphi 0, %s48
      %s65 = sphi 0, %s49
      %s71 = sphi 0, %s73
      %s74 = sphi 0, %s71
      %s75 = sphi 0, %s74
      %s91 = sphi 0, %s75
      %s97 = sphi 0, %s99
      %s100 = sphi 0, %s97
      %s101 = sphi 0, %s100
      %s117 = sphi 0, %s101
      %s123 = sphi 0, %s125
      %s126 = sphi 0, %s123
      %s127 = sphi 0, %s126
      %s143 = sphi 0, %s127
      %s147 = sphi 0, %s147
      %s149 = sphi 0, %s147
      %s150 = sphi 0, %s149
      %s164 = sphi 0, %s150
      %s168 = sphi 0, %s168
      %s170 = sphi 0, %s168
      %s171 = sphi 0, %s170
      %s185 = sphi 0, %s171
      %s189 = sphi 0, %s189
      %s191 = sphi 0, %s189
      %s192 = sphi 0, %s191
      %s206 = sphi 0, %s192
      %s210 = sphi 0, %s210
      %s212 = sphi 0, %s210
      %s213 = sphi 0, %s212
      %s227 = sphi 0, %s213
      %s231 = sphi 0, %s231
      %s233 = sphi 0, %s231
      %s234 = sphi 0, %s233
      %s248 = sphi 0, %s234
      %s252 = sphi 0, %s252
      %s254 = sphi 0, %s252
      %s255 = sphi 0, %s254
      %s269 = sphi 0, %s255
      %s273 = sphi 0, %s273
      %s275 = sphi 0, %s273
      %s276 = sphi 0, %s275
      %s290 = sphi 0, %s276
      %s294 = sphi 0, %s294
      %s296 = sphi 0, %s294
      %s297 = sphi 0, %s296
      %s311 = sphi 0, %s297
      %s315 = sphi 0, %s315
      %s317 = sphi 0, %s315
      %s318 = sphi 0, %s317
      %s332 = sphi 0, %s318
      %s336 = sphi 0, %s336
      %s338 = sphi 0, %s336
      %s339 = sphi 0, %s338
      %s353 = sphi 0, %s339
      %s361 = sphi 0, %s363
      %s364 = sphi 0, %s361
      %s365 = sphi 0, %s364
      %s381 = sphi 0, %s365
    $region4: #{tpu_custom_call.1} parent=1 // loop_header_branch
      %26 = sbr.rel (%p24) target = $region8
    $region5: #{tpu_custom_call.1} parent=1 // loop_body
      %s28 = ssub.s32 %s23, 1
      %s29 = ssub.s32 %s23, 2
      %s36 = sadd.s32 1, %s31
      %p37 = scmp.ge.s32.totalorder %s36, 1
      %s38 = scalar_select %p37, 0, %s36
      %s39 = sadd.s32 1, %s30
      %s40 = scalar_select %p37, %s39, %s30
      %p41 = scmp.ge.s32.totalorder %s40, 2
      %s42 = scalar_select %p41, 0, %s40
      %s43 = ssub.s32 %s31, %s38
      %p44 = scmp.eq.s32.totalorder %s43, 0
      %s46 = sadd.s32 %s45, 1
      %s47 = scalar_select %p44, %s45, %s46
      %p50 = pneg %p44
      %p51 = scmp.eq.s32.totalorder %s23, 1
      %p52 = por %p50, %p51
      %p53 = scmp.ne.s32.totalorder %s45, %s48
      %p54 = scmp.eq.s32.totalorder %s23, 0
      %p55 = por %p53, %p54
      %p56 = scmp.ne.s32.totalorder %s45, %s48
      %p57 = scmp.eq.s32.totalorder %s28, 1
      %p58 = por %p56, %p57
      %p59 = scmp.ne.s32.totalorder %s48, %s49
      %p60 = scmp.eq.s32.totalorder %s28, 0
      %p61 = por %p59, %p60
      %p62 = scmp.ne.s32.totalorder %s48, %s49
      %p63 = scmp.eq.s32.totalorder %s29, 1
      %p64 = por %p62, %p63
      %p66 = scmp.ne.s32.totalorder %s49, %s65
      %p67 = scmp.eq.s32.totalorder %s29, 0
      %p68 = por %p66, %p67
      %s69 = ssub.s32 %s30, %s42
      %p70 = scmp.eq.s32.totalorder %s69, 0
      %s72 = sadd.s32 %s71, 1
      %s73 = scalar_select %p70, %s71, %s72
      %p76 = pneg %p70
      %p77 = scmp.eq.s32.totalorder %s23, 1
      %p78 = por %p76, %p77
      %p79 = scmp.ne.s32.totalorder %s71, %s74
      %p80 = scmp.eq.s32.totalorder %s23, 0
      %p81 = por %p79, %p80
      %p82 = scmp.ne.s32.totalorder %s71, %s74
      %p83 = scmp.eq.s32.totalorder %s28, 1
      %p84 = por %p82, %p83
      %p85 = scmp.ne.s32.totalorder %s74, %s75
      %p86 = scmp.eq.s32.totalorder %s28, 0
      %p87 = por %p85, %p86
      %p88 = scmp.ne.s32.totalorder %s74, %s75
      %p89 = scmp.eq.s32.totalorder %s29, 1
      %p90 = por %p88, %p89
      %p92 = scmp.ne.s32.totalorder %s75, %s91
      %p93 = scmp.eq.s32.totalorder %s29, 0
      %p94 = por %p92, %p93
      %s95 = ssub.s32 %s30, %s42
      %p96 = scmp.eq.s32.totalorder %s95, 0
      %s98 = sadd.s32 %s97, 1
      %s99 = scalar_select %p96, %s97, %s98
      %p102 = pneg %p96
      %p103 = scmp.eq.s32.totalorder %s23, 1
      %p104 = por %p102, %p103
      %p105 = scmp.ne.s32.totalorder %s97, %s100
      %p106 = scmp.eq.s32.totalorder %s23, 0
      %p107 = por %p105, %p106
      %p108 = scmp.ne.s32.totalorder %s97, %s100
      %p109 = scmp.eq.s32.totalorder %s28, 1
      %p110 = por %p108, %p109
      %p111 = scmp.ne.s32.totalorder %s100, %s101
      %p112 = scmp.eq.s32.totalorder %s28, 0
      %p113 = por %p111, %p112
      %p114 = scmp.ne.s32.totalorder %s100, %s101
      %p115 = scmp.eq.s32.totalorder %s29, 1
      %p116 = por %p114, %p115
      %p118 = scmp.ne.s32.totalorder %s101, %s117
      %p119 = scmp.eq.s32.totalorder %s29, 0
      %p120 = por %p118, %p119
      %s121 = ssub.s32 %s30, %s42
      %p122 = scmp.eq.s32.totalorder %s121, 0
      %s124 = sadd.s32 %s123, 1
      %s125 = scalar_select %p122, %s123, %s124
      %p128 = pneg %p122
      %p129 = scmp.eq.s32.totalorder %s23, 1
      %p130 = por %p128, %p129
      %p131 = scmp.ne.s32.totalorder %s123, %s126
      %p132 = scmp.eq.s32.totalorder %s23, 0
      %p133 = por %p131, %p132
      %p134 = scmp.ne.s32.totalorder %s123, %s126
      %p135 = scmp.eq.s32.totalorder %s28, 1
      %p136 = por %p134, %p135
      %p137 = scmp.ne.s32.totalorder %s126, %s127
      %p138 = scmp.eq.s32.totalorder %s28, 0
      %p139 = por %p137, %p138
      %p140 = scmp.ne.s32.totalorder %s126, %s127
      %p141 = scmp.eq.s32.totalorder %s29, 1
      %p142 = por %p140, %p141
      %p144 = scmp.ne.s32.totalorder %s127, %s143
      %p145 = scmp.eq.s32.totalorder %s29, 0
      %p146 = por %p144, %p145
      %s148 = sadd.s32 %s147, 1
      %p151 = scmp.eq.s32.totalorder %s23, 1
      %p152 = scmp.ne.s32.totalorder %s147, %s149
      %p153 = scmp.eq.s32.totalorder %s23, 0
      %p154 = por %p152, %p153
      %p155 = scmp.ne.s32.totalorder %s147, %s149
      %p156 = scmp.eq.s32.totalorder %s28, 1
      %p157 = por %p155, %p156
      %p158 = scmp.ne.s32.totalorder %s149, %s150
      %p159 = scmp.eq.s32.totalorder %s28, 0
      %p160 = por %p158, %p159
      %p161 = scmp.ne.s32.totalorder %s149, %s150
      %p162 = scmp.eq.s32.totalorder %s29, 1
      %p163 = por %p161, %p162
      %p165 = scmp.ne.s32.totalorder %s150, %s164
      %p166 = scmp.eq.s32.totalorder %s29, 0
      %p167 = por %p165, %p166
      %s169 = sadd.s32 %s168, 1
      %p172 = scmp.eq.s32.totalorder %s23, 1
      %p173 = scmp.ne.s32.totalorder %s168, %s170
      %p174 = scmp.eq.s32.totalorder %s23, 0
      %p175 = por %p173, %p174
      %p176 = scmp.ne.s32.totalorder %s168, %s170
      %p177 = scmp.eq.s32.totalorder %s28, 1
      %p178 = por %p176, %p177
      %p179 = scmp.ne.s32.totalorder %s170, %s171
      %p180 = scmp.eq.s32.totalorder %s28, 0
      %p181 = por %p179, %p180
      %p182 = scmp.ne.s32.totalorder %s170, %s171
      %p183 = scmp.eq.s32.totalorder %s29, 1
      %p184 = por %p182, %p183
      %p186 = scmp.ne.s32.totalorder %s171, %s185
      %p187 = scmp.eq.s32.totalorder %s29, 0
      %p188 = por %p186, %p187
      %s190 = sadd.s32 %s189, 1
      %p193 = scmp.eq.s32.totalorder %s23, 1
      %p194 = scmp.ne.s32.totalorder %s189, %s191
      %p195 = scmp.eq.s32.totalorder %s23, 0
      %p196 = por %p194, %p195
      %p197 = scmp.ne.s32.totalorder %s189, %s191
      %p198 = scmp.eq.s32.totalorder %s28, 1
      %p199 = por %p197, %p198
      %p200 = scmp.ne.s32.totalorder %s191, %s192
      %p201 = scmp.eq.s32.totalorder %s28, 0
      %p202 = por %p200, %p201
      %p203 = scmp.ne.s32.totalorder %s191, %s192
      %p204 = scmp.eq.s32.totalorder %s29, 1
      %p205 = por %p203, %p204
      %p207 = scmp.ne.s32.totalorder %s192, %s206
      %p208 = scmp.eq.s32.totalorder %s29, 0
      %p209 = por %p207, %p208
      %s211 = sadd.s32 %s210, 1
      %p214 = scmp.eq.s32.totalorder %s23, 1
      %p215 = scmp.ne.s32.totalorder %s210, %s212
      %p216 = scmp.eq.s32.totalorder %s23, 0
      %p217 = por %p215, %p216
      %p218 = scmp.ne.s32.totalorder %s210, %s212
      %p219 = scmp.eq.s32.totalorder %s28, 1
      %p220 = por %p218, %p219
      %p221 = scmp.ne.s32.totalorder %s212, %s213
      %p222 = scmp.eq.s32.totalorder %s28, 0
      %p223 = por %p221, %p222
      %p224 = scmp.ne.s32.totalorder %s212, %s213
      %p225 = scmp.eq.s32.totalorder %s29, 1
      %p226 = por %p224, %p225
      %p228 = scmp.ne.s32.totalorder %s213, %s227
      %p229 = scmp.eq.s32.totalorder %s29, 0
      %p230 = por %p228, %p229
      %s232 = sadd.s32 %s231, 1
      %p235 = scmp.eq.s32.totalorder %s23, 1
      %p236 = scmp.ne.s32.totalorder %s231, %s233
      %p237 = scmp.eq.s32.totalorder %s23, 0
      %p238 = por %p236, %p237
      %p239 = scmp.ne.s32.totalorder %s231, %s233
      %p240 = scmp.eq.s32.totalorder %s28, 1
      %p241 = por %p239, %p240
      %p242 = scmp.ne.s32.totalorder %s233, %s234
      %p243 = scmp.eq.s32.totalorder %s28, 0
      %p244 = por %p242, %p243
      %p245 = scmp.ne.s32.totalorder %s233, %s234
      %p246 = scmp.eq.s32.totalorder %s29, 1
      %p247 = por %p245, %p246
      %p249 = scmp.ne.s32.totalorder %s234, %s248
      %p250 = scmp.eq.s32.totalorder %s29, 0
      %p251 = por %p249, %p250
      %s253 = sadd.s32 %s252, 1
      %p256 = scmp.eq.s32.totalorder %s23, 1
      %p257 = scmp.ne.s32.totalorder %s252, %s254
      %p258 = scmp.eq.s32.totalorder %s23, 0
      %p259 = por %p257, %p258
      %p260 = scmp.ne.s32.totalorder %s252, %s254
      %p261 = scmp.eq.s32.totalorder %s28, 1
      %p262 = por %p260, %p261
      %p263 = scmp.ne.s32.totalorder %s254, %s255
      %p264 = scmp.eq.s32.totalorder %s28, 0
      %p265 = por %p263, %p264
      %p266 = scmp.ne.s32.totalorder %s254, %s255
      %p267 = scmp.eq.s32.totalorder %s29, 1
      %p268 = por %p266, %p267
      %p270 = scmp.ne.s32.totalorder %s255, %s269
      %p271 = scmp.eq.s32.totalorder %s29, 0
      %p272 = por %p270, %p271
      %s274 = sadd.s32 %s273, 1
      %p277 = scmp.eq.s32.totalorder %s23, 1
      %p278 = scmp.ne.s32.totalorder %s273, %s275
      %p279 = scmp.eq.s32.totalorder %s23, 0
      %p280 = por %p278, %p279
      %p281 = scmp.ne.s32.totalorder %s273, %s275
      %p282 = scmp.eq.s32.totalorder %s28, 1
      %p283 = por %p281, %p282
      %p284 = scmp.ne.s32.totalorder %s275, %s276
      %p285 = scmp.eq.s32.totalorder %s28, 0
      %p286 = por %p284, %p285
      %p287 = scmp.ne.s32.totalorder %s275, %s276
      %p288 = scmp.eq.s32.totalorder %s29, 1
      %p289 = por %p287, %p288
      %p291 = scmp.ne.s32.totalorder %s276, %s290
      %p292 = scmp.eq.s32.totalorder %s29, 0
      %p293 = por %p291, %p292
      %s295 = sadd.s32 %s294, 1
      %p298 = scmp.eq.s32.totalorder %s23, 1
      %p299 = scmp.ne.s32.totalorder %s294, %s296
      %p300 = scmp.eq.s32.totalorder %s23, 0
      %p301 = por %p299, %p300
      %p302 = scmp.ne.s32.totalorder %s294, %s296
      %p303 = scmp.eq.s32.totalorder %s28, 1
      %p304 = por %p302, %p303
      %p305 = scmp.ne.s32.totalorder %s296, %s297
      %p306 = scmp.eq.s32.totalorder %s28, 0
      %p307 = por %p305, %p306
      %p308 = scmp.ne.s32.totalorder %s296, %s297
      %p309 = scmp.eq.s32.totalorder %s29, 1
      %p310 = por %p308, %p309
      %p312 = scmp.ne.s32.totalorder %s297, %s311
      %p313 = scmp.eq.s32.totalorder %s29, 0
      %p314 = por %p312, %p313
      %s316 = sadd.s32 %s315, 1
      %p319 = scmp.eq.s32.totalorder %s23, 1
      %p320 = scmp.ne.s32.totalorder %s315, %s317
      %p321 = scmp.eq.s32.totalorder %s23, 0
      %p322 = por %p320, %p321
      %p323 = scmp.ne.s32.totalorder %s315, %s317
      %p324 = scmp.eq.s32.totalorder %s28, 1
      %p325 = por %p323, %p324
      %p326 = scmp.ne.s32.totalorder %s317, %s318
      %p327 = scmp.eq.s32.totalorder %s28, 0
      %p328 = por %p326, %p327
      %p329 = scmp.ne.s32.totalorder %s317, %s318
      %p330 = scmp.eq.s32.totalorder %s29, 1
      %p331 = por %p329, %p330
      %p333 = scmp.ne.s32.totalorder %s318, %s332
      %p334 = scmp.eq.s32.totalorder %s29, 0
      %p335 = por %p333, %p334
      %s337 = sadd.s32 %s336, 1
      %p340 = scmp.eq.s32.totalorder %s23, 1
      %p341 = scmp.ne.s32.totalorder %s336, %s338
      %p342 = scmp.eq.s32.totalorder %s23, 0
      %p343 = por %p341, %p342
      %p344 = scmp.ne.s32.totalorder %s336, %s338
      %p345 = scmp.eq.s32.totalorder %s28, 1
      %p346 = por %p344, %p345
      %p347 = scmp.ne.s32.totalorder %s338, %s339
      %p348 = scmp.eq.s32.totalorder %s28, 0
      %p349 = por %p347, %p348
      %p350 = scmp.ne.s32.totalorder %s338, %s339
      %p351 = scmp.eq.s32.totalorder %s29, 1
      %p352 = por %p350, %p351
      %p354 = scmp.ne.s32.totalorder %s339, %s353
      %p355 = scmp.eq.s32.totalorder %s29, 0
      %p356 = por %p354, %p355
      %s357 = ssub.s32 %s30, %s42
      %s358 = ssub.s32 %s31, %s38
      %s359 = sor.u32 %s357, %s358
      %p360 = scmp.eq.s32.totalorder %s359, 0
      %s362 = sadd.s32 %s361, 1
      %s363 = scalar_select %p360, %s361, %s362
      %p366 = pneg %p360
      %p367 = scmp.eq.s32.totalorder %s23, 1
      %p368 = por %p366, %p367
      %p369 = scmp.ne.s32.totalorder %s361, %s364
      %p370 = scmp.eq.s32.totalorder %s23, 0
      %p371 = por %p369, %p370
      %p372 = scmp.ne.s32.totalorder %s361, %s364
      %p373 = scmp.eq.s32.totalorder %s28, 1
      %p374 = por %p372, %p373
      %p375 = scmp.ne.s32.totalorder %s364, %s365
      %p376 = scmp.eq.s32.totalorder %s28, 0
      %p377 = por %p375, %p376
      %p378 = scmp.ne.s32.totalorder %s364, %s365
      %p379 = scmp.eq.s32.totalorder %s29, 1
      %p380 = por %p378, %p379
      %p382 = scmp.ne.s32.totalorder %s365, %s381
      %p383 = scmp.eq.s32.totalorder %s29, 0
      %p384 = por %p382, %p383
      %p385 = scmp.le.s32.totalorder 1, %s23
      %p386 = scmp.lt.s32.totalorder %s23, 3
      %p387 = pnand %p385, %p386
      %p388 = pneg %p387
      // Predicated region
      $region9: #{tpu_custom_call.1} parent=5 // pred_check
        _
      $region10: #{tpu_custom_call.1} parent=5 // pred_check_branch
        %390 = sbr.rel (%p387) target = $region12
      $region11: #{tpu_custom_call.1} parent=5 // pred_region
        %s391 = ssub.s32 %s23, 1
        // Predicated region
        $region13: #{tpu_custom_call.1} parent=11 // pred_check
          %p392 = pneg %p61
        $region14: #{tpu_custom_call.1} parent=11 // pred_check_branch
          %394 = sbr.rel (%p392) target = $region16
        $region15: #{tpu_custom_call.1} parent=11 // pred_region
          %p395 = scmp.lt.s32.totalorder %s33, 0
          %s396 = scalar_select %p395, %s33, 0
          %s397 = smul.addr %s396, 4
          %s398 = scalar_lea.vmem %s0, %s397
        $region16: #{tpu_custom_call.1} parent=11 // pred_fallthru
          _
        // Predicated region
        $region17: #{tpu_custom_call.1} parent=11 // pred_check
          %p399 = pneg %p160
        $region18: #{tpu_custom_call.1} parent=11 // pred_check_branch
          %401 = sbr.rel (%p399) target = $region20
        $region19: #{tpu_custom_call.1} parent=11 // pred_region
          _
        $region20: #{tpu_custom_call.1} parent=11 // pred_fallthru
          _
        // Predicated region
        $region21: #{tpu_custom_call.1} parent=11 // pred_check
          %p402 = pneg %p181
        $region22: #{tpu_custom_call.1} parent=11 // pred_check_branch
          %404 = sbr.rel (%p402) target = $region24
        $region23: #{tpu_custom_call.1} parent=11 // pred_region
          _
        $region24: #{tpu_custom_call.1} parent=11 // pred_fallthru
          _
        // Predicated region
        $region25: #{tpu_custom_call.1} parent=11 // pred_check
          %p405 = pneg %p202
        $region26: #{tpu_custom_call.1} parent=11 // pred_check_branch
          %407 = sbr.rel (%p405) target = $region28
        $region27: #{tpu_custom_call.1} parent=11 // pred_region
          _
        $region28: #{tpu_custom_call.1} parent=11 // pred_fallthru
          _
        // Predicated region
        $region29: #{tpu_custom_call.1} parent=11 // pred_check
          %p408 = pneg %p223
        $region30: #{tpu_custom_call.1} parent=11 // pred_check_branch
          %410 = sbr.rel (%p408) target = $region32
        $region31: #{tpu_custom_call.1} parent=11 // pred_region
          _
        $region32: #{tpu_custom_call.1} parent=11 // pred_fallthru
          _
        // Predicated region
        $region33: #{tpu_custom_call.1} parent=11 // pred_check
          %p411 = pneg %p244
        $region34: #{tpu_custom_call.1} parent=11 // pred_check_branch
          %413 = sbr.rel (%p411) target = $region36
        $region35: #{tpu_custom_call.1} parent=11 // pred_region
          _
        $region36: #{tpu_custom_call.1} parent=11 // pred_fallthru
          _
        // Predicated region
        $region37: #{tpu_custom_call.1} parent=11 // pred_check
          %p414 = pneg %p265
        $region38: #{tpu_custom_call.1} parent=11 // pred_check_branch
          %416 = sbr.rel (%p414) target = $region40
        $region39: #{tpu_custom_call.1} parent=11 // pred_region
          _
        $region40: #{tpu_custom_call.1} parent=11 // pred_fallthru
          _
        // Predicated region
        $region41: #{tpu_custom_call.1} parent=11 // pred_check
          %p417 = pneg %p286
        $region42: #{tpu_custom_call.1} parent=11 // pred_check_branch
          %419 = sbr.rel (%p417) target = $region44
        $region43: #{tpu_custom_call.1} parent=11 // pred_region
          _
        $region44: #{tpu_custom_call.1} parent=11 // pred_fallthru
          _
        // Predicated region
        $region45: #{tpu_custom_call.1} parent=11 // pred_check
          %p420 = pneg %p307
        $region46: #{tpu_custom_call.1} parent=11 // pred_check_branch
          %422 = sbr.rel (%p420) target = $region48
        $region47: #{tpu_custom_call.1} parent=11 // pred_region
          _
        $region48: #{tpu_custom_call.1} parent=11 // pred_fallthru
          _
        // Predicated region
        $region49: #{tpu_custom_call.1} parent=11 // pred_check
          %p423 = pneg %p328
        $region50: #{tpu_custom_call.1} parent=11 // pred_check_branch
          %425 = sbr.rel (%p423) target = $region52
        $region51: #{tpu_custom_call.1} parent=11 // pred_region
          _
        $region52: #{tpu_custom_call.1} parent=11 // pred_fallthru
          _
        // Predicated region
        $region53: #{tpu_custom_call.1} parent=11 // pred_check
          %p426 = pneg %p349
        $region54: #{tpu_custom_call.1} parent=11 // pred_check_branch
          %428 = sbr.rel (%p426) target = $region56
        $region55: #{tpu_custom_call.1} parent=11 // pred_region
          _
        $region56: #{tpu_custom_call.1} parent=11 // pred_fallthru
          _
      $region12: #{tpu_custom_call.1} parent=5 // pred_fallthru
        _
      %p429 = scmp.lt.s32.totalorder %s23, 2
      // Predicated region
      $region57: #{tpu_custom_call.1} parent=5 // pred_check
        %p430 = pneg %p429
      $region58: #{tpu_custom_call.1} parent=5 // pred_check_branch
        %432 = sbr.rel (%p430) target = $region60
      $region59: #{tpu_custom_call.1} parent=5 // pred_region
        // Predicated region
        $region61: #{tpu_custom_call.1} parent=59 // pred_check
          %p433 = pneg %p81
        $region62: #{tpu_custom_call.1} parent=59 // pred_check_branch
          %435 = sbr.rel (%p433) target = $region64
        $region63: #{tpu_custom_call.1} parent=59 // pred_region
          %p436 = scmp.lt.s32.totalorder %s30, 1
          %s437 = scalar_select %p436, %s30, 1
          %s438 = smul.addr %s437, 32
          %s439 = smul.addr %s438, 8
          %s440 = scalar_lea.vmem %s1, %s439
        $region64: #{tpu_custom_call.1} parent=59 // pred_fallthru
          _
        // Predicated region
        $region65: #{tpu_custom_call.1} parent=59 // pred_check
          %p441 = pneg %p107
        $region66: #{tpu_custom_call.1} parent=59 // pred_check_branch
          %443 = sbr.rel (%p441) target = $region68
        $region67: #{tpu_custom_call.1} parent=59 // pred_region
          %p444 = scmp.lt.s32.totalorder %s30, 1
          %s445 = scalar_select %p444, %s30, 1
          %s446 = smul.addr %s445, 8
          %s447 = scalar_lea.vmem %s2, %s446
        $region68: #{tpu_custom_call.1} parent=59 // pred_fallthru
          _
        // Predicated region
        $region69: #{tpu_custom_call.1} parent=59 // pred_check
          %p448 = pneg %p133
        $region70: #{tpu_custom_call.1} parent=59 // pred_check_branch
          %450 = sbr.rel (%p448) target = $region72
        $region71: #{tpu_custom_call.1} parent=59 // pred_region
          %p451 = scmp.lt.s32.totalorder %s30, 1
          %s452 = scalar_select %p451, %s30, 1
          %s453 = smul.addr %s452, 8
          %s454 = scalar_lea.vmem %s3, %s453
        $region72: #{tpu_custom_call.1} parent=59 // pred_fallthru
          _
      $region60: #{tpu_custom_call.1} parent=5 // pred_fallthru
        _
      %p455 = scmp.le.s32.totalorder 1, %s23
      %p456 = scmp.lt.s32.totalorder %s23, 3
      %p457 = pnand %p455, %p456
      %p458 = pneg %p457
      // Predicated region
      $region73: #{tpu_custom_call.1} parent=5 // pred_check
        _
      $region74: #{tpu_custom_call.1} parent=5 // pred_check_branch
        %460 = sbr.rel (%p457) target = $region76
      $region75: #{tpu_custom_call.1} parent=5 // pred_region
        %s461 = ssub.s32 %s23, 1
        %p462 = scmp.lt.s32.totalorder %s33, 0
        %s463 = scalar_select %p462, %s33, 0
        %s464 = smul.addr %s463, 4
        %s465 = scalar_lea.vmem %s0, %s464
        %p466 = pneg %p61
        %p467 = pneg %p58
        %p468 = scmp.lt.s32.totalorder %s32, 1
        %s469 = scalar_select %p468, %s32, 1
        %s470 = smul.addr %s469, 32
        %s471 = smul.addr %s470, 8
        %s472 = scalar_lea.vmem %s1, %s471
        %p473 = pneg %p87
        %p474 = pneg %p84
        %p475 = scmp.lt.s32.totalorder %s32, 1
        %s476 = scalar_select %p475, %s32, 1
        %s477 = smul.addr %s476, 8
        %s478 = scalar_lea.vmem %s2, %s477
        %p479 = pneg %p113
        %p480 = pneg %p110
        %p481 = scmp.lt.s32.totalorder %s32, 1
        %s482 = scalar_select %p481, %s32, 1
        %s483 = smul.addr %s482, 8
        %s484 = scalar_lea.vmem %s3, %s483
        %p485 = pneg %p139
        %p486 = pneg %p136
        %p487 = pneg %p160
        %p488 = pneg %p157
        %p489 = pneg %p181
        %p490 = pneg %p178
        %p491 = pneg %p202
        %p492 = pneg %p199
        %p493 = pneg %p223
        %p494 = pneg %p220
        %p495 = pneg %p244
        %p496 = pneg %p241
        %p497 = pneg %p265
        %p498 = pneg %p262
        %p499 = pneg %p286
        %p500 = pneg %p283
        %p501 = pneg %p307
        %p502 = pneg %p304
        %p503 = pneg %p328
        %p504 = pneg %p325
        %p505 = pneg %p349
        %p506 = pneg %p346
        %p507 = pneg %p377
        %p508 = pneg %p374
        %s509 = sand.u32 %s364, 1
        %s510 = scalar_lea.sflag [#allocation8], %s509
        %s511 = sand.u32 %s364, 1
        %s512 = smul.addr %s511, 8
        %s513 = scalar_lea.vmem [#allocation7], %s512
        %p514 = scmp.lt.s32.totalorder %s33, 0
        %s515 = scalar_select %p514, %s33, 0
        %s516 = smul.addr %s515, 4
        %s517 = scalar_lea.vmem %s0, %s516
        %p518 = scmp.lt.s32.totalorder %s32, 1
        %s519 = scalar_select %p518, %s32, 1
        %s520 = smul.addr %s519, 32
        %s521 = smul.addr %s520, 8
        %s522 = scalar_lea.vmem %s1, %s521
        %p523 = scmp.lt.s32.totalorder %s32, 1
        %s524 = scalar_select %p523, %s32, 1
        %s525 = smul.addr %s524, 8
        %s526 = scalar_lea.vmem %s2, %s525
        %p527 = scmp.lt.s32.totalorder %s32, 1
        %s528 = scalar_select %p527, %s32, 1
        %s529 = smul.addr %s528, 8
        %s530 = scalar_lea.vmem %s3, %s529
        %p531 = scmp.eq.s32.totalorder %s33, 0
        // Predicated region
        $region77: #{tpu_custom_call.1} parent=75 // pred_check
          %p532 = pneg %p531
        $region78: #{tpu_custom_call.1} parent=75 // pred_check_branch
          %534 = sbr.rel (%p532) target = $region80
        $region79: #{tpu_custom_call.1} parent=75 // pred_region
          %v535 = vld [vmem:[%s522] sm:$0xff]
          %v536 = vld [vmem:[%s522 + $0x8] sm:$0xff]
          %v537 = vld [vmem:[%s522 + $0x10] sm:$0xff]
          %v538 = vld [vmem:[%s522 + $0x18] sm:$0xff]
          %v539 = vld [vmem:[%s522 + $0x20] sm:$0xff]
          %v540 = vld [vmem:[%s522 + $0x28] sm:$0xff]
          %v541 = vld [vmem:[%s522 + $0x30] sm:$0xff]
          %v542 = vld [vmem:[%s522 + $0x38] sm:$0xff]
          %v543 = vld [vmem:[%s522 + $0x40] sm:$0xff]
          %v544 = vld [vmem:[%s522 + $0x48] sm:$0xff]
          %v545 = vld [vmem:[%s522 + $0x50] sm:$0xff]
          %v546 = vld [vmem:[%s522 + $0x58] sm:$0xff]
          %v547 = vld [vmem:[%s522 + $0x60] sm:$0xff]
          %v548 = vld [vmem:[%s522 + $0x68] sm:$0xff]
          %v549 = vld [vmem:[%s522 + $0x70] sm:$0xff]
          %v550 = vld [vmem:[%s522 + $0x78] sm:$0xff]
          %v551 = vld [vmem:[%s522 + $0x80] sm:$0xff]
          %v552 = vld [vmem:[%s522 + $0x88] sm:$0xff]
          %v553 = vld [vmem:[%s522 + $0x90] sm:$0xff]
          %v554 = vld [vmem:[%s522 + $0x98] sm:$0xff]
          %v555 = vld [vmem:[%s522 + $0xa0] sm:$0xff]
          %v556 = vld [vmem:[%s522 + $0xa8] sm:$0xff]
          %v557 = vld [vmem:[%s522 + $0xb0] sm:$0xff]
          %v558 = vld [vmem:[%s522 + $0xb8] sm:$0xff]
          %v559 = vld [vmem:[%s522 + $0xc0] sm:$0xff]
          %v560 = vld [vmem:[%s522 + $0xc8] sm:$0xff]
          %v561 = vld [vmem:[%s522 + $0xd0] sm:$0xff]
          %v562 = vld [vmem:[%s522 + $0xd8] sm:$0xff]
          %v563 = vld [vmem:[%s522 + $0xe0] sm:$0xff]
          %v564 = vld [vmem:[%s522 + $0xe8] sm:$0xff]
          %v565 = vld [vmem:[%s522 + $0xf0] sm:$0xff]
          %v566 = vld [vmem:[%s522 + $0xf8] sm:$0xff]
          %v567 = vld [vmem:[%s4] sm:$0xff]
          %v568 = vld [vmem:[%s4 + $0x8] sm:$0xff]
          %v569 = vld [vmem:[%s4 + $0x10] sm:$0xff]
          %v570 = vld [vmem:[%s4 + $0x18] sm:$0xff]
          %v571 = vld [vmem:[%s4 + $0x20] sm:$0xff]
          %v572 = vld [vmem:[%s4 + $0x28] sm:$0xff]
          %v573 = vld [vmem:[%s4 + $0x30] sm:$0xff]
          %v574 = vld [vmem:[%s4 + $0x38] sm:$0xff]
          %v575 = vld [vmem:[%s4 + $0x40] sm:$0xff]
          %v576 = vld [vmem:[%s4 + $0x48] sm:$0xff]
          %v577 = vld [vmem:[%s4 + $0x50] sm:$0xff]
          %v578 = vld [vmem:[%s4 + $0x58] sm:$0xff]
          %v579 = vld [vmem:[%s4 + $0x60] sm:$0xff]
          %v580 = vld [vmem:[%s4 + $0x68] sm:$0xff]
          %v581 = vld [vmem:[%s4 + $0x70] sm:$0xff]
          %v582 = vld [vmem:[%s4 + $0x78] sm:$0xff]
          %v583 = vld [vmem:[%s4 + $0x80] sm:$0xff]
          %v584 = vld [vmem:[%s4 + $0x88] sm:$0xff]
          %v585 = vld [vmem:[%s4 + $0x90] sm:$0xff]
          %v586 = vld [vmem:[%s4 + $0x98] sm:$0xff]
          %v587 = vld [vmem:[%s4 + $0xa0] sm:$0xff]
          %v588 = vld [vmem:[%s4 + $0xa8] sm:$0xff]
          %v589 = vld [vmem:[%s4 + $0xb0] sm:$0xff]
          %v590 = vld [vmem:[%s4 + $0xb8] sm:$0xff]
          %v591 = vld [vmem:[%s4 + $0xc0] sm:$0xff]
          %v592 = vld [vmem:[%s4 + $0xc8] sm:$0xff]
          %v593 = vld [vmem:[%s4 + $0xd0] sm:$0xff]
          %v594 = vld [vmem:[%s4 + $0xd8] sm:$0xff]
          %v595 = vld [vmem:[%s4 + $0xe0] sm:$0xff]
          %v596 = vld [vmem:[%s4 + $0xe8] sm:$0xff]
          %v597 = vld [vmem:[%s4 + $0xf0] sm:$0xff]
          %v598 = vld [vmem:[%s4 + $0xf8] sm:$0xff]
          %v599 = vld [vmem:[%s5] sm:$0xff]
          %v600 = vld [vmem:[%s5 + $0x8] sm:$0xff]
          %v601 = vld [vmem:[%s5 + $0x10] sm:$0xff]
          %v602 = vld [vmem:[%s5 + $0x18] sm:$0xff]
          %v603 = vld [vmem:[%s5 + $0x20] sm:$0xff]
          %v604 = vld [vmem:[%s5 + $0x28] sm:$0xff]
          %v605 = vld [vmem:[%s5 + $0x30] sm:$0xff]
          %v606 = vld [vmem:[%s5 + $0x38] sm:$0xff]
          %v607 = vld [vmem:[%s5 + $0x40] sm:$0xff]
          %v608 = vld [vmem:[%s5 + $0x48] sm:$0xff]
          %v609 = vld [vmem:[%s5 + $0x50] sm:$0xff]
          %v610 = vld [vmem:[%s5 + $0x58] sm:$0xff]
          %v611 = vld [vmem:[%s5 + $0x60] sm:$0xff]
          %v612 = vld [vmem:[%s5 + $0x68] sm:$0xff]
          %v613 = vld [vmem:[%s5 + $0x70] sm:$0xff]
          %v614 = vld [vmem:[%s5 + $0x78] sm:$0xff]
          %v615 = vld [vmem:[%s5 + $0x80] sm:$0xff]
          %v616 = vld [vmem:[%s5 + $0x88] sm:$0xff]
          %v617 = vld [vmem:[%s5 + $0x90] sm:$0xff]
          %v618 = vld [vmem:[%s5 + $0x98] sm:$0xff]
          %v619 = vld [vmem:[%s5 + $0xa0] sm:$0xff]
          %v620 = vld [vmem:[%s5 + $0xa8] sm:$0xff]
          %v621 = vld [vmem:[%s5 + $0xb0] sm:$0xff]
          %v622 = vld [vmem:[%s5 + $0xb8] sm:$0xff]
          %v623 = vld [vmem:[%s5 + $0xc0] sm:$0xff]
          %v624 = vld [vmem:[%s5 + $0xc8] sm:$0xff]
          %v625 = vld [vmem:[%s5 + $0xd0] sm:$0xff]
          %v626 = vld [vmem:[%s5 + $0xd8] sm:$0xff]
          %v627 = vld [vmem:[%s5 + $0xe0] sm:$0xff]
          %v628 = vld [vmem:[%s5 + $0xe8] sm:$0xff]
          %v629 = vld [vmem:[%s5 + $0xf0] sm:$0xff]
          %v630 = vld [vmem:[%s5 + $0xf8] sm:$0xff]
          %663 = vrot.lane.b32.xlu0 %v535, 96
          %v664 = vpop.permute.xlu0 %663
          %665 = vrot.lane.b32.xlu0 %v536, 96
          %v666 = vpop.permute.xlu0 %665
          %667 = vrot.lane.b32.xlu0 %v537, 96
          %v668 = vpop.permute.xlu0 %667
          %669 = vrot.lane.b32.xlu0 %v538, 96
          %v670 = vpop.permute.xlu0 %669
          %671 = vrot.lane.b32.xlu0 %v539, 96
          %v672 = vpop.permute.xlu0 %671
          %673 = vrot.lane.b32.xlu0 %v540, 96
          %v674 = vpop.permute.xlu0 %673
          %675 = vrot.lane.b32.xlu0 %v541, 96
          %v676 = vpop.permute.xlu0 %675
          %677 = vrot.lane.b32.xlu0 %v542, 96
          %v678 = vpop.permute.xlu0 %677
          %679 = vrot.lane.b32.xlu0 %v543, 96
          %v680 = vpop.permute.xlu0 %679
          %681 = vrot.lane.b32.xlu0 %v544, 96
          %v682 = vpop.permute.xlu0 %681
          %683 = vrot.lane.b32.xlu0 %v545, 96
          %v684 = vpop.permute.xlu0 %683
          %685 = vrot.lane.b32.xlu0 %v546, 96
          %v686 = vpop.permute.xlu0 %685
          %687 = vrot.lane.b32.xlu0 %v547, 96
          %v688 = vpop.permute.xlu0 %687
          %689 = vrot.lane.b32.xlu0 %v548, 96
          %v690 = vpop.permute.xlu0 %689
          %691 = vrot.lane.b32.xlu0 %v549, 96
          %v692 = vpop.permute.xlu0 %691
          %693 = vrot.lane.b32.xlu0 %v550, 96
          %v694 = vpop.permute.xlu0 %693
          %695 = vrot.lane.b32.xlu0 %v551, 96
          %v696 = vpop.permute.xlu0 %695
          %697 = vrot.lane.b32.xlu0 %v552, 96
          %v698 = vpop.permute.xlu0 %697
          %699 = vrot.lane.b32.xlu0 %v553, 96
          %v700 = vpop.permute.xlu0 %699
          %701 = vrot.lane.b32.xlu0 %v554, 96
          %v702 = vpop.permute.xlu0 %701
          %703 = vrot.lane.b32.xlu0 %v555, 96
          %v704 = vpop.permute.xlu0 %703
          %705 = vrot.lane.b32.xlu0 %v556, 96
          %v706 = vpop.permute.xlu0 %705
          %707 = vrot.lane.b32.xlu0 %v557, 96
          %v708 = vpop.permute.xlu0 %707
          %709 = vrot.lane.b32.xlu0 %v558, 96
          %v710 = vpop.permute.xlu0 %709
          %711 = vrot.lane.b32.xlu0 %v559, 96
          %v712 = vpop.permute.xlu0 %711
          %713 = vrot.lane.b32.xlu0 %v560, 96
          %v714 = vpop.permute.xlu0 %713
          %715 = vrot.lane.b32.xlu0 %v561, 96
          %v716 = vpop.permute.xlu0 %715
          %717 = vrot.lane.b32.xlu0 %v562, 96
          %v718 = vpop.permute.xlu0 %717
          %719 = vrot.lane.b32.xlu0 %v563, 96
          %v720 = vpop.permute.xlu0 %719
          %721 = vrot.lane.b32.xlu0 %v564, 96
          %v722 = vpop.permute.xlu0 %721
          %723 = vrot.lane.b32.xlu0 %v565, 96
          %v724 = vpop.permute.xlu0 %723
          %725 = vrot.lane.b32.xlu0 %v566, 96
          %v726 = vpop.permute.xlu0 %725
          %v759 = vmul.f32 %v599, %v664
          %v760 = vmul.f32 %v600, %v666
          %v761 = vmul.f32 %v601, %v668
          %v762 = vmul.f32 %v602, %v670
          %v763 = vmul.f32 %v603, %v672
          %v764 = vmul.f32 %v604, %v674
          %v765 = vmul.f32 %v605, %v676
          %v766 = vmul.f32 %v606, %v678
          %v767 = vmul.f32 %v607, %v680
          %v768 = vmul.f32 %v608, %v682
          %v769 = vmul.f32 %v609, %v684
          %v770 = vmul.f32 %v610, %v686
          %v771 = vmul.f32 %v611, %v688
          %v772 = vmul.f32 %v612, %v690
          %v773 = vmul.f32 %v613, %v692
          %v774 = vmul.f32 %v614, %v694
          %v775 = vmul.f32 %v615, %v696
          %v776 = vmul.f32 %v616, %v698
          %v777 = vmul.f32 %v617, %v700
          %v778 = vmul.f32 %v618, %v702
          %v779 = vmul.f32 %v619, %v704
          %v780 = vmul.f32 %v620, %v706
          %v781 = vmul.f32 %v621, %v708
          %v782 = vmul.f32 %v622, %v710
          %v783 = vmul.f32 %v623, %v712
          %v784 = vmul.f32 %v624, %v714
          %v785 = vmul.f32 %v625, %v716
          %v786 = vmul.f32 %v626, %v718
          %v787 = vmul.f32 %v627, %v720
          %v788 = vmul.f32 %v628, %v722
          %v789 = vmul.f32 %v629, %v724
          %v790 = vmul.f32 %v630, %v726
          %v791 = vadd.f32 %v567, %v759
          %v792 = vadd.f32 %v568, %v760
          %v793 = vadd.f32 %v569, %v761
          %v794 = vadd.f32 %v570, %v762
          %v795 = vadd.f32 %v571, %v763
          %v796 = vadd.f32 %v572, %v764
          %v797 = vadd.f32 %v573, %v765
          %v798 = vadd.f32 %v574, %v766
          %v799 = vadd.f32 %v575, %v767
          %v800 = vadd.f32 %v576, %v768
          %v801 = vadd.f32 %v577, %v769
          %v802 = vadd.f32 %v578, %v770
          %v803 = vadd.f32 %v579, %v771
          %v804 = vadd.f32 %v580, %v772
          %v805 = vadd.f32 %v581, %v773
          %v806 = vadd.f32 %v582, %v774
          %v807 = vadd.f32 %v583, %v775
          %v808 = vadd.f32 %v584, %v776
          %v809 = vadd.f32 %v585, %v777
          %v810 = vadd.f32 %v586, %v778
          %v811 = vadd.f32 %v587, %v779
          %v812 = vadd.f32 %v588, %v780
          %v813 = vadd.f32 %v589, %v781
          %v814 = vadd.f32 %v590, %v782
          %v815 = vadd.f32 %v591, %v783
          %v816 = vadd.f32 %v592, %v784
          %v817 = vadd.f32 %v593, %v785
          %v818 = vadd.f32 %v594, %v786
          %v819 = vadd.f32 %v595, %v787
          %v820 = vadd.f32 %v596, %v788
          %v821 = vadd.f32 %v597, %v789
          %v822 = vadd.f32 %v598, %v790
          %vm823 = vcmask 31744
          %824 = vst.msk [vmem:[#allocation2] sm:$0xff] %vm823, %v791
          %825 = vst.msk [vmem:[#allocation2 + $0x8] sm:$0xff] %vm823, %v792
          %826 = vst.msk [vmem:[#allocation2 + $0x10] sm:$0xff] %vm823, %v793
          %827 = vst.msk [vmem:[#allocation2 + $0x18] sm:$0xff] %vm823, %v794
          %828 = vst.msk [vmem:[#allocation2 + $0x20] sm:$0xff] %vm823, %v795
          %829 = vst.msk [vmem:[#allocation2 + $0x28] sm:$0xff] %vm823, %v796
          %830 = vst.msk [vmem:[#allocation2 + $0x30] sm:$0xff] %vm823, %v797
          %831 = vst.msk [vmem:[#allocation2 + $0x38] sm:$0xff] %vm823, %v798
          %832 = vst.msk [vmem:[#allocation2 + $0x40] sm:$0xff] %vm823, %v799
          %833 = vst.msk [vmem:[#allocation2 + $0x48] sm:$0xff] %vm823, %v800
          %834 = vst.msk [vmem:[#allocation2 + $0x50] sm:$0xff] %vm823, %v801
          %835 = vst.msk [vmem:[#allocation2 + $0x58] sm:$0xff] %vm823, %v802
          %836 = vst.msk [vmem:[#allocation2 + $0x60] sm:$0xff] %vm823, %v803
          %837 = vst.msk [vmem:[#allocation2 + $0x68] sm:$0xff] %vm823, %v804
          %838 = vst.msk [vmem:[#allocation2 + $0x70] sm:$0xff] %vm823, %v805
          %839 = vst.msk [vmem:[#allocation2 + $0x78] sm:$0xff] %vm823, %v806
          %840 = vst.msk [vmem:[#allocation2 + $0x80] sm:$0xff] %vm823, %v807
          %841 = vst.msk [vmem:[#allocation2 + $0x88] sm:$0xff] %vm823, %v808
          %842 = vst.msk [vmem:[#allocation2 + $0x90] sm:$0xff] %vm823, %v809
          %843 = vst.msk [vmem:[#allocation2 + $0x98] sm:$0xff] %vm823, %v810
          %844 = vst.msk [vmem:[#allocation2 + $0xa0] sm:$0xff] %vm823, %v811
          %845 = vst.msk [vmem:[#allocation2 + $0xa8] sm:$0xff] %vm823, %v812
          %846 = vst.msk [vmem:[#allocation2 + $0xb0] sm:$0xff] %vm823, %v813
          %847 = vst.msk [vmem:[#allocation2 + $0xb8] sm:$0xff] %vm823, %v814
          %848 = vst.msk [vmem:[#allocation2 + $0xc0] sm:$0xff] %vm823, %v815
          %849 = vst.msk [vmem:[#allocation2 + $0xc8] sm:$0xff] %vm823, %v816
          %850 = vst.msk [vmem:[#allocation2 + $0xd0] sm:$0xff] %vm823, %v817
          %851 = vst.msk [vmem:[#allocation2 + $0xd8] sm:$0xff] %vm823, %v818
          %852 = vst.msk [vmem:[#allocation2 + $0xe0] sm:$0xff] %vm823, %v819
          %853 = vst.msk [vmem:[#allocation2 + $0xe8] sm:$0xff] %vm823, %v820
          %854 = vst.msk [vmem:[#allocation2 + $0xf0] sm:$0xff] %vm823, %v821
          %855 = vst.msk [vmem:[#allocation2 + $0xf8] sm:$0xff] %vm823, %v822
          %v856 = vld [vmem:[%s6] sm:$0xff]
          %v857 = vld [vmem:[%s6 + $0x8] sm:$0xff]
          %v858 = vld [vmem:[%s6 + $0x10] sm:$0xff]
          %v859 = vld [vmem:[%s6 + $0x18] sm:$0xff]
          %v860 = vld [vmem:[%s6 + $0x20] sm:$0xff]
          %v861 = vld [vmem:[%s6 + $0x28] sm:$0xff]
          %v862 = vld [vmem:[%s6 + $0x30] sm:$0xff]
          %v863 = vld [vmem:[%s6 + $0x38] sm:$0xff]
          %v864 = vld [vmem:[%s6 + $0x40] sm:$0xff]
          %v865 = vld [vmem:[%s6 + $0x48] sm:$0xff]
          %v866 = vld [vmem:[%s6 + $0x50] sm:$0xff]
          %v867 = vld [vmem:[%s6 + $0x58] sm:$0xff]
          %v868 = vld [vmem:[%s6 + $0x60] sm:$0xff]
          %v869 = vld [vmem:[%s6 + $0x68] sm:$0xff]
          %v870 = vld [vmem:[%s6 + $0x70] sm:$0xff]
          %v871 = vld [vmem:[%s6 + $0x78] sm:$0xff]
          %v872 = vld [vmem:[%s6 + $0x80] sm:$0xff]
          %v873 = vld [vmem:[%s6 + $0x88] sm:$0xff]
          %v874 = vld [vmem:[%s6 + $0x90] sm:$0xff]
          %v875 = vld [vmem:[%s6 + $0x98] sm:$0xff]
          %v876 = vld [vmem:[%s6 + $0xa0] sm:$0xff]
          %v877 = vld [vmem:[%s6 + $0xa8] sm:$0xff]
          %v878 = vld [vmem:[%s6 + $0xb0] sm:$0xff]
          %v879 = vld [vmem:[%s6 + $0xb8] sm:$0xff]
          %v880 = vld [vmem:[%s6 + $0xc0] sm:$0xff]
          %v881 = vld [vmem:[%s6 + $0xc8] sm:$0xff]
          %v882 = vld [vmem:[%s6 + $0xd0] sm:$0xff]
          %v883 = vld [vmem:[%s6 + $0xd8] sm:$0xff]
          %v884 = vld [vmem:[%s6 + $0xe0] sm:$0xff]
          %v885 = vld [vmem:[%s6 + $0xe8] sm:$0xff]
          %v886 = vld [vmem:[%s6 + $0xf0] sm:$0xff]
          %v887 = vld [vmem:[%s6 + $0xf8] sm:$0xff]
          %v888 = vld [vmem:[%s7] sm:$0xff]
          %v889 = vld [vmem:[%s7 + $0x8] sm:$0xff]
          %v890 = vld [vmem:[%s7 + $0x10] sm:$0xff]
          %v891 = vld [vmem:[%s7 + $0x18] sm:$0xff]
          %v892 = vld [vmem:[%s7 + $0x20] sm:$0xff]
          %v893 = vld [vmem:[%s7 + $0x28] sm:$0xff]
          %v894 = vld [vmem:[%s7 + $0x30] sm:$0xff]
          %v895 = vld [vmem:[%s7 + $0x38] sm:$0xff]
          %v896 = vld [vmem:[%s7 + $0x40] sm:$0xff]
          %v897 = vld [vmem:[%s7 + $0x48] sm:$0xff]
          %v898 = vld [vmem:[%s7 + $0x50] sm:$0xff]
          %v899 = vld [vmem:[%s7 + $0x58] sm:$0xff]
          %v900 = vld [vmem:[%s7 + $0x60] sm:$0xff]
          %v901 = vld [vmem:[%s7 + $0x68] sm:$0xff]
          %v902 = vld [vmem:[%s7 + $0x70] sm:$0xff]
          %v903 = vld [vmem:[%s7 + $0x78] sm:$0xff]
          %v904 = vld [vmem:[%s7 + $0x80] sm:$0xff]
          %v905 = vld [vmem:[%s7 + $0x88] sm:$0xff]
          %v906 = vld [vmem:[%s7 + $0x90] sm:$0xff]
          %v907 = vld [vmem:[%s7 + $0x98] sm:$0xff]
          %v908 = vld [vmem:[%s7 + $0xa0] sm:$0xff]
          %v909 = vld [vmem:[%s7 + $0xa8] sm:$0xff]
          %v910 = vld [vmem:[%s7 + $0xb0] sm:$0xff]
          %v911 = vld [vmem:[%s7 + $0xb8] sm:$0xff]
          %v912 = vld [vmem:[%s7 + $0xc0] sm:$0xff]
          %v913 = vld [vmem:[%s7 + $0xc8] sm:$0xff]
          %v914 = vld [vmem:[%s7 + $0xd0] sm:$0xff]
          %v915 = vld [vmem:[%s7 + $0xd8] sm:$0xff]
          %v916 = vld [vmem:[%s7 + $0xe0] sm:$0xff]
          %v917 = vld [vmem:[%s7 + $0xe8] sm:$0xff]
          %v918 = vld [vmem:[%s7 + $0xf0] sm:$0xff]
          %v919 = vld [vmem:[%s7 + $0xf8] sm:$0xff]
          %920 = vrot.lane.b32.xlu0 %v535, 92
          %v921 = vpop.permute.xlu0 %920
          %922 = vrot.lane.b32.xlu0 %v536, 92
          %v923 = vpop.permute.xlu0 %922
          %924 = vrot.lane.b32.xlu0 %v537, 92
          %v925 = vpop.permute.xlu0 %924
          %926 = vrot.lane.b32.xlu0 %v538, 92
          %v927 = vpop.permute.xlu0 %926
          %928 = vrot.lane.b32.xlu0 %v539, 92
          %v929 = vpop.permute.xlu0 %928
          %930 = vrot.lane.b32.xlu0 %v540, 92
          %v931 = vpop.permute.xlu0 %930
          %932 = vrot.lane.b32.xlu0 %v541, 92
          %v933 = vpop.permute.xlu0 %932
          %934 = vrot.lane.b32.xlu0 %v542, 92
          %v935 = vpop.permute.xlu0 %934
          %936 = vrot.lane.b32.xlu0 %v543, 92
          %v937 = vpop.permute.xlu0 %936
          %938 = vrot.lane.b32.xlu0 %v544, 92
          %v939 = vpop.permute.xlu0 %938
          %940 = vrot.lane.b32.xlu0 %v545, 92
          %v941 = vpop.permute.xlu0 %940
          %942 = vrot.lane.b32.xlu0 %v546, 92
          %v943 = vpop.permute.xlu0 %942
          %944 = vrot.lane.b32.xlu0 %v547, 92
          %v945 = vpop.permute.xlu0 %944
          %946 = vrot.lane.b32.xlu0 %v548, 92
          %v947 = vpop.permute.xlu0 %946
          %948 = vrot.lane.b32.xlu0 %v549, 92
          %v949 = vpop.permute.xlu0 %948
          %950 = vrot.lane.b32.xlu0 %v550, 92
          %v951 = vpop.permute.xlu0 %950
          %952 = vrot.lane.b32.xlu0 %v551, 92
          %v953 = vpop.permute.xlu0 %952
          %954 = vrot.lane.b32.xlu0 %v552, 92
          %v955 = vpop.permute.xlu0 %954
          %956 = vrot.lane.b32.xlu0 %v553, 92
          %v957 = vpop.permute.xlu0 %956
          %958 = vrot.lane.b32.xlu0 %v554, 92
          %v959 = vpop.permute.xlu0 %958
          %960 = vrot.lane.b32.xlu0 %v555, 92
          %v961 = vpop.permute.xlu0 %960
          %962 = vrot.lane.b32.xlu0 %v556, 92
          %v963 = vpop.permute.xlu0 %962
          %964 = vrot.lane.b32.xlu0 %v557, 92
          %v965 = vpop.permute.xlu0 %964
          %966 = vrot.lane.b32.xlu0 %v558, 92
          %v967 = vpop.permute.xlu0 %966
          %968 = vrot.lane.b32.xlu0 %v559, 92
          %v969 = vpop.permute.xlu0 %968
          %970 = vrot.lane.b32.xlu0 %v560, 92
          %v971 = vpop.permute.xlu0 %970
          %972 = vrot.lane.b32.xlu0 %v561, 92
          %v973 = vpop.permute.xlu0 %972
          %974 = vrot.lane.b32.xlu0 %v562, 92
          %v975 = vpop.permute.xlu0 %974
          %976 = vrot.lane.b32.xlu0 %v563, 92
          %v977 = vpop.permute.xlu0 %976
          %978 = vrot.lane.b32.xlu0 %v564, 92
          %v979 = vpop.permute.xlu0 %978
          %980 = vrot.lane.b32.xlu0 %v565, 92
          %v981 = vpop.permute.xlu0 %980
          %982 = vrot.lane.b32.xlu0 %v566, 92
          %v983 = vpop.permute.xlu0 %982
          %v1016 = vmul.f32 %v888, %v921
          %v1017 = vmul.f32 %v889, %v923
          %v1018 = vmul.f32 %v890, %v925
          %v1019 = vmul.f32 %v891, %v927
          %v1020 = vmul.f32 %v892, %v929
          %v1021 = vmul.f32 %v893, %v931
          %v1022 = vmul.f32 %v894, %v933
          %v1023 = vmul.f32 %v895, %v935
          %v1024 = vmul.f32 %v896, %v937
          %v1025 = vmul.f32 %v897, %v939
          %v1026 = vmul.f32 %v898, %v941
          %v1027 = vmul.f32 %v899, %v943
          %v1028 = vmul.f32 %v900, %v945
          %v1029 = vmul.f32 %v901, %v947
          %v1030 = vmul.f32 %v902, %v949
          %v1031 = vmul.f32 %v903, %v951
          %v1032 = vmul.f32 %v904, %v953
          %v1033 = vmul.f32 %v905, %v955
          %v1034 = vmul.f32 %v906, %v957
          %v1035 = vmul.f32 %v907, %v959
          %v1036 = vmul.f32 %v908, %v961
          %v1037 = vmul.f32 %v909, %v963
          %v1038 = vmul.f32 %v910, %v965
          %v1039 = vmul.f32 %v911, %v967
          %v1040 = vmul.f32 %v912, %v969
          %v1041 = vmul.f32 %v913, %v971
          %v1042 = vmul.f32 %v914, %v973
          %v1043 = vmul.f32 %v915, %v975
          %v1044 = vmul.f32 %v916, %v977
          %v1045 = vmul.f32 %v917, %v979
          %v1046 = vmul.f32 %v918, %v981
          %v1047 = vmul.f32 %v919, %v983
          %v1048 = vadd.f32 %v856, %v1016
          %v1049 = vadd.f32 %v857, %v1017
          %v1050 = vadd.f32 %v858, %v1018
          %v1051 = vadd.f32 %v859, %v1019
          %v1052 = vadd.f32 %v860, %v1020
          %v1053 = vadd.f32 %v861, %v1021
          %v1054 = vadd.f32 %v862, %v1022
          %v1055 = vadd.f32 %v863, %v1023
          %v1056 = vadd.f32 %v864, %v1024
          %v1057 = vadd.f32 %v865, %v1025
          %v1058 = vadd.f32 %v866, %v1026
          %v1059 = vadd.f32 %v867, %v1027
          %v1060 = vadd.f32 %v868, %v1028
          %v1061 = vadd.f32 %v869, %v1029
          %v1062 = vadd.f32 %v870, %v1030
          %v1063 = vadd.f32 %v871, %v1031
          %v1064 = vadd.f32 %v872, %v1032
          %v1065 = vadd.f32 %v873, %v1033
          %v1066 = vadd.f32 %v874, %v1034
          %v1067 = vadd.f32 %v875, %v1035
          %v1068 = vadd.f32 %v876, %v1036
          %v1069 = vadd.f32 %v877, %v1037
          %v1070 = vadd.f32 %v878, %v1038
          %v1071 = vadd.f32 %v879, %v1039
          %v1072 = vadd.f32 %v880, %v1040
          %v1073 = vadd.f32 %v881, %v1041
          %v1074 = vadd.f32 %v882, %v1042
          %v1075 = vadd.f32 %v883, %v1043
          %v1076 = vadd.f32 %v884, %v1044
          %v1077 = vadd.f32 %v885, %v1045
          %v1078 = vadd.f32 %v886, %v1046
          %v1079 = vadd.f32 %v887, %v1047
          %vm1080 = vcmask 7168
          %1081 = vst.msk [vmem:[#allocation3] sm:$0xff] %vm1080, %v1048
          %1082 = vst.msk [vmem:[#allocation3 + $0x8] sm:$0xff] %vm1080, %v1049
          %1083 = vst.msk [vmem:[#allocation3 + $0x10] sm:$0xff] %vm1080, %v1050
          %1084 = vst.msk [vmem:[#allocation3 + $0x18] sm:$0xff] %vm1080, %v1051
          %1085 = vst.msk [vmem:[#allocation3 + $0x20] sm:$0xff] %vm1080, %v1052
          %1086 = vst.msk [vmem:[#allocation3 + $0x28] sm:$0xff] %vm1080, %v1053
          %1087 = vst.msk [vmem:[#allocation3 + $0x30] sm:$0xff] %vm1080, %v1054
          %1088 = vst.msk [vmem:[#allocation3 + $0x38] sm:$0xff] %vm1080, %v1055
          %1089 = vst.msk [vmem:[#allocation3 + $0x40] sm:$0xff] %vm1080, %v1056
          %1090 = vst.msk [vmem:[#allocation3 + $0x48] sm:$0xff] %vm1080, %v1057
          %1091 = vst.msk [vmem:[#allocation3 + $0x50] sm:$0xff] %vm1080, %v1058
          %1092 = vst.msk [vmem:[#allocation3 + $0x58] sm:$0xff] %vm1080, %v1059
          %1093 = vst.msk [vmem:[#allocation3 + $0x60] sm:$0xff] %vm1080, %v1060
          %1094 = vst.msk [vmem:[#allocation3 + $0x68] sm:$0xff] %vm1080, %v1061
          %1095 = vst.msk [vmem:[#allocation3 + $0x70] sm:$0xff] %vm1080, %v1062
          %1096 = vst.msk [vmem:[#allocation3 + $0x78] sm:$0xff] %vm1080, %v1063
          %1097 = vst.msk [vmem:[#allocation3 + $0x80] sm:$0xff] %vm1080, %v1064
          %1098 = vst.msk [vmem:[#allocation3 + $0x88] sm:$0xff] %vm1080, %v1065
          %1099 = vst.msk [vmem:[#allocation3 + $0x90] sm:$0xff] %vm1080, %v1066
          %1100 = vst.msk [vmem:[#allocation3 + $0x98] sm:$0xff] %vm1080, %v1067
          %1101 = vst.msk [vmem:[#allocation3 + $0xa0] sm:$0xff] %vm1080, %v1068
          %1102 = vst.msk [vmem:[#allocation3 + $0xa8] sm:$0xff] %vm1080, %v1069
          %1103 = vst.msk [vmem:[#allocation3 + $0xb0] sm:$0xff] %vm1080, %v1070
          %1104 = vst.msk [vmem:[#allocation3 + $0xb8] sm:$0xff] %vm1080, %v1071
          %1105 = vst.msk [vmem:[#allocation3 + $0xc0] sm:$0xff] %vm1080, %v1072
          %1106 = vst.msk [vmem:[#allocation3 + $0xc8] sm:$0xff] %vm1080, %v1073
          %1107 = vst.msk [vmem:[#allocation3 + $0xd0] sm:$0xff] %vm1080, %v1074
          %1108 = vst.msk [vmem:[#allocation3 + $0xd8] sm:$0xff] %vm1080, %v1075
          %1109 = vst.msk [vmem:[#allocation3 + $0xe0] sm:$0xff] %vm1080, %v1076
          %1110 = vst.msk [vmem:[#allocation3 + $0xe8] sm:$0xff] %vm1080, %v1077
          %1111 = vst.msk [vmem:[#allocation3 + $0xf0] sm:$0xff] %vm1080, %v1078
          %1112 = vst.msk [vmem:[#allocation3 + $0xf8] sm:$0xff] %vm1080, %v1079
          %v1113 = vld [vmem:[%s10] sm:$0xff]
          %v1114 = vld [vmem:[%s10 + $0x8] sm:$0xff]
          %v1115 = vld [vmem:[%s10 + $0x10] sm:$0xff]
          %v1116 = vld [vmem:[%s10 + $0x18] sm:$0xff]
          %v1117 = vld [vmem:[%s10 + $0x20] sm:$0xff]
          %v1118 = vld [vmem:[%s10 + $0x28] sm:$0xff]
          %v1119 = vld [vmem:[%s10 + $0x30] sm:$0xff]
          %v1120 = vld [vmem:[%s10 + $0x38] sm:$0xff]
          %v1121 = vld [vmem:[%s10 + $0x40] sm:$0xff]
          %v1122 = vld [vmem:[%s10 + $0x48] sm:$0xff]
          %v1123 = vld [vmem:[%s10 + $0x50] sm:$0xff]
          %v1124 = vld [vmem:[%s10 + $0x58] sm:$0xff]
          %v1125 = vld [vmem:[%s10 + $0x60] sm:$0xff]
          %v1126 = vld [vmem:[%s10 + $0x68] sm:$0xff]
          %v1127 = vld [vmem:[%s10 + $0x70] sm:$0xff]
          %v1128 = vld [vmem:[%s10 + $0x78] sm:$0xff]
          %v1129 = vld [vmem:[%s10 + $0x80] sm:$0xff]
          %v1130 = vld [vmem:[%s10 + $0x88] sm:$0xff]
          %v1131 = vld [vmem:[%s10 + $0x90] sm:$0xff]
          %v1132 = vld [vmem:[%s10 + $0x98] sm:$0xff]
          %v1133 = vld [vmem:[%s10 + $0xa0] sm:$0xff]
          %v1134 = vld [vmem:[%s10 + $0xa8] sm:$0xff]
          %v1135 = vld [vmem:[%s10 + $0xb0] sm:$0xff]
          %v1136 = vld [vmem:[%s10 + $0xb8] sm:$0xff]
          %v1137 = vld [vmem:[%s10 + $0xc0] sm:$0xff]
          %v1138 = vld [vmem:[%s10 + $0xc8] sm:$0xff]
          %v1139 = vld [vmem:[%s10 + $0xd0] sm:$0xff]
          %v1140 = vld [vmem:[%s10 + $0xd8] sm:$0xff]
          %v1141 = vld [vmem:[%s10 + $0xe0] sm:$0xff]
          %v1142 = vld [vmem:[%s10 + $0xe8] sm:$0xff]
          %v1143 = vld [vmem:[%s10 + $0xf0] sm:$0xff]
          %v1144 = vld [vmem:[%s10 + $0xf8] sm:$0xff]
          %v1145 = vld [vmem:[%s11] sm:$0xff]
          %v1146 = vld [vmem:[%s11 + $0x8] sm:$0xff]
          %v1147 = vld [vmem:[%s11 + $0x10] sm:$0xff]
          %v1148 = vld [vmem:[%s11 + $0x18] sm:$0xff]
          %v1149 = vld [vmem:[%s11 + $0x20] sm:$0xff]
          %v1150 = vld [vmem:[%s11 + $0x28] sm:$0xff]
          %v1151 = vld [vmem:[%s11 + $0x30] sm:$0xff]
          %v1152 = vld [vmem:[%s11 + $0x38] sm:$0xff]
          %v1153 = vld [vmem:[%s11 + $0x40] sm:$0xff]
          %v1154 = vld [vmem:[%s11 + $0x48] sm:$0xff]
          %v1155 = vld [vmem:[%s11 + $0x50] sm:$0xff]
          %v1156 = vld [vmem:[%s11 + $0x58] sm:$0xff]
          %v1157 = vld [vmem:[%s11 + $0x60] sm:$0xff]
          %v1158 = vld [vmem:[%s11 + $0x68] sm:$0xff]
          %v1159 = vld [vmem:[%s11 + $0x70] sm:$0xff]
          %v1160 = vld [vmem:[%s11 + $0x78] sm:$0xff]
          %v1161 = vld [vmem:[%s11 + $0x80] sm:$0xff]
          %v1162 = vld [vmem:[%s11 + $0x88] sm:$0xff]
          %v1163 = vld [vmem:[%s11 + $0x90] sm:$0xff]
          %v1164 = vld [vmem:[%s11 + $0x98] sm:$0xff]
          %v1165 = vld [vmem:[%s11 + $0xa0] sm:$0xff]
          %v1166 = vld [vmem:[%s11 + $0xa8] sm:$0xff]
          %v1167 = vld [vmem:[%s11 + $0xb0] sm:$0xff]
          %v1168 = vld [vmem:[%s11 + $0xb8] sm:$0xff]
          %v1169 = vld [vmem:[%s11 + $0xc0] sm:$0xff]
          %v1170 = vld [vmem:[%s11 + $0xc8] sm:$0xff]
          %v1171 = vld [vmem:[%s11 + $0xd0] sm:$0xff]
          %v1172 = vld [vmem:[%s11 + $0xd8] sm:$0xff]
          %v1173 = vld [vmem:[%s11 + $0xe0] sm:$0xff]
          %v1174 = vld [vmem:[%s11 + $0xe8] sm:$0xff]
          %v1175 = vld [vmem:[%s11 + $0xf0] sm:$0xff]
          %v1176 = vld [vmem:[%s11 + $0xf8] sm:$0xff]
          %1177 = vrot.lane.b32.xlu0 %v535, 91
          %v1178 = vpop.permute.xlu0 %1177
          %1179 = vrot.lane.b32.xlu0 %v536, 91
          %v1180 = vpop.permute.xlu0 %1179
          %1181 = vrot.lane.b32.xlu0 %v537, 91
          %v1182 = vpop.permute.xlu0 %1181
          %1183 = vrot.lane.b32.xlu0 %v538, 91
          %v1184 = vpop.permute.xlu0 %1183
          %1185 = vrot.lane.b32.xlu0 %v539, 91
          %v1186 = vpop.permute.xlu0 %1185
          %1187 = vrot.lane.b32.xlu0 %v540, 91
          %v1188 = vpop.permute.xlu0 %1187
          %1189 = vrot.lane.b32.xlu0 %v541, 91
          %v1190 = vpop.permute.xlu0 %1189
          %1191 = vrot.lane.b32.xlu0 %v542, 91
          %v1192 = vpop.permute.xlu0 %1191
          %1193 = vrot.lane.b32.xlu0 %v543, 91
          %v1194 = vpop.permute.xlu0 %1193
          %1195 = vrot.lane.b32.xlu0 %v544, 91
          %v1196 = vpop.permute.xlu0 %1195
          %1197 = vrot.lane.b32.xlu0 %v545, 91
          %v1198 = vpop.permute.xlu0 %1197
          %1199 = vrot.lane.b32.xlu0 %v546, 91
          %v1200 = vpop.permute.xlu0 %1199
          %1201 = vrot.lane.b32.xlu0 %v547, 91
          %v1202 = vpop.permute.xlu0 %1201
          %1203 = vrot.lane.b32.xlu0 %v548, 91
          %v1204 = vpop.permute.xlu0 %1203
          %1205 = vrot.lane.b32.xlu0 %v549, 91
          %v1206 = vpop.permute.xlu0 %1205
          %1207 = vrot.lane.b32.xlu0 %v550, 91
          %v1208 = vpop.permute.xlu0 %1207
          %1209 = vrot.lane.b32.xlu0 %v551, 91
          %v1210 = vpop.permute.xlu0 %1209
          %1211 = vrot.lane.b32.xlu0 %v552, 91
          %v1212 = vpop.permute.xlu0 %1211
          %1213 = vrot.lane.b32.xlu0 %v553, 91
          %v1214 = vpop.permute.xlu0 %1213
          %1215 = vrot.lane.b32.xlu0 %v554, 91
          %v1216 = vpop.permute.xlu0 %1215
          %1217 = vrot.lane.b32.xlu0 %v555, 91
          %v1218 = vpop.permute.xlu0 %1217
          %1219 = vrot.lane.b32.xlu0 %v556, 91
          %v1220 = vpop.permute.xlu0 %1219
          %1221 = vrot.lane.b32.xlu0 %v557, 91
          %v1222 = vpop.permute.xlu0 %1221
          %1223 = vrot.lane.b32.xlu0 %v558, 91
          %v1224 = vpop.permute.xlu0 %1223
          %1225 = vrot.lane.b32.xlu0 %v559, 91
          %v1226 = vpop.permute.xlu0 %1225
          %1227 = vrot.lane.b32.xlu0 %v560, 91
          %v1228 = vpop.permute.xlu0 %1227
          %1229 = vrot.lane.b32.xlu0 %v561, 91
          %v1230 = vpop.permute.xlu0 %1229
          %1231 = vrot.lane.b32.xlu0 %v562, 91
          %v1232 = vpop.permute.xlu0 %1231
          %1233 = vrot.lane.b32.xlu0 %v563, 91
          %v1234 = vpop.permute.xlu0 %1233
          %1235 = vrot.lane.b32.xlu0 %v564, 91
          %v1236 = vpop.permute.xlu0 %1235
          %1237 = vrot.lane.b32.xlu0 %v565, 91
          %v1238 = vpop.permute.xlu0 %1237
          %1239 = vrot.lane.b32.xlu0 %v566, 91
          %v1240 = vpop.permute.xlu0 %1239
          %v1273 = vmul.f32 %v1145, %v1178
          %v1274 = vmul.f32 %v1146, %v1180
          %v1275 = vmul.f32 %v1147, %v1182
          %v1276 = vmul.f32 %v1148, %v1184
          %v1277 = vmul.f32 %v1149, %v1186
          %v1278 = vmul.f32 %v1150, %v1188
          %v1279 = vmul.f32 %v1151, %v1190
          %v1280 = vmul.f32 %v1152, %v1192
          %v1281 = vmul.f32 %v1153, %v1194
          %v1282 = vmul.f32 %v1154, %v1196
          %v1283 = vmul.f32 %v1155, %v1198
          %v1284 = vmul.f32 %v1156, %v1200
          %v1285 = vmul.f32 %v1157, %v1202
          %v1286 = vmul.f32 %v1158, %v1204
          %v1287 = vmul.f32 %v1159, %v1206
          %v1288 = vmul.f32 %v1160, %v1208
          %v1289 = vmul.f32 %v1161, %v1210
          %v1290 = vmul.f32 %v1162, %v1212
          %v1291 = vmul.f32 %v1163, %v1214
          %v1292 = vmul.f32 %v1164, %v1216
          %v1293 = vmul.f32 %v1165, %v1218
          %v1294 = vmul.f32 %v1166, %v1220
          %v1295 = vmul.f32 %v1167, %v1222
          %v1296 = vmul.f32 %v1168, %v1224
          %v1297 = vmul.f32 %v1169, %v1226
          %v1298 = vmul.f32 %v1170, %v1228
          %v1299 = vmul.f32 %v1171, %v1230
          %v1300 = vmul.f32 %v1172, %v1232
          %v1301 = vmul.f32 %v1173, %v1234
          %v1302 = vmul.f32 %v1174, %v1236
          %v1303 = vmul.f32 %v1175, %v1238
          %v1304 = vmul.f32 %v1176, %v1240
          %v1305 = vadd.f32 %v1113, %v1273
          %v1306 = vadd.f32 %v1114, %v1274
          %v1307 = vadd.f32 %v1115, %v1275
          %v1308 = vadd.f32 %v1116, %v1276
          %v1309 = vadd.f32 %v1117, %v1277
          %v1310 = vadd.f32 %v1118, %v1278
          %v1311 = vadd.f32 %v1119, %v1279
          %v1312 = vadd.f32 %v1120, %v1280
          %v1313 = vadd.f32 %v1121, %v1281
          %v1314 = vadd.f32 %v1122, %v1282
          %v1315 = vadd.f32 %v1123, %v1283
          %v1316 = vadd.f32 %v1124, %v1284
          %v1317 = vadd.f32 %v1125, %v1285
          %v1318 = vadd.f32 %v1126, %v1286
          %v1319 = vadd.f32 %v1127, %v1287
          %v1320 = vadd.f32 %v1128, %v1288
          %v1321 = vadd.f32 %v1129, %v1289
          %v1322 = vadd.f32 %v1130, %v1290
          %v1323 = vadd.f32 %v1131, %v1291
          %v1324 = vadd.f32 %v1132, %v1292
          %v1325 = vadd.f32 %v1133, %v1293
          %v1326 = vadd.f32 %v1134, %v1294
          %v1327 = vadd.f32 %v1135, %v1295
          %v1328 = vadd.f32 %v1136, %v1296
          %v1329 = vadd.f32 %v1137, %v1297
          %v1330 = vadd.f32 %v1138, %v1298
          %v1331 = vadd.f32 %v1139, %v1299
          %v1332 = vadd.f32 %v1140, %v1300
          %v1333 = vadd.f32 %v1141, %v1301
          %v1334 = vadd.f32 %v1142, %v1302
          %v1335 = vadd.f32 %v1143, %v1303
          %v1336 = vadd.f32 %v1144, %v1304
          %1337 = vst.msk [vmem:[#allocation5] sm:$0xff] %vm1080, %v1305
          %1338 = vst.msk [vmem:[#allocation5 + $0x8] sm:$0xff] %vm1080, %v1306
          %1339 = vst.msk [vmem:[#allocation5 + $0x10] sm:$0xff] %vm1080, %v1307
          %1340 = vst.msk [vmem:[#allocation5 + $0x18] sm:$0xff] %vm1080, %v1308
          %1341 = vst.msk [vmem:[#allocation5 + $0x20] sm:$0xff] %vm1080, %v1309
          %1342 = vst.msk [vmem:[#allocation5 + $0x28] sm:$0xff] %vm1080, %v1310
          %1343 = vst.msk [vmem:[#allocation5 + $0x30] sm:$0xff] %vm1080, %v1311
          %1344 = vst.msk [vmem:[#allocation5 + $0x38] sm:$0xff] %vm1080, %v1312
          %1345 = vst.msk [vmem:[#allocation5 + $0x40] sm:$0xff] %vm1080, %v1313
          %1346 = vst.msk [vmem:[#allocation5 + $0x48] sm:$0xff] %vm1080, %v1314
          %1347 = vst.msk [vmem:[#allocation5 + $0x50] sm:$0xff] %vm1080, %v1315
          %1348 = vst.msk [vmem:[#allocation5 + $0x58] sm:$0xff] %vm1080, %v1316
          %1349 = vst.msk [vmem:[#allocation5 + $0x60] sm:$0xff] %vm1080, %v1317
          %1350 = vst.msk [vmem:[#allocation5 + $0x68] sm:$0xff] %vm1080, %v1318
          %1351 = vst.msk [vmem:[#allocation5 + $0x70] sm:$0xff] %vm1080, %v1319
          %1352 = vst.msk [vmem:[#allocation5 + $0x78] sm:$0xff] %vm1080, %v1320
          %1353 = vst.msk [vmem:[#allocation5 + $0x80] sm:$0xff] %vm1080, %v1321
          %1354 = vst.msk [vmem:[#allocation5 + $0x88] sm:$0xff] %vm1080, %v1322
          %1355 = vst.msk [vmem:[#allocation5 + $0x90] sm:$0xff] %vm1080, %v1323
          %1356 = vst.msk [vmem:[#allocation5 + $0x98] sm:$0xff] %vm1080, %v1324
          %1357 = vst.msk [vmem:[#allocation5 + $0xa0] sm:$0xff] %vm1080, %v1325
          %1358 = vst.msk [vmem:[#allocation5 + $0xa8] sm:$0xff] %vm1080, %v1326
          %1359 = vst.msk [vmem:[#allocation5 + $0xb0] sm:$0xff] %vm1080, %v1327
          %1360 = vst.msk [vmem:[#allocation5 + $0xb8] sm:$0xff] %vm1080, %v1328
          %1361 = vst.msk [vmem:[#allocation5 + $0xc0] sm:$0xff] %vm1080, %v1329
          %1362 = vst.msk [vmem:[#allocation5 + $0xc8] sm:$0xff] %vm1080, %v1330
          %1363 = vst.msk [vmem:[#allocation5 + $0xd0] sm:$0xff] %vm1080, %v1331
          %1364 = vst.msk [vmem:[#allocation5 + $0xd8] sm:$0xff] %vm1080, %v1332
          %1365 = vst.msk [vmem:[#allocation5 + $0xe0] sm:$0xff] %vm1080, %v1333
          %1366 = vst.msk [vmem:[#allocation5 + $0xe8] sm:$0xff] %vm1080, %v1334
          %1367 = vst.msk [vmem:[#allocation5 + $0xf0] sm:$0xff] %vm1080, %v1335
          %1368 = vst.msk [vmem:[#allocation5 + $0xf8] sm:$0xff] %vm1080, %v1336
          %1369 = vrot.lane.b32.xlu0 %v535, 32
          %v1370 = vpop.permute.xlu0 %1369
          %1371 = vrot.lane.b32.xlu0 %v536, 32
          %v1372 = vpop.permute.xlu0 %1371
          %1373 = vrot.lane.b32.xlu0 %v537, 32
          %v1374 = vpop.permute.xlu0 %1373
          %1375 = vrot.lane.b32.xlu0 %v538, 32
          %v1376 = vpop.permute.xlu0 %1375
          %1377 = vrot.lane.b32.xlu0 %v539, 32
          %v1378 = vpop.permute.xlu0 %1377
          %1379 = vrot.lane.b32.xlu0 %v540, 32
          %v1380 = vpop.permute.xlu0 %1379
          %1381 = vrot.lane.b32.xlu0 %v541, 32
          %v1382 = vpop.permute.xlu0 %1381
          %1383 = vrot.lane.b32.xlu0 %v542, 32
          %v1384 = vpop.permute.xlu0 %1383
          %1385 = vrot.lane.b32.xlu0 %v543, 32
          %v1386 = vpop.permute.xlu0 %1385
          %1387 = vrot.lane.b32.xlu0 %v544, 32
          %v1388 = vpop.permute.xlu0 %1387
          %1389 = vrot.lane.b32.xlu0 %v545, 32
          %v1390 = vpop.permute.xlu0 %1389
          %1391 = vrot.lane.b32.xlu0 %v546, 32
          %v1392 = vpop.permute.xlu0 %1391
          %1393 = vrot.lane.b32.xlu0 %v547, 32
          %v1394 = vpop.permute.xlu0 %1393
          %1395 = vrot.lane.b32.xlu0 %v548, 32
          %v1396 = vpop.permute.xlu0 %1395
          %1397 = vrot.lane.b32.xlu0 %v549, 32
          %v1398 = vpop.permute.xlu0 %1397
          %1399 = vrot.lane.b32.xlu0 %v550, 32
          %v1400 = vpop.permute.xlu0 %1399
          %1401 = vrot.lane.b32.xlu0 %v551, 32
          %v1402 = vpop.permute.xlu0 %1401
          %1403 = vrot.lane.b32.xlu0 %v552, 32
          %v1404 = vpop.permute.xlu0 %1403
          %1405 = vrot.lane.b32.xlu0 %v553, 32
          %v1406 = vpop.permute.xlu0 %1405
          %1407 = vrot.lane.b32.xlu0 %v554, 32
          %v1408 = vpop.permute.xlu0 %1407
          %1409 = vrot.lane.b32.xlu0 %v555, 32
          %v1410 = vpop.permute.xlu0 %1409
          %1411 = vrot.lane.b32.xlu0 %v556, 32
          %v1412 = vpop.permute.xlu0 %1411
          %1413 = vrot.lane.b32.xlu0 %v557, 32
          %v1414 = vpop.permute.xlu0 %1413
          %1415 = vrot.lane.b32.xlu0 %v558, 32
          %v1416 = vpop.permute.xlu0 %1415
          %1417 = vrot.lane.b32.xlu0 %v559, 32
          %v1418 = vpop.permute.xlu0 %1417
          %1419 = vrot.lane.b32.xlu0 %v560, 32
          %v1420 = vpop.permute.xlu0 %1419
          %1421 = vrot.lane.b32.xlu0 %v561, 32
          %v1422 = vpop.permute.xlu0 %1421
          %1423 = vrot.lane.b32.xlu0 %v562, 32
          %v1424 = vpop.permute.xlu0 %1423
          %1425 = vrot.lane.b32.xlu0 %v563, 32
          %v1426 = vpop.permute.xlu0 %1425
          %1427 = vrot.lane.b32.xlu0 %v564, 32
          %v1428 = vpop.permute.xlu0 %1427
          %1429 = vrot.lane.b32.xlu0 %v565, 32
          %v1430 = vpop.permute.xlu0 %1429
          %1431 = vrot.lane.b32.xlu0 %v566, 32
          %v1432 = vpop.permute.xlu0 %1431
          %1465 = vrot.lane.b32.xlu0 %v535, 64
          %v1466 = vpop.permute.xlu0 %1465
          %1467 = vrot.lane.b32.xlu0 %v536, 64
          %v1468 = vpop.permute.xlu0 %1467
          %1469 = vrot.lane.b32.xlu0 %v537, 64
          %v1470 = vpop.permute.xlu0 %1469
          %1471 = vrot.lane.b32.xlu0 %v538, 64
          %v1472 = vpop.permute.xlu0 %1471
          %1473 = vrot.lane.b32.xlu0 %v539, 64
          %v1474 = vpop.permute.xlu0 %1473
          %1475 = vrot.lane.b32.xlu0 %v540, 64
          %v1476 = vpop.permute.xlu0 %1475
          %1477 = vrot.lane.b32.xlu0 %v541, 64
          %v1478 = vpop.permute.xlu0 %1477
          %1479 = vrot.lane.b32.xlu0 %v542, 64
          %v1480 = vpop.permute.xlu0 %1479
          %1481 = vrot.lane.b32.xlu0 %v543, 64
          %v1482 = vpop.permute.xlu0 %1481
          %1483 = vrot.lane.b32.xlu0 %v544, 64
          %v1484 = vpop.permute.xlu0 %1483
          %1485 = vrot.lane.b32.xlu0 %v545, 64
          %v1486 = vpop.permute.xlu0 %1485
          %1487 = vrot.lane.b32.xlu0 %v546, 64
          %v1488 = vpop.permute.xlu0 %1487
          %1489 = vrot.lane.b32.xlu0 %v547, 64
          %v1490 = vpop.permute.xlu0 %1489
          %1491 = vrot.lane.b32.xlu0 %v548, 64
          %v1492 = vpop.permute.xlu0 %1491
          %1493 = vrot.lane.b32.xlu0 %v549, 64
          %v1494 = vpop.permute.xlu0 %1493
          %1495 = vrot.lane.b32.xlu0 %v550, 64
          %v1496 = vpop.permute.xlu0 %1495
          %1497 = vrot.lane.b32.xlu0 %v551, 64
          %v1498 = vpop.permute.xlu0 %1497
          %1499 = vrot.lane.b32.xlu0 %v552, 64
          %v1500 = vpop.permute.xlu0 %1499
          %1501 = vrot.lane.b32.xlu0 %v553, 64
          %v1502 = vpop.permute.xlu0 %1501
          %1503 = vrot.lane.b32.xlu0 %v554, 64
          %v1504 = vpop.permute.xlu0 %1503
          %1505 = vrot.lane.b32.xlu0 %v555, 64
          %v1506 = vpop.permute.xlu0 %1505
          %1507 = vrot.lane.b32.xlu0 %v556, 64
          %v1508 = vpop.permute.xlu0 %1507
          %1509 = vrot.lane.b32.xlu0 %v557, 64
          %v1510 = vpop.permute.xlu0 %1509
          %1511 = vrot.lane.b32.xlu0 %v558, 64
          %v1512 = vpop.permute.xlu0 %1511
          %1513 = vrot.lane.b32.xlu0 %v559, 64
          %v1514 = vpop.permute.xlu0 %1513
          %1515 = vrot.lane.b32.xlu0 %v560, 64
          %v1516 = vpop.permute.xlu0 %1515
          %1517 = vrot.lane.b32.xlu0 %v561, 64
          %v1518 = vpop.permute.xlu0 %1517
          %1519 = vrot.lane.b32.xlu0 %v562, 64
          %v1520 = vpop.permute.xlu0 %1519
          %1521 = vrot.lane.b32.xlu0 %v563, 64
          %v1522 = vpop.permute.xlu0 %1521
          %1523 = vrot.lane.b32.xlu0 %v564, 64
          %v1524 = vpop.permute.xlu0 %1523
          %1525 = vrot.lane.b32.xlu0 %v565, 64
          %v1526 = vpop.permute.xlu0 %1525
          %1527 = vrot.lane.b32.xlu0 %v566, 64
          %v1528 = vpop.permute.xlu0 %1527
          %vm1561 = vcmask 261120
          %v1562 = vsel %vm1561, %v535, %v1370
          %v1563 = vsel %vm1561, %v536, %v1372
          %v1564 = vsel %vm1561, %v537, %v1374
          %v1565 = vsel %vm1561, %v538, %v1376
          %v1566 = vsel %vm1561, %v539, %v1378
          %v1567 = vsel %vm1561, %v540, %v1380
          %v1568 = vsel %vm1561, %v541, %v1382
          %v1569 = vsel %vm1561, %v542, %v1384
          %v1570 = vsel %vm1561, %v543, %v1386
          %v1571 = vsel %vm1561, %v544, %v1388
          %v1572 = vsel %vm1561, %v545, %v1390
          %v1573 = vsel %vm1561, %v546, %v1392
          %v1574 = vsel %vm1561, %v547, %v1394
          %v1575 = vsel %vm1561, %v548, %v1396
          %v1576 = vsel %vm1561, %v549, %v1398
          %v1577 = vsel %vm1561, %v550, %v1400
          %v1578 = vsel %vm1561, %v551, %v1402
          %v1579 = vsel %vm1561, %v552, %v1404
          %v1580 = vsel %vm1561, %v553, %v1406
          %v1581 = vsel %vm1561, %v554, %v1408
          %v1582 = vsel %vm1561, %v555, %v1410
          %v1583 = vsel %vm1561, %v556, %v1412
          %v1584 = vsel %vm1561, %v557, %v1414
          %v1585 = vsel %vm1561, %v558, %v1416
          %v1586 = vsel %vm1561, %v559, %v1418
          %v1587 = vsel %vm1561, %v560, %v1420
          %v1588 = vsel %vm1561, %v561, %v1422
          %v1589 = vsel %vm1561, %v562, %v1424
          %v1590 = vsel %vm1561, %v563, %v1426
          %v1591 = vsel %vm1561, %v564, %v1428
          %v1592 = vsel %vm1561, %v565, %v1430
          %v1593 = vsel %vm1561, %v566, %v1432
          %vm1594 = vcmask 523264
          %v1595 = vsel %vm1594, %v1562, %v1466
          %v1596 = vsel %vm1594, %v1563, %v1468
          %v1597 = vsel %vm1594, %v1564, %v1470
          %v1598 = vsel %vm1594, %v1565, %v1472
          %v1599 = vsel %vm1594, %v1566, %v1474
          %v1600 = vsel %vm1594, %v1567, %v1476
          %v1601 = vsel %vm1594, %v1568, %v1478
          %v1602 = vsel %vm1594, %v1569, %v1480
          %v1603 = vsel %vm1594, %v1570, %v1482
          %v1604 = vsel %vm1594, %v1571, %v1484
          %v1605 = vsel %vm1594, %v1572, %v1486
          %v1606 = vsel %vm1594, %v1573, %v1488
          %v1607 = vsel %vm1594, %v1574, %v1490
          %v1608 = vsel %vm1594, %v1575, %v1492
          %v1609 = vsel %vm1594, %v1576, %v1494
          %v1610 = vsel %vm1594, %v1577, %v1496
          %v1611 = vsel %vm1594, %v1578, %v1498
          %v1612 = vsel %vm1594, %v1579, %v1500
          %v1613 = vsel %vm1594, %v1580, %v1502
          %v1614 = vsel %vm1594, %v1581, %v1504
          %v1615 = vsel %vm1594, %v1582, %v1506
          %v1616 = vsel %vm1594, %v1583, %v1508
          %v1617 = vsel %vm1594, %v1584, %v1510
          %v1618 = vsel %vm1594, %v1585, %v1512
          %v1619 = vsel %vm1594, %v1586, %v1514
          %v1620 = vsel %vm1594, %v1587, %v1516
          %v1621 = vsel %vm1594, %v1588, %v1518
          %v1622 = vsel %vm1594, %v1589, %v1520
          %v1623 = vsel %vm1594, %v1590, %v1522
          %v1624 = vsel %vm1594, %v1591, %v1524
          %v1625 = vsel %vm1594, %v1592, %v1526
          %v1626 = vsel %vm1594, %v1593, %v1528
          %vm1627 = vcmask 785408
          %v1628 = vsel %vm1627, %v1595, %v664
          %v1629 = vsel %vm1627, %v1596, %v666
          %v1630 = vsel %vm1627, %v1597, %v668
          %v1631 = vsel %vm1627, %v1598, %v670
          %v1632 = vsel %vm1627, %v1599, %v672
          %v1633 = vsel %vm1627, %v1600, %v674
          %v1634 = vsel %vm1627, %v1601, %v676
          %v1635 = vsel %vm1627, %v1602, %v678
          %v1636 = vsel %vm1627, %v1603, %v680
          %v1637 = vsel %vm1627, %v1604, %v682
          %v1638 = vsel %vm1627, %v1605, %v684
          %v1639 = vsel %vm1627, %v1606, %v686
          %v1640 = vsel %vm1627, %v1607, %v688
          %v1641 = vsel %vm1627, %v1608, %v690
          %v1642 = vsel %vm1627, %v1609, %v692
          %v1643 = vsel %vm1627, %v1610, %v694
          %v1644 = vsel %vm1627, %v1611, %v696
          %v1645 = vsel %vm1627, %v1612, %v698
          %v1646 = vsel %vm1627, %v1613, %v700
          %v1647 = vsel %vm1627, %v1614, %v702
          %v1648 = vsel %vm1627, %v1615, %v704
          %v1649 = vsel %vm1627, %v1616, %v706
          %v1650 = vsel %vm1627, %v1617, %v708
          %v1651 = vsel %vm1627, %v1618, %v710
          %v1652 = vsel %vm1627, %v1619, %v712
          %v1653 = vsel %vm1627, %v1620, %v714
          %v1654 = vsel %vm1627, %v1621, %v716
          %v1655 = vsel %vm1627, %v1622, %v718
          %v1656 = vsel %vm1627, %v1623, %v720
          %v1657 = vsel %vm1627, %v1624, %v722
          %v1658 = vsel %vm1627, %v1625, %v724
          %v1659 = vsel %vm1627, %v1626, %v726
          %v1660 = vld [vmem:[%s8] sm:$0xff]
          %v1661 = vld [vmem:[%s8 + $0x8] sm:$0xff]
          %v1662 = vld [vmem:[%s8 + $0x10] sm:$0xff]
          %v1663 = vld [vmem:[%s8 + $0x18] sm:$0xff]
          %v1664 = vld [vmem:[%s8 + $0x20] sm:$0xff]
          %v1665 = vld [vmem:[%s8 + $0x28] sm:$0xff]
          %v1666 = vld [vmem:[%s8 + $0x30] sm:$0xff]
          %v1667 = vld [vmem:[%s8 + $0x38] sm:$0xff]
          %v1668 = vld [vmem:[%s8 + $0x40] sm:$0xff]
          %v1669 = vld [vmem:[%s8 + $0x48] sm:$0xff]
          %v1670 = vld [vmem:[%s8 + $0x50] sm:$0xff]
          %v1671 = vld [vmem:[%s8 + $0x58] sm:$0xff]
          %v1672 = vld [vmem:[%s8 + $0x60] sm:$0xff]
          %v1673 = vld [vmem:[%s8 + $0x68] sm:$0xff]
          %v1674 = vld [vmem:[%s8 + $0x70] sm:$0xff]
          %v1675 = vld [vmem:[%s8 + $0x78] sm:$0xff]
          %v1676 = vld [vmem:[%s8 + $0x80] sm:$0xff]
          %v1677 = vld [vmem:[%s8 + $0x88] sm:$0xff]
          %v1678 = vld [vmem:[%s8 + $0x90] sm:$0xff]
          %v1679 = vld [vmem:[%s8 + $0x98] sm:$0xff]
          %v1680 = vld [vmem:[%s8 + $0xa0] sm:$0xff]
          %v1681 = vld [vmem:[%s8 + $0xa8] sm:$0xff]
          %v1682 = vld [vmem:[%s8 + $0xb0] sm:$0xff]
          %v1683 = vld [vmem:[%s8 + $0xb8] sm:$0xff]
          %v1684 = vld [vmem:[%s8 + $0xc0] sm:$0xff]
          %v1685 = vld [vmem:[%s8 + $0xc8] sm:$0xff]
          %v1686 = vld [vmem:[%s8 + $0xd0] sm:$0xff]
          %v1687 = vld [vmem:[%s8 + $0xd8] sm:$0xff]
          %v1688 = vld [vmem:[%s8 + $0xe0] sm:$0xff]
          %v1689 = vld [vmem:[%s8 + $0xe8] sm:$0xff]
          %v1690 = vld [vmem:[%s8 + $0xf0] sm:$0xff]
          %v1691 = vld [vmem:[%s8 + $0xf8] sm:$0xff]
          %v1692 = vld [vmem:[%s8 + $0x100] sm:$0xff]
          %v1693 = vld [vmem:[%s8 + $0x108] sm:$0xff]
          %v1694 = vld [vmem:[%s8 + $0x110] sm:$0xff]
          %v1695 = vld [vmem:[%s8 + $0x118] sm:$0xff]
          %v1696 = vld [vmem:[%s8 + $0x120] sm:$0xff]
          %v1697 = vld [vmem:[%s8 + $0x128] sm:$0xff]
          %v1698 = vld [vmem:[%s8 + $0x130] sm:$0xff]
          %v1699 = vld [vmem:[%s8 + $0x138] sm:$0xff]
          %v1700 = vld [vmem:[%s8 + $0x140] sm:$0xff]
          %v1701 = vld [vmem:[%s8 + $0x148] sm:$0xff]
          %v1702 = vld [vmem:[%s8 + $0x150] sm:$0xff]
          %v1703 = vld [vmem:[%s8 + $0x158] sm:$0xff]
          %v1704 = vld [vmem:[%s8 + $0x160] sm:$0xff]
          %v1705 = vld [vmem:[%s8 + $0x168] sm:$0xff]
          %v1706 = vld [vmem:[%s8 + $0x170] sm:$0xff]
          %v1707 = vld [vmem:[%s8 + $0x178] sm:$0xff]
          %v1708 = vld [vmem:[%s8 + $0x180] sm:$0xff]
          %v1709 = vld [vmem:[%s8 + $0x188] sm:$0xff]
          %v1710 = vld [vmem:[%s8 + $0x190] sm:$0xff]
          %v1711 = vld [vmem:[%s8 + $0x198] sm:$0xff]
          %v1712 = vld [vmem:[%s8 + $0x1a0] sm:$0xff]
          %v1713 = vld [vmem:[%s8 + $0x1a8] sm:$0xff]
          %v1714 = vld [vmem:[%s8 + $0x1b0] sm:$0xff]
          %v1715 = vld [vmem:[%s8 + $0x1b8] sm:$0xff]
          %v1716 = vld [vmem:[%s8 + $0x1c0] sm:$0xff]
          %v1717 = vld [vmem:[%s8 + $0x1c8] sm:$0xff]
          %v1718 = vld [vmem:[%s8 + $0x1d0] sm:$0xff]
          %v1719 = vld [vmem:[%s8 + $0x1d8] sm:$0xff]
          %v1720 = vld [vmem:[%s8 + $0x1e0] sm:$0xff]
          %v1721 = vld [vmem:[%s8 + $0x1e8] sm:$0xff]
          %v1722 = vld [vmem:[%s8 + $0x1f0] sm:$0xff]
          %v1723 = vld [vmem:[%s8 + $0x1f8] sm:$0xff]
          %v1724 = vld [vmem:[%s9] sm:$0xff]
          %v1725 = vld [vmem:[%s9 + $0x8] sm:$0xff]
          %v1726 = vld [vmem:[%s9 + $0x10] sm:$0xff]
          %v1727 = vld [vmem:[%s9 + $0x18] sm:$0xff]
          %v1728 = vld [vmem:[%s9 + $0x20] sm:$0xff]
          %v1729 = vld [vmem:[%s9 + $0x28] sm:$0xff]
          %v1730 = vld [vmem:[%s9 + $0x30] sm:$0xff]
          %v1731 = vld [vmem:[%s9 + $0x38] sm:$0xff]
          %v1732 = vld [vmem:[%s9 + $0x40] sm:$0xff]
          %v1733 = vld [vmem:[%s9 + $0x48] sm:$0xff]
          %v1734 = vld [vmem:[%s9 + $0x50] sm:$0xff]
          %v1735 = vld [vmem:[%s9 + $0x58] sm:$0xff]
          %v1736 = vld [vmem:[%s9 + $0x60] sm:$0xff]
          %v1737 = vld [vmem:[%s9 + $0x68] sm:$0xff]
          %v1738 = vld [vmem:[%s9 + $0x70] sm:$0xff]
          %v1739 = vld [vmem:[%s9 + $0x78] sm:$0xff]
          %v1740 = vld [vmem:[%s9 + $0x80] sm:$0xff]
          %v1741 = vld [vmem:[%s9 + $0x88] sm:$0xff]
          %v1742 = vld [vmem:[%s9 + $0x90] sm:$0xff]
          %v1743 = vld [vmem:[%s9 + $0x98] sm:$0xff]
          %v1744 = vld [vmem:[%s9 + $0xa0] sm:$0xff]
          %v1745 = vld [vmem:[%s9 + $0xa8] sm:$0xff]
          %v1746 = vld [vmem:[%s9 + $0xb0] sm:$0xff]
          %v1747 = vld [vmem:[%s9 + $0xb8] sm:$0xff]
          %v1748 = vld [vmem:[%s9 + $0xc0] sm:$0xff]
          %v1749 = vld [vmem:[%s9 + $0xc8] sm:$0xff]
          %v1750 = vld [vmem:[%s9 + $0xd0] sm:$0xff]
          %v1751 = vld [vmem:[%s9 + $0xd8] sm:$0xff]
          %v1752 = vld [vmem:[%s9 + $0xe0] sm:$0xff]
          %v1753 = vld [vmem:[%s9 + $0xe8] sm:$0xff]
          %v1754 = vld [vmem:[%s9 + $0xf0] sm:$0xff]
          %v1755 = vld [vmem:[%s9 + $0xf8] sm:$0xff]
          %v1756 = vld [vmem:[%s9 + $0x100] sm:$0xff]
          %v1757 = vld [vmem:[%s9 + $0x108] sm:$0xff]
          %v1758 = vld [vmem:[%s9 + $0x110] sm:$0xff]
          %v1759 = vld [vmem:[%s9 + $0x118] sm:$0xff]
          %v1760 = vld [vmem:[%s9 + $0x120] sm:$0xff]
          %v1761 = vld [vmem:[%s9 + $0x128] sm:$0xff]
          %v1762 = vld [vmem:[%s9 + $0x130] sm:$0xff]
          %v1763 = vld [vmem:[%s9 + $0x138] sm:$0xff]
          %v1764 = vld [vmem:[%s9 + $0x140] sm:$0xff]
          %v1765 = vld [vmem:[%s9 + $0x148] sm:$0xff]
          %v1766 = vld [vmem:[%s9 + $0x150] sm:$0xff]
          %v1767 = vld [vmem:[%s9 + $0x158] sm:$0xff]
          %v1768 = vld [vmem:[%s9 + $0x160] sm:$0xff]
          %v1769 = vld [vmem:[%s9 + $0x168] sm:$0xff]
          %v1770 = vld [vmem:[%s9 + $0x170] sm:$0xff]
          %v1771 = vld [vmem:[%s9 + $0x178] sm:$0xff]
          %v1772 = vld [vmem:[%s9 + $0x180] sm:$0xff]
          %v1773 = vld [vmem:[%s9 + $0x188] sm:$0xff]
          %v1774 = vld [vmem:[%s9 + $0x190] sm:$0xff]
          %v1775 = vld [vmem:[%s9 + $0x198] sm:$0xff]
          %v1776 = vld [vmem:[%s9 + $0x1a0] sm:$0xff]
          %v1777 = vld [vmem:[%s9 + $0x1a8] sm:$0xff]
          %v1778 = vld [vmem:[%s9 + $0x1b0] sm:$0xff]
          %v1779 = vld [vmem:[%s9 + $0x1b8] sm:$0xff]
          %v1780 = vld [vmem:[%s9 + $0x1c0] sm:$0xff]
          %v1781 = vld [vmem:[%s9 + $0x1c8] sm:$0xff]
          %v1782 = vld [vmem:[%s9 + $0x1d0] sm:$0xff]
          %v1783 = vld [vmem:[%s9 + $0x1d8] sm:$0xff]
          %v1784 = vld [vmem:[%s9 + $0x1e0] sm:$0xff]
          %v1785 = vld [vmem:[%s9 + $0x1e8] sm:$0xff]
          %v1786 = vld [vmem:[%s9 + $0x1f0] sm:$0xff]
          %v1787 = vld [vmem:[%s9 + $0x1f8] sm:$0xff]
          %v1788 = vmul.f32 %v1724, %v1628
          %v1789 = vmul.f32 %v1725, %v1628
          %v1790 = vmul.f32 %v1726, %v1629
          %v1791 = vmul.f32 %v1727, %v1629
          %v1792 = vmul.f32 %v1728, %v1630
          %v1793 = vmul.f32 %v1729, %v1630
          %v1794 = vmul.f32 %v1730, %v1631
          %v1795 = vmul.f32 %v1731, %v1631
          %v1796 = vmul.f32 %v1732, %v1632
          %v1797 = vmul.f32 %v1733, %v1632
          %v1798 = vmul.f32 %v1734, %v1633
          %v1799 = vmul.f32 %v1735, %v1633
          %v1800 = vmul.f32 %v1736, %v1634
          %v1801 = vmul.f32 %v1737, %v1634
          %v1802 = vmul.f32 %v1738, %v1635
          %v1803 = vmul.f32 %v1739, %v1635
          %v1804 = vmul.f32 %v1740, %v1636
          %v1805 = vmul.f32 %v1741, %v1636
          %v1806 = vmul.f32 %v1742, %v1637
          %v1807 = vmul.f32 %v1743, %v1637
          %v1808 = vmul.f32 %v1744, %v1638
          %v1809 = vmul.f32 %v1745, %v1638
          %v1810 = vmul.f32 %v1746, %v1639
          %v1811 = vmul.f32 %v1747, %v1639
          %v1812 = vmul.f32 %v1748, %v1640
          %v1813 = vmul.f32 %v1749, %v1640
          %v1814 = vmul.f32 %v1750, %v1641
          %v1815 = vmul.f32 %v1751, %v1641
          %v1816 = vmul.f32 %v1752, %v1642
          %v1817 = vmul.f32 %v1753, %v1642
          %v1818 = vmul.f32 %v1754, %v1643
          %v1819 = vmul.f32 %v1755, %v1643
          %v1820 = vmul.f32 %v1756, %v1644
          %v1821 = vmul.f32 %v1757, %v1644
          %v1822 = vmul.f32 %v1758, %v1645
          %v1823 = vmul.f32 %v1759, %v1645
          %v1824 = vmul.f32 %v1760, %v1646
          %v1825 = vmul.f32 %v1761, %v1646
          %v1826 = vmul.f32 %v1762, %v1647
          %v1827 = vmul.f32 %v1763, %v1647
          %v1828 = vmul.f32 %v1764, %v1648
          %v1829 = vmul.f32 %v1765, %v1648
          %v1830 = vmul.f32 %v1766, %v1649
          %v1831 = vmul.f32 %v1767, %v1649
          %v1832 = vmul.f32 %v1768, %v1650
          %v1833 = vmul.f32 %v1769, %v1650
          %v1834 = vmul.f32 %v1770, %v1651
          %v1835 = vmul.f32 %v1771, %v1651
          %v1836 = vmul.f32 %v1772, %v1652
          %v1837 = vmul.f32 %v1773, %v1652
          %v1838 = vmul.f32 %v1774, %v1653
          %v1839 = vmul.f32 %v1775, %v1653
          %v1840 = vmul.f32 %v1776, %v1654
          %v1841 = vmul.f32 %v1777, %v1654
          %v1842 = vmul.f32 %v1778, %v1655
          %v1843 = vmul.f32 %v1779, %v1655
          %v1844 = vmul.f32 %v1780, %v1656
          %v1845 = vmul.f32 %v1781, %v1656
          %v1846 = vmul.f32 %v1782, %v1657
          %v1847 = vmul.f32 %v1783, %v1657
          %v1848 = vmul.f32 %v1784, %v1658
          %v1849 = vmul.f32 %v1785, %v1658
          %v1850 = vmul.f32 %v1786, %v1659
          %v1851 = vmul.f32 %v1787, %v1659
          %v1852 = vadd.f32 %v1660, %v1788
          %v1853 = vadd.f32 %v1661, %v1789
          %v1854 = vadd.f32 %v1662, %v1790
          %v1855 = vadd.f32 %v1663, %v1791
          %v1856 = vadd.f32 %v1664, %v1792
          %v1857 = vadd.f32 %v1665, %v1793
          %v1858 = vadd.f32 %v1666, %v1794
          %v1859 = vadd.f32 %v1667, %v1795
          %v1860 = vadd.f32 %v1668, %v1796
          %v1861 = vadd.f32 %v1669, %v1797
          %v1862 = vadd.f32 %v1670, %v1798
          %v1863 = vadd.f32 %v1671, %v1799
          %v1864 = vadd.f32 %v1672, %v1800
          %v1865 = vadd.f32 %v1673, %v1801
          %v1866 = vadd.f32 %v1674, %v1802
          %v1867 = vadd.f32 %v1675, %v1803
          %v1868 = vadd.f32 %v1676, %v1804
          %v1869 = vadd.f32 %v1677, %v1805
          %v1870 = vadd.f32 %v1678, %v1806
          %v1871 = vadd.f32 %v1679, %v1807
          %v1872 = vadd.f32 %v1680, %v1808
          %v1873 = vadd.f32 %v1681, %v1809
          %v1874 = vadd.f32 %v1682, %v1810
          %v1875 = vadd.f32 %v1683, %v1811
          %v1876 = vadd.f32 %v1684, %v1812
          %v1877 = vadd.f32 %v1685, %v1813
          %v1878 = vadd.f32 %v1686, %v1814
          %v1879 = vadd.f32 %v1687, %v1815
          %v1880 = vadd.f32 %v1688, %v1816
          %v1881 = vadd.f32 %v1689, %v1817
          %v1882 = vadd.f32 %v1690, %v1818
          %v1883 = vadd.f32 %v1691, %v1819
          %v1884 = vadd.f32 %v1692, %v1820
          %v1885 = vadd.f32 %v1693, %v1821
          %v1886 = vadd.f32 %v1694, %v1822
          %v1887 = vadd.f32 %v1695, %v1823
          %v1888 = vadd.f32 %v1696, %v1824
          %v1889 = vadd.f32 %v1697, %v1825
          %v1890 = vadd.f32 %v1698, %v1826
          %v1891 = vadd.f32 %v1699, %v1827
          %v1892 = vadd.f32 %v1700, %v1828
          %v1893 = vadd.f32 %v1701, %v1829
          %v1894 = vadd.f32 %v1702, %v1830
          %v1895 = vadd.f32 %v1703, %v1831
          %v1896 = vadd.f32 %v1704, %v1832
          %v1897 = vadd.f32 %v1705, %v1833
          %v1898 = vadd.f32 %v1706, %v1834
          %v1899 = vadd.f32 %v1707, %v1835
          %v1900 = vadd.f32 %v1708, %v1836
          %v1901 = vadd.f32 %v1709, %v1837
          %v1902 = vadd.f32 %v1710, %v1838
          %v1903 = vadd.f32 %v1711, %v1839
          %v1904 = vadd.f32 %v1712, %v1840
          %v1905 = vadd.f32 %v1713, %v1841
          %v1906 = vadd.f32 %v1714, %v1842
          %v1907 = vadd.f32 %v1715, %v1843
          %v1908 = vadd.f32 %v1716, %v1844
          %v1909 = vadd.f32 %v1717, %v1845
          %v1910 = vadd.f32 %v1718, %v1846
          %v1911 = vadd.f32 %v1719, %v1847
          %v1912 = vadd.f32 %v1720, %v1848
          %v1913 = vadd.f32 %v1721, %v1849
          %v1914 = vadd.f32 %v1722, %v1850
          %v1915 = vadd.f32 %v1723, %v1851
          %1916 = vst [vmem:[#allocation4] sm:$0xff] %v1852
          %1917 = vst [vmem:[#allocation4 + $0x8] sm:$0xff] %v1853
          %1918 = vst [vmem:[#allocation4 + $0x10] sm:$0xff] %v1854
          %1919 = vst [vmem:[#allocation4 + $0x18] sm:$0xff] %v1855
          %1920 = vst [vmem:[#allocation4 + $0x20] sm:$0xff] %v1856
          %1921 = vst [vmem:[#allocation4 + $0x28] sm:$0xff] %v1857
          %1922 = vst [vmem:[#allocation4 + $0x30] sm:$0xff] %v1858
          %1923 = vst [vmem:[#allocation4 + $0x38] sm:$0xff] %v1859
          %1924 = vst [vmem:[#allocation4 + $0x40] sm:$0xff] %v1860
          %1925 = vst [vmem:[#allocation4 + $0x48] sm:$0xff] %v1861
          %1926 = vst [vmem:[#allocation4 + $0x50] sm:$0xff] %v1862
          %1927 = vst [vmem:[#allocation4 + $0x58] sm:$0xff] %v1863
          %1928 = vst [vmem:[#allocation4 + $0x60] sm:$0xff] %v1864
          %1929 = vst [vmem:[#allocation4 + $0x68] sm:$0xff] %v1865
          %1930 = vst [vmem:[#allocation4 + $0x70] sm:$0xff] %v1866
          %1931 = vst [vmem:[#allocation4 + $0x78] sm:$0xff] %v1867
          %1932 = vst [vmem:[#allocation4 + $0x80] sm:$0xff] %v1868
          %1933 = vst [vmem:[#allocation4 + $0x88] sm:$0xff] %v1869
          %1934 = vst [vmem:[#allocation4 + $0x90] sm:$0xff] %v1870
          %1935 = vst [vmem:[#allocation4 + $0x98] sm:$0xff] %v1871
          %1936 = vst [vmem:[#allocation4 + $0xa0] sm:$0xff] %v1872
          %1937 = vst [vmem:[#allocation4 + $0xa8] sm:$0xff] %v1873
          %1938 = vst [vmem:[#allocation4 + $0xb0] sm:$0xff] %v1874
          %1939 = vst [vmem:[#allocation4 + $0xb8] sm:$0xff] %v1875
          %1940 = vst [vmem:[#allocation4 + $0xc0] sm:$0xff] %v1876
          %1941 = vst [vmem:[#allocation4 + $0xc8] sm:$0xff] %v1877
          %1942 = vst [vmem:[#allocation4 + $0xd0] sm:$0xff] %v1878
          %1943 = vst [vmem:[#allocation4 + $0xd8] sm:$0xff] %v1879
          %1944 = vst [vmem:[#allocation4 + $0xe0] sm:$0xff] %v1880
          %1945 = vst [vmem:[#allocation4 + $0xe8] sm:$0xff] %v1881
          %1946 = vst [vmem:[#allocation4 + $0xf0] sm:$0xff] %v1882
          %1947 = vst [vmem:[#allocation4 + $0xf8] sm:$0xff] %v1883
          %1948 = vst [vmem:[#allocation4 + $0x100] sm:$0xff] %v1884
          %1949 = vst [vmem:[#allocation4 + $0x108] sm:$0xff] %v1885
          %1950 = vst [vmem:[#allocation4 + $0x110] sm:$0xff] %v1886
          %1951 = vst [vmem:[#allocation4 + $0x118] sm:$0xff] %v1887
          %1952 = vst [vmem:[#allocation4 + $0x120] sm:$0xff] %v1888
          %1953 = vst [vmem:[#allocation4 + $0x128] sm:$0xff] %v1889
          %1954 = vst [vmem:[#allocation4 + $0x130] sm:$0xff] %v1890
          %1955 = vst [vmem:[#allocation4 + $0x138] sm:$0xff] %v1891
          %1956 = vst [vmem:[#allocation4 + $0x140] sm:$0xff] %v1892
          %1957 = vst [vmem:[#allocation4 + $0x148] sm:$0xff] %v1893
          %1958 = vst [vmem:[#allocation4 + $0x150] sm:$0xff] %v1894
          %1959 = vst [vmem:[#allocation4 + $0x158] sm:$0xff] %v1895
          %1960 = vst [vmem:[#allocation4 + $0x160] sm:$0xff] %v1896
          %1961 = vst [vmem:[#allocation4 + $0x168] sm:$0xff] %v1897
          %1962 = vst [vmem:[#allocation4 + $0x170] sm:$0xff] %v1898
          %1963 = vst [vmem:[#allocation4 + $0x178] sm:$0xff] %v1899
          %1964 = vst [vmem:[#allocation4 + $0x180] sm:$0xff] %v1900
          %1965 = vst [vmem:[#allocation4 + $0x188] sm:$0xff] %v1901
          %1966 = vst [vmem:[#allocation4 + $0x190] sm:$0xff] %v1902
          %1967 = vst [vmem:[#allocation4 + $0x198] sm:$0xff] %v1903
          %1968 = vst [vmem:[#allocation4 + $0x1a0] sm:$0xff] %v1904
          %1969 = vst [vmem:[#allocation4 + $0x1a8] sm:$0xff] %v1905
          %1970 = vst [vmem:[#allocation4 + $0x1b0] sm:$0xff] %v1906
          %1971 = vst [vmem:[#allocation4 + $0x1b8] sm:$0xff] %v1907
          %1972 = vst [vmem:[#allocation4 + $0x1c0] sm:$0xff] %v1908
          %1973 = vst [vmem:[#allocation4 + $0x1c8] sm:$0xff] %v1909
          %1974 = vst [vmem:[#allocation4 + $0x1d0] sm:$0xff] %v1910
          %1975 = vst [vmem:[#allocation4 + $0x1d8] sm:$0xff] %v1911
          %1976 = vst [vmem:[#allocation4 + $0x1e0] sm:$0xff] %v1912
          %1977 = vst [vmem:[#allocation4 + $0x1e8] sm:$0xff] %v1913
          %1978 = vst [vmem:[#allocation4 + $0x1f0] sm:$0xff] %v1914
          %1979 = vst [vmem:[#allocation4 + $0x1f8] sm:$0xff] %v1915
          %v1980 = vld [vmem:[%s526] sm:$0xff]
          %1982 = vrot.lane.b32.xlu0 %v1980, 32
          %v1983 = vpop.permute.xlu0 %1982
          %1985 = vrot.lane.b32.xlu0 %v1980, 64
          %v1986 = vpop.permute.xlu0 %1985
          %1988 = vrot.lane.b32.xlu0 %v1980, 96
          %v1989 = vpop.permute.xlu0 %1988
          %v1991 = vsel %vm1561, %v1980, %v1983
          %v1992 = vsel %vm1594, %v1991, %v1986
          %v1993 = vsel %vm1627, %v1992, %v1989
          %v1994 = vld [vmem:[%s12] sm:$0xff]
          %v1995 = vld [vmem:[%s12 + $0x8] sm:$0xff]
          %v1996 = vld [vmem:[%s13] sm:$0xff]
          %v1997 = vld [vmem:[%s13 + $0x8] sm:$0xff]
          %v1998 = vmul.f32 %v1996, %v1993
          %v1999 = vmul.f32 %v1997, %v1993
          %v2000 = vadd.f32 %v1994, %v1998
          %v2001 = vadd.f32 %v1995, %v1999
          %2002 = vst [vmem:[#allocation6] sm:$0xff] %v2000
          %2003 = vst [vmem:[#allocation6 + $0x8] sm:$0xff] %v2001
        $region80: #{tpu_custom_call.1} parent=75 // pred_fallthru
          _
        %v2004 = vld [vmem:[%s517] sm:$0xf]
        %v2005 = vld [vmem:[#allocation2] sm:$0xff]
        %v2006 = vld [vmem:[#allocation2 + $0x8] sm:$0xff]
        %v2007 = vld [vmem:[#allocation2 + $0x10] sm:$0xff]
        %v2008 = vld [vmem:[#allocation2 + $0x18] sm:$0xff]
        %v2009 = vld [vmem:[#allocation2 + $0x20] sm:$0xff]
        %v2010 = vld [vmem:[#allocation2 + $0x28] sm:$0xff]
        %v2011 = vld [vmem:[#allocation2 + $0x30] sm:$0xff]
        %v2012 = vld [vmem:[#allocation2 + $0x38] sm:$0xff]
        %v2013 = vld [vmem:[#allocation2 + $0x40] sm:$0xff]
        %v2014 = vld [vmem:[#allocation2 + $0x48] sm:$0xff]
        %v2015 = vld [vmem:[#allocation2 + $0x50] sm:$0xff]
        %v2016 = vld [vmem:[#allocation2 + $0x58] sm:$0xff]
        %v2017 = vld [vmem:[#allocation2 + $0x60] sm:$0xff]
        %v2018 = vld [vmem:[#allocation2 + $0x68] sm:$0xff]
        %v2019 = vld [vmem:[#allocation2 + $0x70] sm:$0xff]
        %v2020 = vld [vmem:[#allocation2 + $0x78] sm:$0xff]
        %v2021 = vld [vmem:[#allocation2 + $0x80] sm:$0xff]
        %v2022 = vld [vmem:[#allocation2 + $0x88] sm:$0xff]
        %v2023 = vld [vmem:[#allocation2 + $0x90] sm:$0xff]
        %v2024 = vld [vmem:[#allocation2 + $0x98] sm:$0xff]
        %v2025 = vld [vmem:[#allocation2 + $0xa0] sm:$0xff]
        %v2026 = vld [vmem:[#allocation2 + $0xa8] sm:$0xff]
        %v2027 = vld [vmem:[#allocation2 + $0xb0] sm:$0xff]
        %v2028 = vld [vmem:[#allocation2 + $0xb8] sm:$0xff]
        %v2029 = vld [vmem:[#allocation2 + $0xc0] sm:$0xff]
        %v2030 = vld [vmem:[#allocation2 + $0xc8] sm:$0xff]
        %v2031 = vld [vmem:[#allocation2 + $0xd0] sm:$0xff]
        %v2032 = vld [vmem:[#allocation2 + $0xd8] sm:$0xff]
        %v2033 = vld [vmem:[#allocation2 + $0xe0] sm:$0xff]
        %v2034 = vld [vmem:[#allocation2 + $0xe8] sm:$0xff]
        %v2035 = vld [vmem:[#allocation2 + $0xf0] sm:$0xff]
        %v2036 = vld [vmem:[#allocation2 + $0xf8] sm:$0xff]
        %v2037 = vld [vmem:[#allocation3] sm:$0xff]
        %v2038 = vld [vmem:[#allocation3 + $0x8] sm:$0xff]
        %v2039 = vld [vmem:[#allocation3 + $0x10] sm:$0xff]
        %v2040 = vld [vmem:[#allocation3 + $0x18] sm:$0xff]
        %v2041 = vld [vmem:[#allocation3 + $0x20] sm:$0xff]
        %v2042 = vld [vmem:[#allocation3 + $0x28] sm:$0xff]
        %v2043 = vld [vmem:[#allocation3 + $0x30] sm:$0xff]
        %v2044 = vld [vmem:[#allocation3 + $0x38] sm:$0xff]
        %v2045 = vld [vmem:[#allocation3 + $0x40] sm:$0xff]
        %v2046 = vld [vmem:[#allocation3 + $0x48] sm:$0xff]
        %v2047 = vld [vmem:[#allocation3 + $0x50] sm:$0xff]
        %v2048 = vld [vmem:[#allocation3 + $0x58] sm:$0xff]
        %v2049 = vld [vmem:[#allocation3 + $0x60] sm:$0xff]
        %v2050 = vld [vmem:[#allocation3 + $0x68] sm:$0xff]
        %v2051 = vld [vmem:[#allocation3 + $0x70] sm:$0xff]
        %v2052 = vld [vmem:[#allocation3 + $0x78] sm:$0xff]
        %v2053 = vld [vmem:[#allocation3 + $0x80] sm:$0xff]
        %v2054 = vld [vmem:[#allocation3 + $0x88] sm:$0xff]
        %v2055 = vld [vmem:[#allocation3 + $0x90] sm:$0xff]
        %v2056 = vld [vmem:[#allocation3 + $0x98] sm:$0xff]
        %v2057 = vld [vmem:[#allocation3 + $0xa0] sm:$0xff]
        %v2058 = vld [vmem:[#allocation3 + $0xa8] sm:$0xff]
        %v2059 = vld [vmem:[#allocation3 + $0xb0] sm:$0xff]
        %v2060 = vld [vmem:[#allocation3 + $0xb8] sm:$0xff]
        %v2061 = vld [vmem:[#allocation3 + $0xc0] sm:$0xff]
        %v2062 = vld [vmem:[#allocation3 + $0xc8] sm:$0xff]
        %v2063 = vld [vmem:[#allocation3 + $0xd0] sm:$0xff]
        %v2064 = vld [vmem:[#allocation3 + $0xd8] sm:$0xff]
        %v2065 = vld [vmem:[#allocation3 + $0xe0] sm:$0xff]
        %v2066 = vld [vmem:[#allocation3 + $0xe8] sm:$0xff]
        %v2067 = vld [vmem:[#allocation3 + $0xf0] sm:$0xff]
        %v2068 = vld [vmem:[#allocation3 + $0xf8] sm:$0xff]
        %2070 = vset.pattern.permute.xlu0 0
        %2071 = vperm.xlu0 %2070, %v2037
        %v2072 = vpop.permute.xlu0 %2071
        %2075 = vset.pattern.permute.xlu0 0
        %2076 = vperm.xlu0 %2075, %v2038
        %v2077 = vpop.permute.xlu0 %2076
        %2080 = vset.pattern.permute.xlu0 0
        %2081 = vperm.xlu0 %2080, %v2039
        %v2082 = vpop.permute.xlu0 %2081
        %2085 = vset.pattern.permute.xlu0 0
        %2086 = vperm.xlu0 %2085, %v2040
        %v2087 = vpop.permute.xlu0 %2086
        %2090 = vset.pattern.permute.xlu0 0
        %2091 = vperm.xlu0 %2090, %v2041
        %v2092 = vpop.permute.xlu0 %2091
        %2095 = vset.pattern.permute.xlu0 0
        %2096 = vperm.xlu0 %2095, %v2042
        %v2097 = vpop.permute.xlu0 %2096
        %2100 = vset.pattern.permute.xlu0 0
        %2101 = vperm.xlu0 %2100, %v2043
        %v2102 = vpop.permute.xlu0 %2101
        %2105 = vset.pattern.permute.xlu0 0
        %2106 = vperm.xlu0 %2105, %v2044
        %v2107 = vpop.permute.xlu0 %2106
        %2110 = vset.pattern.permute.xlu0 0
        %2111 = vperm.xlu0 %2110, %v2045
        %v2112 = vpop.permute.xlu0 %2111
        %2115 = vset.pattern.permute.xlu0 0
        %2116 = vperm.xlu0 %2115, %v2046
        %v2117 = vpop.permute.xlu0 %2116
        %2120 = vset.pattern.permute.xlu0 0
        %2121 = vperm.xlu0 %2120, %v2047
        %v2122 = vpop.permute.xlu0 %2121
        %2125 = vset.pattern.permute.xlu0 0
        %2126 = vperm.xlu0 %2125, %v2048
        %v2127 = vpop.permute.xlu0 %2126
        %2130 = vset.pattern.permute.xlu0 0
        %2131 = vperm.xlu0 %2130, %v2049
        %v2132 = vpop.permute.xlu0 %2131
        %2135 = vset.pattern.permute.xlu0 0
        %2136 = vperm.xlu0 %2135, %v2050
        %v2137 = vpop.permute.xlu0 %2136
        %2140 = vset.pattern.permute.xlu0 0
        %2141 = vperm.xlu0 %2140, %v2051
        %v2142 = vpop.permute.xlu0 %2141
        %2145 = vset.pattern.permute.xlu0 0
        %2146 = vperm.xlu0 %2145, %v2052
        %v2147 = vpop.permute.xlu0 %2146
        %2150 = vset.pattern.permute.xlu0 0
        %2151 = vperm.xlu0 %2150, %v2053
        %v2152 = vpop.permute.xlu0 %2151
        %2155 = vset.pattern.permute.xlu0 0
        %2156 = vperm.xlu0 %2155, %v2054
        %v2157 = vpop.permute.xlu0 %2156
        %2160 = vset.pattern.permute.xlu0 0
        %2161 = vperm.xlu0 %2160, %v2055
        %v2162 = vpop.permute.xlu0 %2161
        %2165 = vset.pattern.permute.xlu0 0
        %2166 = vperm.xlu0 %2165, %v2056
        %v2167 = vpop.permute.xlu0 %2166
        %2170 = vset.pattern.permute.xlu0 0
        %2171 = vperm.xlu0 %2170, %v2057
        %v2172 = vpop.permute.xlu0 %2171
        %2175 = vset.pattern.permute.xlu0 0
        %2176 = vperm.xlu0 %2175, %v2058
        %v2177 = vpop.permute.xlu0 %2176
        %2180 = vset.pattern.permute.xlu0 0
        %2181 = vperm.xlu0 %2180, %v2059
        %v2182 = vpop.permute.xlu0 %2181
        %2185 = vset.pattern.permute.xlu0 0
        %2186 = vperm.xlu0 %2185, %v2060
        %v2187 = vpop.permute.xlu0 %2186
        %2190 = vset.pattern.permute.xlu0 0
        %2191 = vperm.xlu0 %2190, %v2061
        %v2192 = vpop.permute.xlu0 %2191
        %2195 = vset.pattern.permute.xlu0 0
        %2196 = vperm.xlu0 %2195, %v2062
        %v2197 = vpop.permute.xlu0 %2196
        %2200 = vset.pattern.permute.xlu0 0
        %2201 = vperm.xlu0 %2200, %v2063
        %v2202 = vpop.permute.xlu0 %2201
        %2205 = vset.pattern.permute.xlu0 0
        %2206 = vperm.xlu0 %2205, %v2064
        %v2207 = vpop.permute.xlu0 %2206
        %2210 = vset.pattern.permute.xlu0 0
        %2211 = vperm.xlu0 %2210, %v2065
        %v2212 = vpop.permute.xlu0 %2211
        %2215 = vset.pattern.permute.xlu0 0
        %2216 = vperm.xlu0 %2215, %v2066
        %v2217 = vpop.permute.xlu0 %2216
        %2220 = vset.pattern.permute.xlu0 0
        %2221 = vperm.xlu0 %2220, %v2067
        %v2222 = vpop.permute.xlu0 %2221
        %2225 = vset.pattern.permute.xlu0 0
        %2226 = vperm.xlu0 %2225, %v2068
        %v2227 = vpop.permute.xlu0 %2226
        %vm2229 = vcmask 31744
        %v2231 = vsel %vm2229, %v2005, 0
        %v2234 = vsel %vm2229, %v2006, 0
        %v2237 = vsel %vm2229, %v2007, 0
        %v2240 = vsel %vm2229, %v2008, 0
        %v2243 = vsel %vm2229, %v2009, 0
        %v2246 = vsel %vm2229, %v2010, 0
        %v2249 = vsel %vm2229, %v2011, 0
        %v2252 = vsel %vm2229, %v2012, 0
        %v2255 = vsel %vm2229, %v2013, 0
        %v2258 = vsel %vm2229, %v2014, 0
        %v2261 = vsel %vm2229, %v2015, 0
        %v2264 = vsel %vm2229, %v2016, 0
        %v2267 = vsel %vm2229, %v2017, 0
        %v2270 = vsel %vm2229, %v2018, 0
        %v2273 = vsel %vm2229, %v2019, 0
        %v2276 = vsel %vm2229, %v2020, 0
        %v2279 = vsel %vm2229, %v2021, 0
        %v2282 = vsel %vm2229, %v2022, 0
        %v2285 = vsel %vm2229, %v2023, 0
        %v2288 = vsel %vm2229, %v2024, 0
        %v2291 = vsel %vm2229, %v2025, 0
        %v2294 = vsel %vm2229, %v2026, 0
        %v2297 = vsel %vm2229, %v2027, 0
        %v2300 = vsel %vm2229, %v2028, 0
        %v2303 = vsel %vm2229, %v2029, 0
        %v2306 = vsel %vm2229, %v2030, 0
        %v2309 = vsel %vm2229, %v2031, 0
        %v2312 = vsel %vm2229, %v2032, 0
        %v2315 = vsel %vm2229, %v2033, 0
        %v2318 = vsel %vm2229, %v2034, 0
        %v2321 = vsel %vm2229, %v2035, 0
        %v2324 = vsel %vm2229, %v2036, 0
        %vm2326 = vcmask 1043456
        %v2328 = vsel %vm2326, %v2004, 0
        %2330 = vmatprep.subr.mxu0 0.0
        %2331 = vmatpush1.msra.mxu0 %v2328
        %2332 = vmatprep.subr.mxu0 0.0
        %2333 = vmatpush1.msra.mxu0 0.0
        %2334 = vmatprep.subr.mxu0 0.0
        %2335 = vmatpush1.msra.mxu0 0.0
        %2336 = vmatprep.subr.mxu0 0.0
        %2337 = vmatpush1.msra.mxu0 0.0
        %2338 = vmatprep.subr.mxu0 0.0
        %2339 = vmatpush1.msra.mxu0 0.0
        %2340 = vmatprep.subr.mxu0 0.0
        %2341 = vmatpush1.msra.mxu0 0.0
        %2342 = vmatprep.subr.mxu0 0.0
        %2343 = vmatpush1.msra.mxu0 0.0
        %2344 = vmatprep.subr.mxu0 0.0
        %2345 = vmatpush1.msra.mxu0 0.0
        %2346 = vmatprep.subr.mxu0 0.0
        %2347 = vmatpush1.msra.mxu0 0.0
        %2348 = vmatprep.subr.mxu0 0.0
        %2349 = vmatpush1.msra.mxu0 0.0
        %2350 = vmatprep.subr.mxu0 0.0
        %2351 = vmatpush1.msra.mxu0 0.0
        %2352 = vmatprep.subr.mxu0 0.0
        %2353 = vmatpush1.msra.mxu0 0.0
        %2354 = vmatprep.subr.mxu0 0.0
        %2355 = vmatpush1.msra.mxu0 0.0
        %2356 = vmatprep.subr.mxu0 0.0
        %2357 = vmatpush1.msra.mxu0 0.0
        %2358 = vmatprep.subr.mxu0 0.0
        %2359 = vmatpush1.msra.mxu0 0.0
        %2360 = vmatprep.subr.mxu0 0.0
        %2361 = vmatpush1.msra.mxu0 0.0
        %2362 = vmatprep.subr.mxu0 0.0
        %2363 = vmatpush1.msra.mxu0 0.0
        %2364 = vmatprep.subr.mxu0 0.0
        %2365 = vmatpush1.msra.mxu0 0.0
        %2366 = vmatprep.subr.mxu0 0.0
        %2367 = vmatpush1.msra.mxu0 0.0
        %2368 = vmatprep.subr.mxu0 0.0
        %2369 = vmatpush1.msra.mxu0 0.0
        %2370 = vmatprep.subr.mxu0 0.0
        %2371 = vmatpush1.msra.mxu0 0.0
        %2372 = vmatprep.subr.mxu0 0.0
        %2373 = vmatpush1.msra.mxu0 0.0
        %2374 = vmatprep.subr.mxu0 0.0
        %2375 = vmatpush1.msra.mxu0 0.0
        %2376 = vmatprep.subr.mxu0 0.0
        %2377 = vmatpush1.msra.mxu0 0.0
        %2378 = vmatprep.subr.mxu0 0.0
        %2379 = vmatpush1.msra.mxu0 0.0
        %2380 = vmatprep.subr.mxu0 0.0
        %2381 = vmatpush1.msra.mxu0 0.0
        %2382 = vmatprep.subr.mxu0 0.0
        %2383 = vmatpush1.msra.mxu0 0.0
        %2384 = vmatprep.subr.mxu0 0.0
        %2385 = vmatpush1.msra.mxu0 0.0
        %2386 = vmatprep.subr.mxu0 0.0
        %2387 = vmatpush1.msra.mxu0 0.0
        %2388 = vmatprep.subr.mxu0 0.0
        %2389 = vmatpush1.msra.mxu0 0.0
        %2390 = vmatprep.subr.mxu0 0.0
        %2391 = vmatpush1.msra.mxu0 0.0
        %2392 = vmatprep.subr.mxu0 0.0
        %2393 = vmatpush1.msra.mxu0 0.0
        %2394 = vmatprep.mubr.f32.mxu0 0.0
        %2395 = vmatmul.mubr.f32.gmra.mrb[0].mxu0 %v2231
        %v2396 = vpop.f32.mrb[0].mxu0
        %v2397 = vadd.f32 %v2072, %v2396
        %v2398 = vpop.f32.mrb[0].mxu0
        %2399 = vmatprep.mubr.f32.mxu0 0.0
        %2400 = vmatmul.mubr.f32.gmra.mrb[0].mxu0 %v2234
        %v2401 = vpop.f32.mrb[0].mxu0
        %v2402 = vadd.f32 %v2077, %v2401
        %v2403 = vpop.f32.mrb[0].mxu0
        %2404 = vmatprep.mubr.f32.mxu0 0.0
        %2405 = vmatmul.mubr.f32.gmra.mrb[0].mxu0 %v2237
        %v2406 = vpop.f32.mrb[0].mxu0
        %v2407 = vadd.f32 %v2082, %v2406
        %v2408 = vpop.f32.mrb[0].mxu0
        %2409 = vmatprep.mubr.f32.mxu0 0.0
        %2410 = vmatmul.mubr.f32.gmra.mrb[0].mxu0 %v2240
        %v2411 = vpop.f32.mrb[0].mxu0
        %v2412 = vadd.f32 %v2087, %v2411
        %v2413 = vpop.f32.mrb[0].mxu0
        %2414 = vmatprep.mubr.f32.mxu0 0.0
        %2415 = vmatmul.mubr.f32.gmra.mrb[0].mxu0 %v2243
        %v2416 = vpop.f32.mrb[0].mxu0
        %v2417 = vadd.f32 %v2092, %v2416
        %v2418 = vpop.f32.mrb[0].mxu0
        %2419 = vmatprep.mubr.f32.mxu0 0.0
        %2420 = vmatmul.mubr.f32.gmra.mrb[0].mxu0 %v2246
        %v2421 = vpop.f32.mrb[0].mxu0
        %v2422 = vadd.f32 %v2097, %v2421
        %v2423 = vpop.f32.mrb[0].mxu0
        %2424 = vmatprep.mubr.f32.mxu0 0.0
        %2425 = vmatmul.mubr.f32.gmra.mrb[0].mxu0 %v2249
        %v2426 = vpop.f32.mrb[0].mxu0
        %v2427 = vadd.f32 %v2102, %v2426
        %v2428 = vpop.f32.mrb[0].mxu0
        %2429 = vmatprep.mubr.f32.mxu0 0.0
        %2430 = vmatmul.mubr.f32.gmra.mrb[0].mxu0 %v2252
        %v2431 = vpop.f32.mrb[0].mxu0
        %v2432 = vadd.f32 %v2107, %v2431
        %v2433 = vpop.f32.mrb[0].mxu0
        %2434 = vmatprep.mubr.f32.mxu0 0.0
        %2435 = vmatmul.mubr.f32.gmra.mrb[0].mxu0 %v2255
        %v2436 = vpop.f32.mrb[0].mxu0
        %v2437 = vadd.f32 %v2112, %v2436
        %v2438 = vpop.f32.mrb[0].mxu0
        %2439 = vmatprep.mubr.f32.mxu0 0.0
        %2440 = vmatmul.mubr.f32.gmra.mrb[0].mxu0 %v2258
        %v2441 = vpop.f32.mrb[0].mxu0
        %v2442 = vadd.f32 %v2117, %v2441
        %v2443 = vpop.f32.mrb[0].mxu0
        %2444 = vmatprep.mubr.f32.mxu0 0.0
        %2445 = vmatmul.mubr.f32.gmra.mrb[0].mxu0 %v2261
        %v2446 = vpop.f32.mrb[0].mxu0
        %v2447 = vadd.f32 %v2122, %v2446
        %v2448 = vpop.f32.mrb[0].mxu0
        %2449 = vmatprep.mubr.f32.mxu0 0.0
        %2450 = vmatmul.mubr.f32.gmra.mrb[0].mxu0 %v2264
        %v2451 = vpop.f32.mrb[0].mxu0
        %v2452 = vadd.f32 %v2127, %v2451
        %v2453 = vpop.f32.mrb[0].mxu0
        %2454 = vmatprep.mubr.f32.mxu0 0.0
        %2455 = vmatmul.mubr.f32.gmra.mrb[0].mxu0 %v2267
        %v2456 = vpop.f32.mrb[0].mxu0
        %v2457 = vadd.f32 %v2132, %v2456
        %v2458 = vpop.f32.mrb[0].mxu0
        %2459 = vmatprep.mubr.f32.mxu0 0.0
        %2460 = vmatmul.mubr.f32.gmra.mrb[0].mxu0 %v2270
        %v2461 = vpop.f32.mrb[0].mxu0
        %v2462 = vadd.f32 %v2137, %v2461
        %v2463 = vpop.f32.mrb[0].mxu0
        %2464 = vmatprep.mubr.f32.mxu0 0.0
        %2465 = vmatmul.mubr.f32.gmra.mrb[0].mxu0 %v2273
        %v2466 = vpop.f32.mrb[0].mxu0
        %v2467 = vadd.f32 %v2142, %v2466
        %v2468 = vpop.f32.mrb[0].mxu0
        %2469 = vmatprep.mubr.f32.mxu0 0.0
        %2470 = vmatmul.mubr.f32.gmra.mrb[0].mxu0 %v2276
        %v2471 = vpop.f32.mrb[0].mxu0
        %v2472 = vadd.f32 %v2147, %v2471
        %v2473 = vpop.f32.mrb[0].mxu0
        %2474 = vmatprep.mubr.f32.mxu0 0.0
        %2475 = vmatmul.mubr.f32.gmra.mrb[0].mxu0 %v2279
        %v2476 = vpop.f32.mrb[0].mxu0
        %v2477 = vadd.f32 %v2152, %v2476
        %v2478 = vpop.f32.mrb[0].mxu0
        %2479 = vmatprep.mubr.f32.mxu0 0.0
        %2480 = vmatmul.mubr.f32.gmra.mrb[0].mxu0 %v2282
        %v2481 = vpop.f32.mrb[0].mxu0
        %v2482 = vadd.f32 %v2157, %v2481
        %v2483 = vpop.f32.mrb[0].mxu0
        %2484 = vmatprep.mubr.f32.mxu0 0.0
        %2485 = vmatmul.mubr.f32.gmra.mrb[0].mxu0 %v2285
        %v2486 = vpop.f32.mrb[0].mxu0
        %v2487 = vadd.f32 %v2162, %v2486
        %v2488 = vpop.f32.mrb[0].mxu0
        %2489 = vmatprep.mubr.f32.mxu0 0.0
        %2490 = vmatmul.mubr.f32.gmra.mrb[0].mxu0 %v2288
        %v2491 = vpop.f32.mrb[0].mxu0
        %v2492 = vadd.f32 %v2167, %v2491
        %v2493 = vpop.f32.mrb[0].mxu0
        %2494 = vmatprep.mubr.f32.mxu0 0.0
        %2495 = vmatmul.mubr.f32.gmra.mrb[0].mxu0 %v2291
        %v2496 = vpop.f32.mrb[0].mxu0
        %v2497 = vadd.f32 %v2172, %v2496
        %v2498 = vpop.f32.mrb[0].mxu0
        %2499 = vmatprep.mubr.f32.mxu0 0.0
        %2500 = vmatmul.mubr.f32.gmra.mrb[0].mxu0 %v2294
        %v2501 = vpop.f32.mrb[0].mxu0
        %v2502 = vadd.f32 %v2177, %v2501
        %v2503 = vpop.f32.mrb[0].mxu0
        %2504 = vmatprep.mubr.f32.mxu0 0.0
        %2505 = vmatmul.mubr.f32.gmra.mrb[0].mxu0 %v2297
        %v2506 = vpop.f32.mrb[0].mxu0
        %v2507 = vadd.f32 %v2182, %v2506
        %v2508 = vpop.f32.mrb[0].mxu0
        %2509 = vmatprep.mubr.f32.mxu0 0.0
        %2510 = vmatmul.mubr.f32.gmra.mrb[0].mxu0 %v2300
        %v2511 = vpop.f32.mrb[0].mxu0
        %v2512 = vadd.f32 %v2187, %v2511
        %v2513 = vpop.f32.mrb[0].mxu0
        %2514 = vmatprep.mubr.f32.mxu0 0.0
        %2515 = vmatmul.mubr.f32.gmra.mrb[0].mxu0 %v2303
        %v2516 = vpop.f32.mrb[0].mxu0
        %v2517 = vadd.f32 %v2192, %v2516
        %v2518 = vpop.f32.mrb[0].mxu0
        %2519 = vmatprep.mubr.f32.mxu0 0.0
        %2520 = vmatmul.mubr.f32.gmra.mrb[0].mxu0 %v2306
        %v2521 = vpop.f32.mrb[0].mxu0
        %v2522 = vadd.f32 %v2197, %v2521
        %v2523 = vpop.f32.mrb[0].mxu0
        %2524 = vmatprep.mubr.f32.mxu0 0.0
        %2525 = vmatmul.mubr.f32.gmra.mrb[0].mxu0 %v2309
        %v2526 = vpop.f32.mrb[0].mxu0
        %v2527 = vadd.f32 %v2202, %v2526
        %v2528 = vpop.f32.mrb[0].mxu0
        %2529 = vmatprep.mubr.f32.mxu0 0.0
        %2530 = vmatmul.mubr.f32.gmra.mrb[0].mxu0 %v2312
        %v2531 = vpop.f32.mrb[0].mxu0
        %v2532 = vadd.f32 %v2207, %v2531
        %v2533 = vpop.f32.mrb[0].mxu0
        %2534 = vmatprep.mubr.f32.mxu0 0.0
        %2535 = vmatmul.mubr.f32.gmra.mrb[0].mxu0 %v2315
        %v2536 = vpop.f32.mrb[0].mxu0
        %v2537 = vadd.f32 %v2212, %v2536
        %v2538 = vpop.f32.mrb[0].mxu0
        %2539 = vmatprep.mubr.f32.mxu0 0.0
        %2540 = vmatmul.mubr.f32.gmra.mrb[0].mxu0 %v2318
        %v2541 = vpop.f32.mrb[0].mxu0
        %v2542 = vadd.f32 %v2217, %v2541
        %v2543 = vpop.f32.mrb[0].mxu0
        %2544 = vmatprep.mubr.f32.mxu0 0.0
        %2545 = vmatmul.mubr.f32.gmra.mrb[0].mxu0 %v2321
        %v2546 = vpop.f32.mrb[0].mxu0
        %v2547 = vadd.f32 %v2222, %v2546
        %v2548 = vpop.f32.mrb[0].mxu0
        %2549 = vmatprep.mubr.f32.mxu0 0.0
        %2550 = vmatmul.mubr.f32.gmra.mrb[0].mxu0 %v2324
        %v2551 = vpop.f32.mrb[0].mxu0
        %v2552 = vadd.f32 %v2227, %v2551
        %v2553 = vpop.f32.mrb[0].mxu0
        %2554 = vdwg.mxu0
        %v2555 = vtanh.pop %v2397
        %v2556 = vtanh.pop %v2402
        %v2557 = vtanh.pop %v2407
        %v2558 = vtanh.pop %v2412
        %v2559 = vtanh.pop %v2417
        %v2560 = vtanh.pop %v2422
        %v2561 = vtanh.pop %v2427
        %v2562 = vtanh.pop %v2432
        %v2563 = vtanh.pop %v2437
        %v2564 = vtanh.pop %v2442
        %v2565 = vtanh.pop %v2447
        %v2566 = vtanh.pop %v2452
        %v2567 = vtanh.pop %v2457
        %v2568 = vtanh.pop %v2462
        %v2569 = vtanh.pop %v2467
        %v2570 = vtanh.pop %v2472
        %v2571 = vtanh.pop %v2477
        %v2572 = vtanh.pop %v2482
        %v2573 = vtanh.pop %v2487
        %v2574 = vtanh.pop %v2492
        %v2575 = vtanh.pop %v2497
        %v2576 = vtanh.pop %v2502
        %v2577 = vtanh.pop %v2507
        %v2578 = vtanh.pop %v2512
        %v2579 = vtanh.pop %v2517
        %v2580 = vtanh.pop %v2522
        %v2581 = vtanh.pop %v2527
        %v2582 = vtanh.pop %v2532
        %v2583 = vtanh.pop %v2537
        %v2584 = vtanh.pop %v2542
        %v2585 = vtanh.pop %v2547
        %v2586 = vtanh.pop %v2552
        %v2587 = vld [vmem:[#allocation4] sm:$0xff]
        %v2588 = vld [vmem:[#allocation4 + $0x8] sm:$0xff]
        %v2589 = vld [vmem:[#allocation4 + $0x10] sm:$0xff]
        %v2590 = vld [vmem:[#allocation4 + $0x18] sm:$0xff]
        %v2591 = vld [vmem:[#allocation4 + $0x20] sm:$0xff]
        %v2592 = vld [vmem:[#allocation4 + $0x28] sm:$0xff]
        %v2593 = vld [vmem:[#allocation4 + $0x30] sm:$0xff]
        %v2594 = vld [vmem:[#allocation4 + $0x38] sm:$0xff]
        %v2595 = vld [vmem:[#allocation4 + $0x40] sm:$0xff]
        %v2596 = vld [vmem:[#allocation4 + $0x48] sm:$0xff]
        %v2597 = vld [vmem:[#allocation4 + $0x50] sm:$0xff]
        %v2598 = vld [vmem:[#allocation4 + $0x58] sm:$0xff]
        %v2599 = vld [vmem:[#allocation4 + $0x60] sm:$0xff]
        %v2600 = vld [vmem:[#allocation4 + $0x68] sm:$0xff]
        %v2601 = vld [vmem:[#allocation4 + $0x70] sm:$0xff]
        %v2602 = vld [vmem:[#allocation4 + $0x78] sm:$0xff]
        %v2603 = vld [vmem:[#allocation4 + $0x80] sm:$0xff]
        %v2604 = vld [vmem:[#allocation4 + $0x88] sm:$0xff]
        %v2605 = vld [vmem:[#allocation4 + $0x90] sm:$0xff]
        %v2606 = vld [vmem:[#allocation4 + $0x98] sm:$0xff]
        %v2607 = vld [vmem:[#allocation4 + $0xa0] sm:$0xff]
        %v2608 = vld [vmem:[#allocation4 + $0xa8] sm:$0xff]
        %v2609 = vld [vmem:[#allocation4 + $0xb0] sm:$0xff]
        %v2610 = vld [vmem:[#allocation4 + $0xb8] sm:$0xff]
        %v2611 = vld [vmem:[#allocation4 + $0xc0] sm:$0xff]
        %v2612 = vld [vmem:[#allocation4 + $0xc8] sm:$0xff]
        %v2613 = vld [vmem:[#allocation4 + $0xd0] sm:$0xff]
        %v2614 = vld [vmem:[#allocation4 + $0xd8] sm:$0xff]
        %v2615 = vld [vmem:[#allocation4 + $0xe0] sm:$0xff]
        %v2616 = vld [vmem:[#allocation4 + $0xe8] sm:$0xff]
        %v2617 = vld [vmem:[#allocation4 + $0xf0] sm:$0xff]
        %v2618 = vld [vmem:[#allocation4 + $0xf8] sm:$0xff]
        %v2619 = vld [vmem:[#allocation4 + $0x100] sm:$0xff]
        %v2620 = vld [vmem:[#allocation4 + $0x108] sm:$0xff]
        %v2621 = vld [vmem:[#allocation4 + $0x110] sm:$0xff]
        %v2622 = vld [vmem:[#allocation4 + $0x118] sm:$0xff]
        %v2623 = vld [vmem:[#allocation4 + $0x120] sm:$0xff]
        %v2624 = vld [vmem:[#allocation4 + $0x128] sm:$0xff]
        %v2625 = vld [vmem:[#allocation4 + $0x130] sm:$0xff]
        %v2626 = vld [vmem:[#allocation4 + $0x138] sm:$0xff]
        %v2627 = vld [vmem:[#allocation4 + $0x140] sm:$0xff]
        %v2628 = vld [vmem:[#allocation4 + $0x148] sm:$0xff]
        %v2629 = vld [vmem:[#allocation4 + $0x150] sm:$0xff]
        %v2630 = vld [vmem:[#allocation4 + $0x158] sm:$0xff]
        %v2631 = vld [vmem:[#allocation4 + $0x160] sm:$0xff]
        %v2632 = vld [vmem:[#allocation4 + $0x168] sm:$0xff]
        %v2633 = vld [vmem:[#allocation4 + $0x170] sm:$0xff]
        %v2634 = vld [vmem:[#allocation4 + $0x178] sm:$0xff]
        %v2635 = vld [vmem:[#allocation4 + $0x180] sm:$0xff]
        %v2636 = vld [vmem:[#allocation4 + $0x188] sm:$0xff]
        %v2637 = vld [vmem:[#allocation4 + $0x190] sm:$0xff]
        %v2638 = vld [vmem:[#allocation4 + $0x198] sm:$0xff]
        %v2639 = vld [vmem:[#allocation4 + $0x1a0] sm:$0xff]
        %v2640 = vld [vmem:[#allocation4 + $0x1a8] sm:$0xff]
        %v2641 = vld [vmem:[#allocation4 + $0x1b0] sm:$0xff]
        %v2642 = vld [vmem:[#allocation4 + $0x1b8] sm:$0xff]
        %v2643 = vld [vmem:[#allocation4 + $0x1c0] sm:$0xff]
        %v2644 = vld [vmem:[#allocation4 + $0x1c8] sm:$0xff]
        %v2645 = vld [vmem:[#allocation4 + $0x1d0] sm:$0xff]
        %v2646 = vld [vmem:[#allocation4 + $0x1d8] sm:$0xff]
        %v2647 = vld [vmem:[#allocation4 + $0x1e0] sm:$0xff]
        %v2648 = vld [vmem:[#allocation4 + $0x1e8] sm:$0xff]
        %v2649 = vld [vmem:[#allocation4 + $0x1f0] sm:$0xff]
        %v2650 = vld [vmem:[#allocation4 + $0x1f8] sm:$0xff]
        %v2651 = vld [vmem:[#allocation5] sm:$0xff]
        %v2652 = vld [vmem:[#allocation5 + $0x8] sm:$0xff]
        %v2653 = vld [vmem:[#allocation5 + $0x10] sm:$0xff]
        %v2654 = vld [vmem:[#allocation5 + $0x18] sm:$0xff]
        %v2655 = vld [vmem:[#allocation5 + $0x20] sm:$0xff]
        %v2656 = vld [vmem:[#allocation5 + $0x28] sm:$0xff]
        %v2657 = vld [vmem:[#allocation5 + $0x30] sm:$0xff]
        %v2658 = vld [vmem:[#allocation5 + $0x38] sm:$0xff]
        %v2659 = vld [vmem:[#allocation5 + $0x40] sm:$0xff]
        %v2660 = vld [vmem:[#allocation5 + $0x48] sm:$0xff]
        %v2661 = vld [vmem:[#allocation5 + $0x50] sm:$0xff]
        %v2662 = vld [vmem:[#allocation5 + $0x58] sm:$0xff]
        %v2663 = vld [vmem:[#allocation5 + $0x60] sm:$0xff]
        %v2664 = vld [vmem:[#allocation5 + $0x68] sm:$0xff]
        %v2665 = vld [vmem:[#allocation5 + $0x70] sm:$0xff]
        %v2666 = vld [vmem:[#allocation5 + $0x78] sm:$0xff]
        %v2667 = vld [vmem:[#allocation5 + $0x80] sm:$0xff]
        %v2668 = vld [vmem:[#allocation5 + $0x88] sm:$0xff]
        %v2669 = vld [vmem:[#allocation5 + $0x90] sm:$0xff]
        %v2670 = vld [vmem:[#allocation5 + $0x98] sm:$0xff]
        %v2671 = vld [vmem:[#allocation5 + $0xa0] sm:$0xff]
        %v2672 = vld [vmem:[#allocation5 + $0xa8] sm:$0xff]
        %v2673 = vld [vmem:[#allocation5 + $0xb0] sm:$0xff]
        %v2674 = vld [vmem:[#allocation5 + $0xb8] sm:$0xff]
        %v2675 = vld [vmem:[#allocation5 + $0xc0] sm:$0xff]
        %v2676 = vld [vmem:[#allocation5 + $0xc8] sm:$0xff]
        %v2677 = vld [vmem:[#allocation5 + $0xd0] sm:$0xff]
        %v2678 = vld [vmem:[#allocation5 + $0xd8] sm:$0xff]
        %v2679 = vld [vmem:[#allocation5 + $0xe0] sm:$0xff]
        %v2680 = vld [vmem:[#allocation5 + $0xe8] sm:$0xff]
        %v2681 = vld [vmem:[#allocation5 + $0xf0] sm:$0xff]
        %v2682 = vld [vmem:[#allocation5 + $0xf8] sm:$0xff]
        %2684 = vset.pattern.permute.xlu0 0
        %2685 = vperm.xlu0 %2684, %v2651
        %v2686 = vpop.permute.xlu0 %2685
        %2689 = vset.pattern.permute.xlu0 0
        %2690 = vperm.xlu0 %2689, %v2652
        %v2691 = vpop.permute.xlu0 %2690
        %2694 = vset.pattern.permute.xlu0 0
        %2695 = vperm.xlu0 %2694, %v2653
        %v2696 = vpop.permute.xlu0 %2695
        %2699 = vset.pattern.permute.xlu0 0
        %2700 = vperm.xlu0 %2699, %v2654
        %v2701 = vpop.permute.xlu0 %2700
        %2704 = vset.pattern.permute.xlu0 0
        %2705 = vperm.xlu0 %2704, %v2655
        %v2706 = vpop.permute.xlu0 %2705
        %2709 = vset.pattern.permute.xlu0 0
        %2710 = vperm.xlu0 %2709, %v2656
        %v2711 = vpop.permute.xlu0 %2710
        %2714 = vset.pattern.permute.xlu0 0
        %2715 = vperm.xlu0 %2714, %v2657
        %v2716 = vpop.permute.xlu0 %2715
        %2719 = vset.pattern.permute.xlu0 0
        %2720 = vperm.xlu0 %2719, %v2658
        %v2721 = vpop.permute.xlu0 %2720
        %2724 = vset.pattern.permute.xlu0 0
        %2725 = vperm.xlu0 %2724, %v2659
        %v2726 = vpop.permute.xlu0 %2725
        %2729 = vset.pattern.permute.xlu0 0
        %2730 = vperm.xlu0 %2729, %v2660
        %v2731 = vpop.permute.xlu0 %2730
        %2734 = vset.pattern.permute.xlu0 0
        %2735 = vperm.xlu0 %2734, %v2661
        %v2736 = vpop.permute.xlu0 %2735
        %2739 = vset.pattern.permute.xlu0 0
        %2740 = vperm.xlu0 %2739, %v2662
        %v2741 = vpop.permute.xlu0 %2740
        %2744 = vset.pattern.permute.xlu0 0
        %2745 = vperm.xlu0 %2744, %v2663
        %v2746 = vpop.permute.xlu0 %2745
        %2749 = vset.pattern.permute.xlu0 0
        %2750 = vperm.xlu0 %2749, %v2664
        %v2751 = vpop.permute.xlu0 %2750
        %2754 = vset.pattern.permute.xlu0 0
        %2755 = vperm.xlu0 %2754, %v2665
        %v2756 = vpop.permute.xlu0 %2755
        %2759 = vset.pattern.permute.xlu0 0
        %2760 = vperm.xlu0 %2759, %v2666
        %v2761 = vpop.permute.xlu0 %2760
        %2764 = vset.pattern.permute.xlu0 0
        %2765 = vperm.xlu0 %2764, %v2667
        %v2766 = vpop.permute.xlu0 %2765
        %2769 = vset.pattern.permute.xlu0 0
        %2770 = vperm.xlu0 %2769, %v2668
        %v2771 = vpop.permute.xlu0 %2770
        %2774 = vset.pattern.permute.xlu0 0
        %2775 = vperm.xlu0 %2774, %v2669
        %v2776 = vpop.permute.xlu0 %2775
        %2779 = vset.pattern.permute.xlu0 0
        %2780 = vperm.xlu0 %2779, %v2670
        %v2781 = vpop.permute.xlu0 %2780
        %2784 = vset.pattern.permute.xlu0 0
        %2785 = vperm.xlu0 %2784, %v2671
        %v2786 = vpop.permute.xlu0 %2785
        %2789 = vset.pattern.permute.xlu0 0
        %2790 = vperm.xlu0 %2789, %v2672
        %v2791 = vpop.permute.xlu0 %2790
        %2794 = vset.pattern.permute.xlu0 0
        %2795 = vperm.xlu0 %2794, %v2673
        %v2796 = vpop.permute.xlu0 %2795
        %2799 = vset.pattern.permute.xlu0 0
        %2800 = vperm.xlu0 %2799, %v2674
        %v2801 = vpop.permute.xlu0 %2800
        %2804 = vset.pattern.permute.xlu0 0
        %2805 = vperm.xlu0 %2804, %v2675
        %v2806 = vpop.permute.xlu0 %2805
        %2809 = vset.pattern.permute.xlu0 0
        %2810 = vperm.xlu0 %2809, %v2676
        %v2811 = vpop.permute.xlu0 %2810
        %2814 = vset.pattern.permute.xlu0 0
        %2815 = vperm.xlu0 %2814, %v2677
        %v2816 = vpop.permute.xlu0 %2815
        %2819 = vset.pattern.permute.xlu0 0
        %2820 = vperm.xlu0 %2819, %v2678
        %v2821 = vpop.permute.xlu0 %2820
        %2824 = vset.pattern.permute.xlu0 0
        %2825 = vperm.xlu0 %2824, %v2679
        %v2826 = vpop.permute.xlu0 %2825
        %2829 = vset.pattern.permute.xlu0 0
        %2830 = vperm.xlu0 %2829, %v2680
        %v2831 = vpop.permute.xlu0 %2830
        %2834 = vset.pattern.permute.xlu0 0
        %2835 = vperm.xlu0 %2834, %v2681
        %v2836 = vpop.permute.xlu0 %2835
        %2839 = vset.pattern.permute.xlu0 0
        %2840 = vperm.xlu0 %2839, %v2682
        %v2841 = vpop.permute.xlu0 %2840
        %2843 = vmatprep.subr.mxu0 0.0
        %2844 = vmatpush1.msra.mxu0 %v2555
        %2845 = vmatprep.subr.mxu0 0.0
        %2846 = vmatpush1.msra.mxu0 %v2556
        %2847 = vmatprep.subr.mxu0 0.0
        %2848 = vmatpush1.msra.mxu0 %v2557
        %2849 = vmatprep.subr.mxu0 0.0
        %2850 = vmatpush1.msra.mxu0 %v2558
        %2851 = vmatprep.subr.mxu0 0.0
        %2852 = vmatpush1.msra.mxu0 %v2559
        %2853 = vmatprep.subr.mxu0 0.0
        %2854 = vmatpush1.msra.mxu0 %v2560
        %2855 = vmatprep.subr.mxu0 0.0
        %2856 = vmatpush1.msra.mxu0 %v2561
        %2857 = vmatprep.subr.mxu0 0.0
        %2858 = vmatpush1.msra.mxu0 %v2562
        %2859 = vmatprep.subr.mxu0 0.0
        %2860 = vmatpush1.msra.mxu0 %v2563
        %2861 = vmatprep.subr.mxu0 0.0
        %2862 = vmatpush1.msra.mxu0 %v2564
        %2863 = vmatprep.subr.mxu0 0.0
        %2864 = vmatpush1.msra.mxu0 %v2565
        %2865 = vmatprep.subr.mxu0 0.0
        %2866 = vmatpush1.msra.mxu0 %v2566
        %2867 = vmatprep.subr.mxu0 0.0
        %2868 = vmatpush1.msra.mxu0 %v2567
        %2869 = vmatprep.subr.mxu0 0.0
        %2870 = vmatpush1.msra.mxu0 %v2568
        %2871 = vmatprep.subr.mxu0 0.0
        %2872 = vmatpush1.msra.mxu0 %v2569
        %2873 = vmatprep.subr.mxu0 0.0
        %2874 = vmatpush1.msra.mxu0 %v2570
        %2875 = vmatprep.subr.mxu0 0.0
        %2876 = vmatpush1.msra.mxu0 %v2571
        %2877 = vmatprep.subr.mxu0 0.0
        %2878 = vmatpush1.msra.mxu0 %v2572
        %2879 = vmatprep.subr.mxu0 0.0
        %2880 = vmatpush1.msra.mxu0 %v2573
        %2881 = vmatprep.subr.mxu0 0.0
        %2882 = vmatpush1.msra.mxu0 %v2574
        %2883 = vmatprep.subr.mxu0 0.0
        %2884 = vmatpush1.msra.mxu0 %v2575
        %2885 = vmatprep.subr.mxu0 0.0
        %2886 = vmatpush1.msra.mxu0 %v2576
        %2887 = vmatprep.subr.mxu0 0.0
        %2888 = vmatpush1.msra.mxu0 %v2577
        %2889 = vmatprep.subr.mxu0 0.0
        %2890 = vmatpush1.msra.mxu0 %v2578
        %2891 = vmatprep.subr.mxu0 0.0
        %2892 = vmatpush1.msra.mxu0 %v2579
        %2893 = vmatprep.subr.mxu0 0.0
        %2894 = vmatpush1.msra.mxu0 %v2580
        %2895 = vmatprep.subr.mxu0 0.0
        %2896 = vmatpush1.msra.mxu0 %v2581
        %2897 = vmatprep.subr.mxu0 0.0
        %2898 = vmatpush1.msra.mxu0 %v2582
        %2899 = vmatprep.subr.mxu0 0.0
        %2900 = vmatpush1.msra.mxu0 %v2583
        %2901 = vmatprep.subr.mxu0 0.0
        %2902 = vmatpush1.msra.mxu0 %v2584
        %2903 = vmatprep.subr.mxu0 0.0
        %2904 = vmatpush1.msra.mxu0 %v2585
        %2905 = vmatprep.subr.mxu0 0.0
        %2906 = vmatpush1.msra.mxu0 %v2586
        %2907 = vmatprep.mubr.f32.mxu0 %v2588
        %2908 = vmatmul.mubr.f32.gmra.mrb[0].mxu0 %v2587
        %v2909 = vpop.f32.mrb[0].mxu0
        %v2910 = vadd.f32 %v2686, %v2909
        %v2911 = vpop.f32.mrb[0].mxu0
        %2912 = vmatprep.mubr.f32.mxu0 %v2590
        %2913 = vmatmul.mubr.f32.gmra.mrb[0].mxu0 %v2589
        %v2914 = vpop.f32.mrb[0].mxu0
        %v2915 = vadd.f32 %v2691, %v2914
        %v2916 = vpop.f32.mrb[0].mxu0
        %2917 = vmatprep.mubr.f32.mxu0 %v2592
        %2918 = vmatmul.mubr.f32.gmra.mrb[0].mxu0 %v2591
        %v2919 = vpop.f32.mrb[0].mxu0
        %v2920 = vadd.f32 %v2696, %v2919
        %v2921 = vpop.f32.mrb[0].mxu0
        %2922 = vmatprep.mubr.f32.mxu0 %v2594
        %2923 = vmatmul.mubr.f32.gmra.mrb[0].mxu0 %v2593
        %v2924 = vpop.f32.mrb[0].mxu0
        %v2925 = vadd.f32 %v2701, %v2924
        %v2926 = vpop.f32.mrb[0].mxu0
        %2927 = vmatprep.mubr.f32.mxu0 %v2596
        %2928 = vmatmul.mubr.f32.gmra.mrb[0].mxu0 %v2595
        %v2929 = vpop.f32.mrb[0].mxu0
        %v2930 = vadd.f32 %v2706, %v2929
        %v2931 = vpop.f32.mrb[0].mxu0
        %2932 = vmatprep.mubr.f32.mxu0 %v2598
        %2933 = vmatmul.mubr.f32.gmra.mrb[0].mxu0 %v2597
        %v2934 = vpop.f32.mrb[0].mxu0
        %v2935 = vadd.f32 %v2711, %v2934
        %v2936 = vpop.f32.mrb[0].mxu0
        %2937 = vmatprep.mubr.f32.mxu0 %v2600
        %2938 = vmatmul.mubr.f32.gmra.mrb[0].mxu0 %v2599
        %v2939 = vpop.f32.mrb[0].mxu0
        %v2940 = vadd.f32 %v2716, %v2939
        %v2941 = vpop.f32.mrb[0].mxu0
        %2942 = vmatprep.mubr.f32.mxu0 %v2602
        %2943 = vmatmul.mubr.f32.gmra.mrb[0].mxu0 %v2601
        %v2944 = vpop.f32.mrb[0].mxu0
        %v2945 = vadd.f32 %v2721, %v2944
        %v2946 = vpop.f32.mrb[0].mxu0
        %2947 = vmatprep.mubr.f32.mxu0 %v2604
        %2948 = vmatmul.mubr.f32.gmra.mrb[0].mxu0 %v2603
        %v2949 = vpop.f32.mrb[0].mxu0
        %v2950 = vadd.f32 %v2726, %v2949
        %v2951 = vpop.f32.mrb[0].mxu0
        %2952 = vmatprep.mubr.f32.mxu0 %v2606
        %2953 = vmatmul.mubr.f32.gmra.mrb[0].mxu0 %v2605
        %v2954 = vpop.f32.mrb[0].mxu0
        %v2955 = vadd.f32 %v2731, %v2954
        %v2956 = vpop.f32.mrb[0].mxu0
        %2957 = vmatprep.mubr.f32.mxu0 %v2608
        %2958 = vmatmul.mubr.f32.gmra.mrb[0].mxu0 %v2607
        %v2959 = vpop.f32.mrb[0].mxu0
        %v2960 = vadd.f32 %v2736, %v2959
        %v2961 = vpop.f32.mrb[0].mxu0
        %2962 = vmatprep.mubr.f32.mxu0 %v2610
        %2963 = vmatmul.mubr.f32.gmra.mrb[0].mxu0 %v2609
        %v2964 = vpop.f32.mrb[0].mxu0
        %v2965 = vadd.f32 %v2741, %v2964
        %v2966 = vpop.f32.mrb[0].mxu0
        %2967 = vmatprep.mubr.f32.mxu0 %v2612
        %2968 = vmatmul.mubr.f32.gmra.mrb[0].mxu0 %v2611
        %v2969 = vpop.f32.mrb[0].mxu0
        %v2970 = vadd.f32 %v2746, %v2969
        %v2971 = vpop.f32.mrb[0].mxu0
        %2972 = vmatprep.mubr.f32.mxu0 %v2614
        %2973 = vmatmul.mubr.f32.gmra.mrb[0].mxu0 %v2613
        %v2974 = vpop.f32.mrb[0].mxu0
        %v2975 = vadd.f32 %v2751, %v2974
        %v2976 = vpop.f32.mrb[0].mxu0
        %2977 = vmatprep.mubr.f32.mxu0 %v2616
        %2978 = vmatmul.mubr.f32.gmra.mrb[0].mxu0 %v2615
        %v2979 = vpop.f32.mrb[0].mxu0
        %v2980 = vadd.f32 %v2756, %v2979
        %v2981 = vpop.f32.mrb[0].mxu0
        %2982 = vmatprep.mubr.f32.mxu0 %v2618
        %2983 = vmatmul.mubr.f32.gmra.mrb[0].mxu0 %v2617
        %v2984 = vpop.f32.mrb[0].mxu0
        %v2985 = vadd.f32 %v2761, %v2984
        %v2986 = vpop.f32.mrb[0].mxu0
        %2987 = vmatprep.mubr.f32.mxu0 %v2620
        %2988 = vmatmul.mubr.f32.gmra.mrb[0].mxu0 %v2619
        %v2989 = vpop.f32.mrb[0].mxu0
        %v2990 = vadd.f32 %v2766, %v2989
        %v2991 = vpop.f32.mrb[0].mxu0
        %2992 = vmatprep.mubr.f32.mxu0 %v2622
        %2993 = vmatmul.mubr.f32.gmra.mrb[0].mxu0 %v2621
        %v2994 = vpop.f32.mrb[0].mxu0
        %v2995 = vadd.f32 %v2771, %v2994
        %v2996 = vpop.f32.mrb[0].mxu0
        %2997 = vmatprep.mubr.f32.mxu0 %v2624
        %2998 = vmatmul.mubr.f32.gmra.mrb[0].mxu0 %v2623
        %v2999 = vpop.f32.mrb[0].mxu0
        %v3000 = vadd.f32 %v2776, %v2999
        %v3001 = vpop.f32.mrb[0].mxu0
        %3002 = vmatprep.mubr.f32.mxu0 %v2626
        %3003 = vmatmul.mubr.f32.gmra.mrb[0].mxu0 %v2625
        %v3004 = vpop.f32.mrb[0].mxu0
        %v3005 = vadd.f32 %v2781, %v3004
        %v3006 = vpop.f32.mrb[0].mxu0
        %3007 = vmatprep.mubr.f32.mxu0 %v2628
        %3008 = vmatmul.mubr.f32.gmra.mrb[0].mxu0 %v2627
        %v3009 = vpop.f32.mrb[0].mxu0
        %v3010 = vadd.f32 %v2786, %v3009
        %v3011 = vpop.f32.mrb[0].mxu0
        %3012 = vmatprep.mubr.f32.mxu0 %v2630
        %3013 = vmatmul.mubr.f32.gmra.mrb[0].mxu0 %v2629
        %v3014 = vpop.f32.mrb[0].mxu0
        %v3015 = vadd.f32 %v2791, %v3014
        %v3016 = vpop.f32.mrb[0].mxu0
        %3017 = vmatprep.mubr.f32.mxu0 %v2632
        %3018 = vmatmul.mubr.f32.gmra.mrb[0].mxu0 %v2631
        %v3019 = vpop.f32.mrb[0].mxu0
        %v3020 = vadd.f32 %v2796, %v3019
        %v3021 = vpop.f32.mrb[0].mxu0
        %3022 = vmatprep.mubr.f32.mxu0 %v2634
        %3023 = vmatmul.mubr.f32.gmra.mrb[0].mxu0 %v2633
        %v3024 = vpop.f32.mrb[0].mxu0
        %v3025 = vadd.f32 %v2801, %v3024
        %v3026 = vpop.f32.mrb[0].mxu0
        %3027 = vmatprep.mubr.f32.mxu0 %v2636
        %3028 = vmatmul.mubr.f32.gmra.mrb[0].mxu0 %v2635
        %v3029 = vpop.f32.mrb[0].mxu0
        %v3030 = vadd.f32 %v2806, %v3029
        %v3031 = vpop.f32.mrb[0].mxu0
        %3032 = vmatprep.mubr.f32.mxu0 %v2638
        %3033 = vmatmul.mubr.f32.gmra.mrb[0].mxu0 %v2637
        %v3034 = vpop.f32.mrb[0].mxu0
        %v3035 = vadd.f32 %v2811, %v3034
        %v3036 = vpop.f32.mrb[0].mxu0
        %3037 = vmatprep.mubr.f32.mxu0 %v2640
        %3038 = vmatmul.mubr.f32.gmra.mrb[0].mxu0 %v2639
        %v3039 = vpop.f32.mrb[0].mxu0
        %v3040 = vadd.f32 %v2816, %v3039
        %v3041 = vpop.f32.mrb[0].mxu0
        %3042 = vmatprep.mubr.f32.mxu0 %v2642
        %3043 = vmatmul.mubr.f32.gmra.mrb[0].mxu0 %v2641
        %v3044 = vpop.f32.mrb[0].mxu0
        %v3045 = vadd.f32 %v2821, %v3044
        %v3046 = vpop.f32.mrb[0].mxu0
        %3047 = vmatprep.mubr.f32.mxu0 %v2644
        %3048 = vmatmul.mubr.f32.gmra.mrb[0].mxu0 %v2643
        %v3049 = vpop.f32.mrb[0].mxu0
        %v3050 = vadd.f32 %v2826, %v3049
        %v3051 = vpop.f32.mrb[0].mxu0
        %3052 = vmatprep.mubr.f32.mxu0 %v2646
        %3053 = vmatmul.mubr.f32.gmra.mrb[0].mxu0 %v2645
        %v3054 = vpop.f32.mrb[0].mxu0
        %v3055 = vadd.f32 %v2831, %v3054
        %v3056 = vpop.f32.mrb[0].mxu0
        %3057 = vmatprep.mubr.f32.mxu0 %v2648
        %3058 = vmatmul.mubr.f32.gmra.mrb[0].mxu0 %v2647
        %v3059 = vpop.f32.mrb[0].mxu0
        %v3060 = vadd.f32 %v2836, %v3059
        %v3061 = vpop.f32.mrb[0].mxu0
        %3062 = vmatprep.mubr.f32.mxu0 %v2650
        %3063 = vmatmul.mubr.f32.gmra.mrb[0].mxu0 %v2649
        %v3064 = vpop.f32.mrb[0].mxu0
        %v3065 = vadd.f32 %v2841, %v3064
        %v3066 = vpop.f32.mrb[0].mxu0
        %3067 = vdwg.mxu0
        %v3068 = vtanh.pop %v2910
        %v3069 = vtanh.pop %v2915
        %v3070 = vtanh.pop %v2920
        %v3071 = vtanh.pop %v2925
        %v3072 = vtanh.pop %v2930
        %v3073 = vtanh.pop %v2935
        %v3074 = vtanh.pop %v2940
        %v3075 = vtanh.pop %v2945
        %v3076 = vtanh.pop %v2950
        %v3077 = vtanh.pop %v2955
        %v3078 = vtanh.pop %v2960
        %v3079 = vtanh.pop %v2965
        %v3080 = vtanh.pop %v2970
        %v3081 = vtanh.pop %v2975
        %v3082 = vtanh.pop %v2980
        %v3083 = vtanh.pop %v2985
        %v3084 = vtanh.pop %v2990
        %v3085 = vtanh.pop %v2995
        %v3086 = vtanh.pop %v3000
        %v3087 = vtanh.pop %v3005
        %v3088 = vtanh.pop %v3010
        %v3089 = vtanh.pop %v3015
        %v3090 = vtanh.pop %v3020
        %v3091 = vtanh.pop %v3025
        %v3092 = vtanh.pop %v3030
        %v3093 = vtanh.pop %v3035
        %v3094 = vtanh.pop %v3040
        %v3095 = vtanh.pop %v3045
        %v3096 = vtanh.pop %v3050
        %v3097 = vtanh.pop %v3055
        %v3098 = vtanh.pop %v3060
        %v3099 = vtanh.pop %v3065
        %v3100 = vld [vmem:[#allocation6] sm:$0xff]
        %v3101 = vld [vmem:[#allocation6 + $0x8] sm:$0xff]
        %v3102 = vld [vmem:[%s530] sm:$0xff]
        %3104 = vset.pattern.permute.xlu0 0
        %3105 = vperm.xlu0 %3104, %v3102
        %v3106 = vpop.permute.xlu0 %3105
        %3108 = vmatprep.subr.mxu0 0.0
        %3109 = vmatpush1.msra.mxu0 %v3068
        %3110 = vmatprep.subr.mxu0 0.0
        %3111 = vmatpush1.msra.mxu0 %v3069
        %3112 = vmatprep.subr.mxu0 0.0
        %3113 = vmatpush1.msra.mxu0 %v3070
        %3114 = vmatprep.subr.mxu0 0.0
        %3115 = vmatpush1.msra.mxu0 %v3071
        %3116 = vmatprep.subr.mxu0 0.0
        %3117 = vmatpush1.msra.mxu0 %v3072
        %3118 = vmatprep.subr.mxu0 0.0
        %3119 = vmatpush1.msra.mxu0 %v3073
        %3120 = vmatprep.subr.mxu0 0.0
        %3121 = vmatpush1.msra.mxu0 %v3074
        %3122 = vmatprep.subr.mxu0 0.0
        %3123 = vmatpush1.msra.mxu0 %v3075
        %3124 = vmatprep.subr.mxu0 0.0
        %3125 = vmatpush1.msra.mxu0 %v3076
        %3126 = vmatprep.subr.mxu0 0.0
        %3127 = vmatpush1.msra.mxu0 %v3077
        %3128 = vmatprep.subr.mxu0 0.0
        %3129 = vmatpush1.msra.mxu0 %v3078
        %3130 = vmatprep.subr.mxu0 0.0
        %3131 = vmatpush1.msra.mxu0 %v3079
        %3132 = vmatprep.subr.mxu0 0.0
        %3133 = vmatpush1.msra.mxu0 %v3080
        %3134 = vmatprep.subr.mxu0 0.0
        %3135 = vmatpush1.msra.mxu0 %v3081
        %3136 = vmatprep.subr.mxu0 0.0
        %3137 = vmatpush1.msra.mxu0 %v3082
        %3138 = vmatprep.subr.mxu0 0.0
        %3139 = vmatpush1.msra.mxu0 %v3083
        %3140 = vmatprep.subr.mxu0 0.0
        %3141 = vmatpush1.msra.mxu0 %v3084
        %3142 = vmatprep.subr.mxu0 0.0
        %3143 = vmatpush1.msra.mxu0 %v3085
        %3144 = vmatprep.subr.mxu0 0.0
        %3145 = vmatpush1.msra.mxu0 %v3086
        %3146 = vmatprep.subr.mxu0 0.0
        %3147 = vmatpush1.msra.mxu0 %v3087
        %3148 = vmatprep.subr.mxu0 0.0
        %3149 = vmatpush1.msra.mxu0 %v3088
        %3150 = vmatprep.subr.mxu0 0.0
        %3151 = vmatpush1.msra.mxu0 %v3089
        %3152 = vmatprep.subr.mxu0 0.0
        %3153 = vmatpush1.msra.mxu0 %v3090
        %3154 = vmatprep.subr.mxu0 0.0
        %3155 = vmatpush1.msra.mxu0 %v3091
        %3156 = vmatprep.subr.mxu0 0.0
        %3157 = vmatpush1.msra.mxu0 %v3092
        %3158 = vmatprep.subr.mxu0 0.0
        %3159 = vmatpush1.msra.mxu0 %v3093
        %3160 = vmatprep.subr.mxu0 0.0
        %3161 = vmatpush1.msra.mxu0 %v3094
        %3162 = vmatprep.subr.mxu0 0.0
        %3163 = vmatpush1.msra.mxu0 %v3095
        %3164 = vmatprep.subr.mxu0 0.0
        %3165 = vmatpush1.msra.mxu0 %v3096
        %3166 = vmatprep.subr.mxu0 0.0
        %3167 = vmatpush1.msra.mxu0 %v3097
        %3168 = vmatprep.subr.mxu0 0.0
        %3169 = vmatpush1.msra.mxu0 %v3098
        %3170 = vmatprep.subr.mxu0 0.0
        %3171 = vmatpush1.msra.mxu0 %v3099
        %3172 = vmatprep.mubr.f32.mxu0 %v3101
        %3173 = vmatmul.mubr.f32.gmra.mrb[0].mxu0 %v3100
        %v3174 = vpop.f32.mrb[0].mxu0
        %v3175 = vadd.f32 %v3106, %v3174
        %v3176 = vpop.f32.mrb[0].mxu0
        %3177 = vdwg.mxu0
        %3178 = vst [vmem:[%s513] sm:$0xff] %v3175
        %s3179 = sand.u32 %s364, 1
        %s3180 = scalar_lea.sflag [#allocation8], %s3179
        %s3181 = sand.u32 %s364, 1
        %s3182 = smul.addr %s3181, 8
        %s3183 = scalar_lea.vmem [#allocation7], %s3182
        // Predicated region
        $region81: #{tpu_custom_call.1} parent=75 // pred_check
          %p3184 = pneg %p374
        $region82: #{tpu_custom_call.1} parent=75 // pred_check_branch
          %3186 = sbr.rel (%p3184) target = $region84
        $region83: #{tpu_custom_call.1} parent=75 // pred_region
          %s3188 = ssub.s32 128, 128
          %3189 = vsyncadd %s3180, %s3188
          %s3190 = sadd.s32 %s33, %s32
          %s3191 = smul.addr %s3190, 128
          %s3192 = scalar_lea.hbm %s14, %s3191
          %s3194 = sshll.u32 %s3183, 4
          %s3195 = int_to_ptr.vmem [resolvable:$true] %s3194
          %3197 = dma.vmem_to_hbm [thread:$0]  %s3195, 128, %s3192, %s3180
        $region84: #{tpu_custom_call.1} parent=75 // pred_fallthru
          _
      $region76: #{tpu_custom_call.1} parent=5 // pred_fallthru
        _
      %p3198 = scmp.le.s32.totalorder 2, %s23
      // Predicated region
      $region85: #{tpu_custom_call.1} parent=5 // pred_check
        %p3199 = pneg %p3198
      $region86: #{tpu_custom_call.1} parent=5 // pred_check_branch
        %3201 = sbr.rel (%p3199) target = $region88
      $region87: #{tpu_custom_call.1} parent=5 // pred_region
        %s3202 = ssub.s32 %s23, 2
        // Predicated region
        $region89: #{tpu_custom_call.1} parent=87 // pred_check
          %p3203 = pneg %p380
        $region90: #{tpu_custom_call.1} parent=87 // pred_check_branch
          %3205 = sbr.rel (%p3203) target = $region92
        $region91: #{tpu_custom_call.1} parent=87 // pred_region
          %s3206 = sand.u32 %s365, 1
          %s3207 = scalar_lea.sflag [#allocation8], %s3206
          %s3208 = sand.u32 %s365, 1
          %s3209 = smul.addr %s3208, 8
          %s3210 = scalar_lea.vmem [#allocation7], %s3209
          %3211 = dma.done %s3207, 128
        $region92: #{tpu_custom_call.1} parent=87 // pred_fallthru
          _
      $region88: #{tpu_custom_call.1} parent=5 // pred_fallthru
        _
    $region6: #{tpu_custom_call.1} parent=1 // loop_footer
      %s27 = sadd.s32 1, %s23
    $region7: #{tpu_custom_call.1} parent=1 // loop_footer_branch
      %22 = sbr.rel target = $region3
    $region8: #{tpu_custom_call.1} parent=1 // loop_exit
      _
    %3212 = vsyncpa [#allocation8], 1
    %s3213 = scalar_lea.sflag [#allocation8], 1
    %3214 = vsyncpa %s3213, 1

</llo_original>
